<compile_context>
chip_gen: v7x
topology: tpu7x:2x2x1
jax: 0.10.0
libtpu: 0.0.40
codegen_flags: <defaults>
</compile_context>

<pallas_src>
import functools

import jax
import jax.numpy as jnp
import numpy as np
from jax.experimental import pallas as pl
from jax.experimental.pallas import tpu as pltpu


# ----------------------------- kernel helpers --------------------------------


def _bf16_dot(a, b):
    """MXU matmul: bf16 operands, f32 accumulation."""
    return jnp.dot(a.astype(jnp.bfloat16), b.astype(jnp.bfloat16),
                   preferred_element_type=jnp.float32)


def _bf16_dot_t(a, b):
    """a @ b.T (contraction over the shared last dim), bf16 operands, f32 acc."""
    return jnp.einsum('md,nd->mn', a.astype(jnp.bfloat16), b.astype(jnp.bfloat16),
                      preferred_element_type=jnp.float32)


def _softmax_scaled(logits, scale):
    """Row softmax with the (post-attention) 1/sqrt(head_width) scale folded in.

    The scale commutes with the downstream (score @ value) matmul, so scaling the
    normalized scores is numerically equivalent to the reference's
    (softmax(logits) @ v) / sqrt(head_width).  The divide runs on the EUP via
    pl.reciprocal(approx=True) instead of occupying VALU slots.
    """
    m = jnp.max(logits, axis=-1, keepdims=True)
    e = jnp.exp(logits - m)
    denom = jnp.sum(e, axis=-1, keepdims=True)
    return e * (pl.reciprocal(denom, approx=True) * scale)


# ----------------------------- kernel ----------------------------------------


def gspu_kernel(
    x_ref, q_blk_ref, w_x_ref, wd_stk_ref, w_s_ref, wc_stk_ref, b_ref,
    out_ref,
    *, batch, items, summary_width, pisu_heads, mha_heads, d_model, d_summary,
):
    B, N, S_w = batch, items, summary_width
    Hp, Hm = pisu_heads, mha_heads
    D, d_sum = d_model, d_summary
    hwp, hwm = D // Hp, D // Hm
    d_out_pad = out_ref.shape[-1]
    inv_sqrt_hwp = 1.0 / float(np.sqrt(hwp))
    inv_sqrt_hwm = 1.0 / float(np.sqrt(hwm))

    # ---- hoisted loop-invariant loads / broadcasts ---------------------------
    x = x_ref[...]              # (B*N, D)        bf16
    q_blk = q_blk_ref[...]      # (Hp*S_w, D)     bf16  block-diagonal PISU query
    w_x = w_x_ref[...]          # (D, 3D)         bf16  [wk_p | wv_p | wq_m]
    wd_stk = wd_stk_ref[...]    # (Hp*D, d_sum)   bf16  per-head row-masked dehead
    w_s = w_s_ref[...]          # (d_sum, 2D)     bf16  [wk_m | wv_m]
    wc_stk = wc_stk_ref[...]    # (Hm*D, d_out_pad) bf16 per-head row-masked collapse
    biases = b_ref[...]         # (8, 128)        f32   packed bias / LN table

    bias_x = biases[0:1, :3 * D]                                   # (1, 3D)
    bd = jnp.broadcast_to(biases[1:2, :d_sum], (S_w, d_sum))       # hoisted broadcast
    ln_g = biases[2:3, :d_sum]
    ln_b = biases[3:4, :d_sum]
    bias_s = biases[4:5, :2 * D]                                   # (1, 2D)
    bc = jnp.broadcast_to(biases[5:6, :], (N, d_out_pad))          # hoisted broadcast

    # ---- fused x-projection over the folded batch (M = B*N) ------------------
    h_x = _bf16_dot(x, w_x) + bias_x        # (B*N, 3D) f32
    k_p = h_x[:, :D]                        # key   heads (lanes h*hwp..(h+1)*hwp)
    v_p = h_x[:, D:2 * D]                   # value heads
    hq = h_x[:, 2 * D:3 * D]                # MHA query heads

    # ---- PISU: block-diag parameter query + per-head accumulated dehead ------
    summaries = []
    for b in range(B):                      # B tiny & static: unrolled
        k_b = k_p[b * N:(b + 1) * N]        # (N, D)
        v_b = v_p[b * N:(b + 1) * N]        # (N, D)
        # logits[h*S_w+s, n] == <q[h,s,:], k_head_h[n,:]>   (one K=D matmul, no masks)
        logits = _bf16_dot_t(q_blk, k_b)                       # (Hp*S_w, N) f32
        score = _softmax_scaled(logits, inv_sqrt_hwp)          # (Hp*S_w, N) f32
        av = _bf16_dot(score, v_b)                             # (Hp*S_w, D) f32
        # summary_b = sum_h av[h rows] @ wd_stack[h block]  (per-head small dots,
        # no lane-axis concatenation; wd_stack keeps only head-h input rows)
        acc = bd
        for h in range(Hp):
            acc = acc + _bf16_dot(av[h * S_w:(h + 1) * S_w, :],
                                  wd_stk[h * D:(h + 1) * D, :])
        summaries.append(acc)                                  # (S_w, d_sum)
    summary = jnp.concatenate(summaries, axis=0)               # (B*S_w, d_sum)

    # ---- LayerNorm over d_summary (eps=1e-5, biased variance), f32 -----------
    mean = jnp.mean(summary, axis=-1, keepdims=True)
    var = jnp.mean(jnp.square(summary - mean), axis=-1, keepdims=True)
    summary = (summary - mean) * jax.lax.rsqrt(var + 1e-5) * ln_g + ln_b

    # ---- fused summary projection: [hk | hv] ---------------------------------
    h_s = _bf16_dot(summary, w_s) + bias_s                     # (B*S_w, 2D) f32
    hk = h_s[:, :D]
    hv = h_s[:, D:2 * D]

    # ---- MHA "Localize": query = x rows, key/value = summary -----------------
    for b in range(B):
        hq_b = hq[b * N:(b + 1) * N]                           # (N, D)
        hk_b = hk[b * S_w:(b + 1) * S_w]                       # (S_w, D)
        hv_b = hv[b * S_w:(b + 1) * S_w]                       # (S_w, D)
        # per-head logits (tiny K=hwm dots, f32 operands), stacked along sublanes
        blocks = []
        for h in range(Hm):
            c = slice(h * hwm, (h + 1) * hwm)
            blocks.append(jnp.einsum('nd,sd->ns', hq_b[:, c], hk_b[:, c],
                                     preferred_element_type=jnp.float32))
        logits = jnp.concatenate(blocks, axis=0)               # (Hm*N, S_w) f32
        score = _softmax_scaled(logits, inv_sqrt_hwm)          # (Hm*N, S_w) f32
        av = _bf16_dot(score, hv_b)                            # (Hm*N, D)   f32
        out_b = bc                                             # (N, d_out_pad)
        for h in range(Hm):
            out_b = out_b + _bf16_dot(av[h * N:(h + 1) * N, :],
                                      wc_stk[h * D:(h + 1) * D, :])
        # lane-dense (128-wide) store, written per batch, no final concat
        out_ref[b * N:(b + 1) * N, :] = out_b


# ----------------------------- wrapper ----------------------------------------


def gspu_forward(x, params, *, pisu_heads, mha_heads, summary_width):
    B, N, D = x.shape
    Hp, Hm, S_w = pisu_heads, mha_heads, summary_width
    hwp, hwm = D // Hp, D // Hm
    d_sum = params["wd"].shape[-1]
    d_out = params["wc"].shape[-1]
    d_out_pad = 128
    bf16, f32 = jnp.bfloat16, jnp.float32
    assert 3 * D <= 128 and 2 * D <= 128 and d_sum <= 128 and d_out <= d_out_pad

    # Block-diagonal PISU parameter query: row h*S_w+s carries q[h,s,:] in head h's
    # column block (zeros elsewhere) -> ONE K=D matmul yields every head's logits.
    q = params["q_pisu"]                                       # (Hp, S_w, hwp)
    q_blk = jnp.zeros((Hp * S_w, D), f32)
    for h in range(Hp):
        q_blk = q_blk.at[h * S_w:(h + 1) * S_w, h * hwp:(h + 1) * hwp].set(q[h])

    # Fused projection weights.
    w_x = jnp.concatenate([params["wk_p"], params["wv_p"], params["wq_m"]], axis=1)
    w_s = jnp.concatenate([params["wk_m"], params["wv_m"]], axis=1)

    # Per-head "stacked" weights: block h keeps only head-h input rows of w, so
    # sum_h (score_h @ v)[rows] @ stack[h block] == per-head value+dehead, mask-free.
    def head_stack(w, heads, head_width, pad_to=None):
        d_in, d_o = w.shape
        rows = np.arange(d_in)
        blocks = []
        for h in range(heads):
            keep = ((rows >= h * head_width) & (rows < (h + 1) * head_width))
            blocks.append(w * jnp.asarray(keep.astype(np.float32))[:, None])
        s = jnp.concatenate(blocks, axis=0)                    # (heads*d_in, d_o)
        if pad_to is not None and pad_to > d_o:
            s = jnp.pad(s, ((0, 0), (0, pad_to - d_o)))        # lane-dense output
        return s

    wd_stk = head_stack(params["wd"], Hp, hwp)                 # (Hp*D, d_sum)
    wc_stk = head_stack(params["wc"], Hm, hwm, pad_to=d_out_pad)  # (Hm*D, 128)

    # All bias / LayerNorm vectors packed into ONE (8,128) tile -> one DMA.
    bvec = jnp.zeros((8, 128), f32)
    bvec = bvec.at[0, :3 * D].set(jnp.concatenate(
        [params["bk_p"][0], params["bv_p"][0], params["bq_m"][0]]))
    bvec = bvec.at[1, :d_sum].set(params["bd"][0])
    bvec = bvec.at[2, :d_sum].set(params["ln_g"][0])
    bvec = bvec.at[3, :d_sum].set(params["ln_b"][0])
    bvec = bvec.at[4, :2 * D].set(jnp.concatenate(
        [params["bk_m"][0], params["bv_m"][0]]))
    bvec = bvec.at[5, :d_out].set(params["bc"][0])

    inputs = [
        x.reshape(B * N, D).astype(bf16),
        q_blk.astype(bf16),
        w_x.astype(bf16),
        wd_stk.astype(bf16),
        w_s.astype(bf16),
        wc_stk.astype(bf16),
        bvec,
    ]

    kernel = functools.partial(
        gspu_kernel, batch=B, items=N, summary_width=S_w,
        pisu_heads=Hp, mha_heads=Hm, d_model=D, d_summary=d_sum)

    flops = (
        2 * (B * N) * D * (3 * D)
        + B * (2 * (Hp * S_w) * D * N + 2 * (Hp * S_w) * N * D
               + Hp * 2 * S_w * D * d_sum)
        + 2 * (B * S_w) * d_sum * (2 * D)
        + B * (Hm * 2 * N * hwm * S_w + 2 * (Hm * N) * S_w * D
               + Hm * 2 * N * D * d_out_pad)
    )
    transcendentals = B * (Hp * S_w * N + Hm * N * S_w) + B * (Hp * S_w + Hm * N) + B * S_w
    bytes_accessed = (sum(int(np.prod(a.shape)) * a.dtype.itemsize for a in inputs)
                      + B * N * d_out_pad * 4)

    # Single invocation (grid=()): whole problem (~60 KiB) is VMEM-resident, so there
    # is no per-step pipeline overhead and no re-DMA of weights.  Scale-out plan (v7x):
    # once shapes grow, grid over (batch, M-tiles) marked "parallel" to use both
    # TensorCores, tiles sized against 64 MiB VMEM with an explicit vmem_limit_bytes.
    out_pad = pl.pallas_call(
        kernel,
        out_shape=jax.ShapeDtypeStruct((B * N, d_out_pad), f32),
        in_specs=[pl.BlockSpec(memory_space=pltpu.MemorySpace.VMEM) for _ in inputs],
        out_specs=pl.BlockSpec(memory_space=pltpu.MemorySpace.VMEM),
        cost_estimate=pl.CostEstimate(flops=flops, transcendentals=transcendentals,
                                      bytes_accessed=bytes_accessed),
    )(*inputs)
    return out_pad[:, :d_out].reshape(B, N, d_out)


# ----------------------------- reference (plain JAX, f32) ---------------------


def gspu_reference(x, params, *, pisu_heads, mha_heads, summary_width):
    B, N, D = x.shape
    hwp = D // pisu_heads
    hwm = D // mha_heads

    # PISU
    k_p = (x @ params["wk_p"] + params["bk_p"][0]).reshape(B, N, pisu_heads, hwp)
    v_p = (x @ params["wv_p"] + params["bv_p"][0]).reshape(B, N, pisu_heads, hwp)
    q = params["q_pisu"]                                     # (Hp, S_w, hwp)
    logits = jnp.einsum('hsd,bnhd->bhsn', q, k_p)
    score = jax.nn.softmax(logits, axis=-1)
    attn = jnp.einsum('bhsn,bnhd->bhsd', score, v_p) / np.sqrt(float(hwp))
    attn = attn.transpose(0, 2, 1, 3).reshape(B, summary_width, pisu_heads * hwp)
    summary = attn @ params["wd"] + params["bd"][0]          # (B, S_w, d_sum)

    mean = summary.mean(-1, keepdims=True)
    var = ((summary - mean) ** 2).mean(-1, keepdims=True)
    summary = (summary - mean) / jnp.sqrt(var + 1e-5) * params["ln_g"][0] + params["ln_b"][0]

    # MHA Localize
    hq = (x @ params["wq_m"] + params["bq_m"][0]).reshape(B, N, mha_heads, hwm)
    hk = (summary @ params["wk_m"] + params["bk_m"][0]).reshape(B, summary_width, mha_heads, hwm)
    hv = (summary @ params["wv_m"] + params["bv_m"][0]).reshape(B, summary_width, mha_heads, hwm)
    logits = jnp.einsum('bnhd,bshd->bhns', hq, hk)
    score = jax.nn.softmax(logits, axis=-1)
    attn = jnp.einsum('bhns,bshd->bhnd', score, hv) / np.sqrt(float(hwm))
    attn = attn.transpose(0, 2, 1, 3).reshape(B, N, mha_heads * hwm)
    return attn @ params["wc"] + params["bc"][0]


# ----------------------------- main -------------------------------------------


if __name__ == "__main__":
    # Shapes consistent with GSPU(d_model=32, d_summary=32, summary_width=8,
    #                             pisu_heads=4, mha_heads=4, layers=None, ensembles=None)
    B, N, D = 2, 16, 32
    D_SUM = 32
    S_W = 8
    HP, HM = 4, 4
    hwp, hwm = D // HP, D // HM

    key = jax.random.PRNGKey(0)
    ks = jax.random.split(key, 16)

    def rnd(k, shape, scale=0.1):
        return (scale * jax.random.normal(k, shape)).astype(jnp.float32)

    params = {
        # PISU
        "q_pisu": rnd(ks[0], (HP, S_W, hwp), 0.3),
        "wk_p": rnd(ks[1], (D, HP * hwp)),
        "bk_p": rnd(ks[2], (1, HP * hwp)),
        "wv_p": rnd(ks[3], (D, HP * hwp)),
        "bv_p": rnd(ks[4], (1, HP * hwp)),
        "wd": rnd(ks[5], (HP * hwp, D_SUM)),
        "bd": rnd(ks[6], (1, D_SUM)),
        # LayerNorm (PyTorch default init: gamma=1, beta=0)
        "ln_g": jnp.ones((1, D_SUM), jnp.float32),
        "ln_b": jnp.zeros((1, D_SUM), jnp.float32),
        # MHA Localize
        "wq_m": rnd(ks[7], (D, HM * hwm)),
        "bq_m": rnd(ks[8], (1, HM * hwm)),
        "wk_m": rnd(ks[9], (D_SUM, HM * hwm)),
        "bk_m": rnd(ks[10], (1, HM * hwm)),
        "wv_m": rnd(ks[11], (D_SUM, HM * hwm)),
        "bv_m": rnd(ks[12], (1, HM * hwm)),
        "wc": rnd(ks[13], (HM * hwm, D)),
        "bc": rnd(ks[14], (1, D)),
    }

    x = rnd(ks[15], (B, N, D), 1.0)

    out = gspu_forward(x, params, pisu_heads=HP, mha_heads=HM, summary_width=S_W)
    out = jax.block_until_ready(out)

    ref = gspu_reference(x, params, pisu_heads=HP, mha_heads=HM, summary_width=S_W)
    # bf16 MXU operands (f32 accumulation) + approx softmax reciprocal introduce
    # ~0.5-1% relative error vs. the pure-f32 reference; math is otherwise exact.
    np.testing.assert_allclose(np.asarray(out), np.asarray(ref), rtol=2e-2, atol=2e-2)

    # NOTE: dropout in the PyTorch module is only applied inside the optional
    # `layers` residual loop; with layers=None it never fires, so no dropout here.
    print("KERNEL_OK")
</pallas_src>

<mosaic_0001>
module attributes {stable_mosaic.version = 11 : i64} {
  func.func @gspu_kernel(%arg0: memref<32x32xbf16, #tpu.memory_space<vmem>>, %arg1: memref<32x32xbf16, #tpu.memory_space<vmem>>, %arg2: memref<32x96xbf16, #tpu.memory_space<vmem>>, %arg3: memref<128x32xbf16, #tpu.memory_space<vmem>>, %arg4: memref<32x64xbf16, #tpu.memory_space<vmem>>, %arg5: memref<128x128xbf16, #tpu.memory_space<vmem>>, %arg6: memref<8x128xf32, #tpu.memory_space<vmem>>, %arg7: memref<32x128xf32, #tpu.memory_space<vmem>>) attributes {dimension_semantics = [], scalar_prefetch = 0 : i64, scratch_operands = 0 : i64, tpu.core_type = #tpu.core_type<tc>} {
    %c0 = arith.constant 0 : index
    %c0_0 = arith.constant 0 : index
    %0 = vector.load %arg0[%c0, %c0_0] : memref<32x32xbf16, #tpu.memory_space<vmem>>, vector<32x32xbf16>
    %c0_1 = arith.constant 0 : index
    %c0_2 = arith.constant 0 : index
    %1 = vector.load %arg1[%c0_1, %c0_2] : memref<32x32xbf16, #tpu.memory_space<vmem>>, vector<32x32xbf16>
    %c0_3 = arith.constant 0 : index
    %c0_4 = arith.constant 0 : index
    %2 = vector.load %arg2[%c0_3, %c0_4] : memref<32x96xbf16, #tpu.memory_space<vmem>>, vector<32x96xbf16>
    %c0_5 = arith.constant 0 : index
    %c0_6 = arith.constant 0 : index
    %3 = vector.load %arg3[%c0_5, %c0_6] : memref<128x32xbf16, #tpu.memory_space<vmem>>, vector<128x32xbf16>
    %c0_7 = arith.constant 0 : index
    %c0_8 = arith.constant 0 : index
    %4 = vector.load %arg4[%c0_7, %c0_8] : memref<32x64xbf16, #tpu.memory_space<vmem>>, vector<32x64xbf16>
    %c0_9 = arith.constant 0 : index
    %c0_10 = arith.constant 0 : index
    %5 = vector.load %arg5[%c0_9, %c0_10] : memref<128x128xbf16, #tpu.memory_space<vmem>>, vector<128x128xbf16>
    %c0_11 = arith.constant 0 : index
    %c0_12 = arith.constant 0 : index
    %6 = vector.load %arg6[%c0_11, %c0_12] : memref<8x128xf32, #tpu.memory_space<vmem>>, vector<8x128xf32>
    %7 = vector.extract_strided_slice %6 {offsets = [0, 0], sizes = [1, 96], strides = [1, 1]} : vector<8x128xf32> to vector<1x96xf32>
    %8 = vector.extract_strided_slice %6 {offsets = [1, 0], sizes = [1, 32], strides = [1, 1]} : vector<8x128xf32> to vector<1x32xf32>
    %9 = vector.shape_cast %8 : vector<1x32xf32> to vector<1x32xf32>
    %10 = vector.broadcast %9 : vector<1x32xf32> to vector<8x32xf32>
    %11 = vector.extract_strided_slice %6 {offsets = [2, 0], sizes = [1, 32], strides = [1, 1]} : vector<8x128xf32> to vector<1x32xf32>
    %12 = vector.extract_strided_slice %6 {offsets = [3, 0], sizes = [1, 32], strides = [1, 1]} : vector<8x128xf32> to vector<1x32xf32>
    %13 = vector.extract_strided_slice %6 {offsets = [4, 0], sizes = [1, 64], strides = [1, 1]} : vector<8x128xf32> to vector<1x64xf32>
    %14 = vector.extract_strided_slice %6 {offsets = [5, 0], sizes = [1, 128], strides = [1, 1]} : vector<8x128xf32> to vector<1x128xf32>
    %15 = vector.shape_cast %14 : vector<1x128xf32> to vector<1x128xf32>
    %16 = vector.broadcast %15 : vector<1x128xf32> to vector<16x128xf32>
    %cst = arith.constant dense<0.000000e+00> : vector<32x96xf32>
    %17 = tpu.matmul %0, %2, %cst {dimension_numbers = #tpu.dot_dimension_numbers<[1], [0], [0], [1], [0, 0, 1, 1], [], []>} : vector<32x32xbf16>, vector<32x96xbf16>, vector<32x96xf32> -> vector<32x96xf32>
    %18 = vector.broadcast %7 : vector<1x96xf32> to vector<32x96xf32>
    %19 = arith.addf %17, %18 : vector<32x96xf32>
    %20 = vector.extract_strided_slice %19 {offsets = [0, 0], sizes = [32, 32], strides = [1, 1]} : vector<32x96xf32> to vector<32x32xf32>
    %21 = vector.extract_strided_slice %19 {offsets = [0, 32], sizes = [32, 32], strides = [1, 1]} : vector<32x96xf32> to vector<32x32xf32>
    %22 = vector.extract_strided_slice %19 {offsets = [0, 64], sizes = [32, 32], strides = [1, 1]} : vector<32x96xf32> to vector<32x32xf32>
    %23 = vector.extract_strided_slice %20 {offsets = [0, 0], sizes = [16, 32], strides = [1, 1]} : vector<32x32xf32> to vector<16x32xf32>
    %24 = vector.extract_strided_slice %21 {offsets = [0, 0], sizes = [16, 32], strides = [1, 1]} : vector<32x32xf32> to vector<16x32xf32>
    %25 = arith.truncf %23 : vector<16x32xf32> to vector<16x32xbf16>
    "tpu.trace_start"() <{level = 10 : i32, message = "md,nd->mn"}> : () -> ()
    %cst_13 = arith.constant dense<0.000000e+00> : vector<32x16xf32>
    %26 = tpu.matmul %1, %25, %cst_13 {dimension_numbers = #tpu.dot_dimension_numbers<[1], [1], [0], [0], [0, 0, 1, 0], [], []>} : vector<32x32xbf16>, vector<16x32xbf16>, vector<32x16xf32> -> vector<32x16xf32>
    "tpu.trace_stop"() : () -> ()
    %cst_14 = arith.constant dense<0xFF800000> : vector<32xf32>
    %27 = vector.multi_reduction <maximumf>, %26, %cst_14 [1] : vector<32x16xf32> to vector<32xf32>
    %28 = vector.shape_cast %27 : vector<32xf32> to vector<32x1xf32>
    %29 = vector.broadcast %28 : vector<32x1xf32> to vector<32x16xf32>
    %30 = arith.subf %26, %29 : vector<32x16xf32>
    %31 = math.exp %30 : vector<32x16xf32>
    %cst_15 = arith.constant dense<0.000000e+00> : vector<32xf32>
    %32 = vector.multi_reduction <add>, %31, %cst_15 [1] : vector<32x16xf32> to vector<32xf32>
    %33 = vector.shape_cast %32 : vector<32xf32> to vector<32x1xf32>
    %34 = tpu.reciprocal %33 {approx = true} : vector<32x1xf32> -> vector<32x1xf32>
    %cst_16 = arith.constant 0.353553385 : f32
    %35 = vector.broadcast %cst_16 : f32 to vector<32x1xf32>
    %36 = arith.mulf %34, %35 : vector<32x1xf32>
    %37 = vector.broadcast %36 : vector<32x1xf32> to vector<32x16xf32>
    %38 = arith.mulf %31, %37 : vector<32x16xf32>
    %39 = arith.truncf %38 : vector<32x16xf32> to vector<32x16xbf16>
    %40 = arith.truncf %24 : vector<16x32xf32> to vector<16x32xbf16>
    %cst_17 = arith.constant dense<0.000000e+00> : vector<32x32xf32>
    %41 = tpu.matmul %39, %40, %cst_17 {dimension_numbers = #tpu.dot_dimension_numbers<[1], [0], [0], [1], [0, 0, 1, 1], [], []>} : vector<32x16xbf16>, vector<16x32xbf16>, vector<32x32xf32> -> vector<32x32xf32>
    %42 = vector.extract_strided_slice %41 {offsets = [0, 0], sizes = [8, 32], strides = [1, 1]} : vector<32x32xf32> to vector<8x32xf32>
    %43 = vector.extract_strided_slice %3 {offsets = [0, 0], sizes = [32, 32], strides = [1, 1]} : vector<128x32xbf16> to vector<32x32xbf16>
    %44 = arith.truncf %42 : vector<8x32xf32> to vector<8x32xbf16>
    %cst_18 = arith.constant dense<0.000000e+00> : vector<8x32xf32>
    %45 = tpu.matmul %44, %43, %cst_18 {dimension_numbers = #tpu.dot_dimension_numbers<[1], [0], [0], [1], [0, 0, 1, 1], [], []>} : vector<8x32xbf16>, vector<32x32xbf16>, vector<8x32xf32> -> vector<8x32xf32>
    %46 = arith.addf %10, %45 : vector<8x32xf32>
    %47 = vector.extract_strided_slice %41 {offsets = [8, 0], sizes = [8, 32], strides = [1, 1]} : vector<32x32xf32> to vector<8x32xf32>
    %48 = vector.extract_strided_slice %3 {offsets = [32, 0], sizes = [32, 32], strides = [1, 1]} : vector<128x32xbf16> to vector<32x32xbf16>
    %49 = arith.truncf %47 : vector<8x32xf32> to vector<8x32xbf16>
    %cst_19 = arith.constant dense<0.000000e+00> : vector<8x32xf32>
    %50 = tpu.matmul %49, %48, %cst_19 {dimension_numbers = #tpu.dot_dimension_numbers<[1], [0], [0], [1], [0, 0, 1, 1], [], []>} : vector<8x32xbf16>, vector<32x32xbf16>, vector<8x32xf32> -> vector<8x32xf32>
    %51 = arith.addf %46, %50 : vector<8x32xf32>
    %52 = vector.extract_strided_slice %41 {offsets = [16, 0], sizes = [8, 32], strides = [1, 1]} : vector<32x32xf32> to vector<8x32xf32>
    %53 = vector.extract_strided_slice %3 {offsets = [64, 0], sizes = [32, 32], strides = [1, 1]} : vector<128x32xbf16> to vector<32x32xbf16>
    %54 = arith.truncf %52 : vector<8x32xf32> to vector<8x32xbf16>
    %cst_20 = arith.constant dense<0.000000e+00> : vector<8x32xf32>
    %55 = tpu.matmul %54, %53, %cst_20 {dimension_numbers = #tpu.dot_dimension_numbers<[1], [0], [0], [1], [0, 0, 1, 1], [], []>} : vector<8x32xbf16>, vector<32x32xbf16>, vector<8x32xf32> -> vector<8x32xf32>
    %56 = arith.addf %51, %55 : vector<8x32xf32>
    %57 = vector.extract_strided_slice %41 {offsets = [24, 0], sizes = [8, 32], strides = [1, 1]} : vector<32x32xf32> to vector<8x32xf32>
    %58 = vector.extract_strided_slice %3 {offsets = [96, 0], sizes = [32, 32], strides = [1, 1]} : vector<128x32xbf16> to vector<32x32xbf16>
    %59 = arith.truncf %57 : vector<8x32xf32> to vector<8x32xbf16>
    %cst_21 = arith.constant dense<0.000000e+00> : vector<8x32xf32>
    %60 = tpu.matmul %59, %58, %cst_21 {dimension_numbers = #tpu.dot_dimension_numbers<[1], [0], [0], [1], [0, 0, 1, 1], [], []>} : vector<8x32xbf16>, vector<32x32xbf16>, vector<8x32xf32> -> vector<8x32xf32>
    %61 = arith.addf %56, %60 : vector<8x32xf32>
    %62 = vector.extract_strided_slice %20 {offsets = [16, 0], sizes = [16, 32], strides = [1, 1]} : vector<32x32xf32> to vector<16x32xf32>
    %63 = vector.extract_strided_slice %21 {offsets = [16, 0], sizes = [16, 32], strides = [1, 1]} : vector<32x32xf32> to vector<16x32xf32>
    %64 = arith.truncf %62 : vector<16x32xf32> to vector<16x32xbf16>
    "tpu.trace_start"() <{level = 10 : i32, message = "md,nd->mn"}> : () -> ()
    %cst_22 = arith.constant dense<0.000000e+00> : vector<32x16xf32>
    %65 = tpu.matmul %1, %64, %cst_22 {dimension_numbers = #tpu.dot_dimension_numbers<[1], [1], [0], [0], [0, 0, 1, 0], [], []>} : vector<32x32xbf16>, vector<16x32xbf16>, vector<32x16xf32> -> vector<32x16xf32>
    "tpu.trace_stop"() : () -> ()
    %cst_23 = arith.constant dense<0xFF800000> : vector<32xf32>
    %66 = vector.multi_reduction <maximumf>, %65, %cst_23 [1] : vector<32x16xf32> to vector<32xf32>
    %67 = vector.shape_cast %66 : vector<32xf32> to vector<32x1xf32>
    %68 = vector.broadcast %67 : vector<32x1xf32> to vector<32x16xf32>
    %69 = arith.subf %65, %68 : vector<32x16xf32>
    %70 = math.exp %69 : vector<32x16xf32>
    %cst_24 = arith.constant dense<0.000000e+00> : vector<32xf32>
    %71 = vector.multi_reduction <add>, %70, %cst_24 [1] : vector<32x16xf32> to vector<32xf32>
    %72 = vector.shape_cast %71 : vector<32xf32> to vector<32x1xf32>
    %73 = tpu.reciprocal %72 {approx = true} : vector<32x1xf32> -> vector<32x1xf32>
    %cst_25 = arith.constant 0.353553385 : f32
    %74 = vector.broadcast %cst_25 : f32 to vector<32x1xf32>
    %75 = arith.mulf %73, %74 : vector<32x1xf32>
    %76 = vector.broadcast %75 : vector<32x1xf32> to vector<32x16xf32>
    %77 = arith.mulf %70, %76 : vector<32x16xf32>
    %78 = arith.truncf %77 : vector<32x16xf32> to vector<32x16xbf16>
    %79 = arith.truncf %63 : vector<16x32xf32> to vector<16x32xbf16>
    %cst_26 = arith.constant dense<0.000000e+00> : vector<32x32xf32>
    %80 = tpu.matmul %78, %79, %cst_26 {dimension_numbers = #tpu.dot_dimension_numbers<[1], [0], [0], [1], [0, 0, 1, 1], [], []>} : vector<32x16xbf16>, vector<16x32xbf16>, vector<32x32xf32> -> vector<32x32xf32>
    %81 = vector.extract_strided_slice %80 {offsets = [0, 0], sizes = [8, 32], strides = [1, 1]} : vector<32x32xf32> to vector<8x32xf32>
    %82 = vector.extract_strided_slice %3 {offsets = [0, 0], sizes = [32, 32], strides = [1, 1]} : vector<128x32xbf16> to vector<32x32xbf16>
    %83 = arith.truncf %81 : vector<8x32xf32> to vector<8x32xbf16>
    %cst_27 = arith.constant dense<0.000000e+00> : vector<8x32xf32>
    %84 = tpu.matmul %83, %82, %cst_27 {dimension_numbers = #tpu.dot_dimension_numbers<[1], [0], [0], [1], [0, 0, 1, 1], [], []>} : vector<8x32xbf16>, vector<32x32xbf16>, vector<8x32xf32> -> vector<8x32xf32>
    %85 = arith.addf %10, %84 : vector<8x32xf32>
    %86 = vector.extract_strided_slice %80 {offsets = [8, 0], sizes = [8, 32], strides = [1, 1]} : vector<32x32xf32> to vector<8x32xf32>
    %87 = vector.extract_strided_slice %3 {offsets = [32, 0], sizes = [32, 32], strides = [1, 1]} : vector<128x32xbf16> to vector<32x32xbf16>
    %88 = arith.truncf %86 : vector<8x32xf32> to vector<8x32xbf16>
    %cst_28 = arith.constant dense<0.000000e+00> : vector<8x32xf32>
    %89 = tpu.matmul %88, %87, %cst_28 {dimension_numbers = #tpu.dot_dimension_numbers<[1], [0], [0], [1], [0, 0, 1, 1], [], []>} : vector<8x32xbf16>, vector<32x32xbf16>, vector<8x32xf32> -> vector<8x32xf32>
    %90 = arith.addf %85, %89 : vector<8x32xf32>
    %91 = vector.extract_strided_slice %80 {offsets = [16, 0], sizes = [8, 32], strides = [1, 1]} : vector<32x32xf32> to vector<8x32xf32>
    %92 = vector.extract_strided_slice %3 {offsets = [64, 0], sizes = [32, 32], strides = [1, 1]} : vector<128x32xbf16> to vector<32x32xbf16>
    %93 = arith.truncf %91 : vector<8x32xf32> to vector<8x32xbf16>
    %cst_29 = arith.constant dense<0.000000e+00> : vector<8x32xf32>
    %94 = tpu.matmul %93, %92, %cst_29 {dimension_numbers = #tpu.dot_dimension_numbers<[1], [0], [0], [1], [0, 0, 1, 1], [], []>} : vector<8x32xbf16>, vector<32x32xbf16>, vector<8x32xf32> -> vector<8x32xf32>
    %95 = arith.addf %90, %94 : vector<8x32xf32>
    %96 = vector.extract_strided_slice %80 {offsets = [24, 0], sizes = [8, 32], strides = [1, 1]} : vector<32x32xf32> to vector<8x32xf32>
    %97 = vector.extract_strided_slice %3 {offsets = [96, 0], sizes = [32, 32], strides = [1, 1]} : vector<128x32xbf16> to vector<32x32xbf16>
    %98 = arith.truncf %96 : vector<8x32xf32> to vector<8x32xbf16>
    %cst_30 = arith.constant dense<0.000000e+00> : vector<8x32xf32>
    %99 = tpu.matmul %98, %97, %cst_30 {dimension_numbers = #tpu.dot_dimension_numbers<[1], [0], [0], [1], [0, 0, 1, 1], [], []>} : vector<8x32xbf16>, vector<32x32xbf16>, vector<8x32xf32> -> vector<8x32xf32>
    %100 = arith.addf %95, %99 : vector<8x32xf32>
    %101 = tpu.concatenate %61, %100 in 0 : vector<8x32xf32>, vector<8x32xf32> -> vector<16x32xf32>
    %cst_31 = arith.constant dense<0.000000e+00> : vector<16xf32>
    %102 = vector.multi_reduction <add>, %101, %cst_31 [1] : vector<16x32xf32> to vector<16xf32>
    %103 = vector.shape_cast %102 : vector<16xf32> to vector<16x1xf32>
    %cst_32 = arith.constant 3.200000e+01 : f32
    %104 = vector.broadcast %cst_32 : f32 to vector<16x1xf32>
    %105 = arith.divf %103, %104 : vector<16x1xf32>
    %106 = vector.broadcast %105 : vector<16x1xf32> to vector<16x32xf32>
    %107 = arith.subf %101, %106 : vector<16x32xf32>
    %108 = arith.mulf %107, %107 : vector<16x32xf32>
    %cst_33 = arith.constant dense<0.000000e+00> : vector<16xf32>
    %109 = vector.multi_reduction <add>, %108, %cst_33 [1] : vector<16x32xf32> to vector<16xf32>
    %110 = vector.shape_cast %109 : vector<16xf32> to vector<16x1xf32>
    %cst_34 = arith.constant 3.200000e+01 : f32
    %111 = vector.broadcast %cst_34 : f32 to vector<16x1xf32>
    %112 = arith.divf %110, %111 : vector<16x1xf32>
    %113 = vector.broadcast %105 : vector<16x1xf32> to vector<16x32xf32>
    %114 = arith.subf %101, %113 : vector<16x32xf32>
    %cst_35 = arith.constant 9.99999974E-6 : f32
    %115 = vector.broadcast %cst_35 : f32 to vector<16x1xf32>
    %116 = arith.addf %112, %115 : vector<16x1xf32>
    %117 = math.rsqrt %116 : vector<16x1xf32>
    %118 = vector.broadcast %117 : vector<16x1xf32> to vector<16x32xf32>
    %119 = arith.mulf %114, %118 : vector<16x32xf32>
    %120 = vector.broadcast %11 : vector<1x32xf32> to vector<16x32xf32>
    %121 = arith.mulf %119, %120 : vector<16x32xf32>
    %122 = vector.broadcast %12 : vector<1x32xf32> to vector<16x32xf32>
    %123 = arith.addf %121, %122 : vector<16x32xf32>
    %124 = arith.truncf %123 : vector<16x32xf32> to vector<16x32xbf16>
    %cst_36 = arith.constant dense<0.000000e+00> : vector<16x64xf32>
    %125 = tpu.matmul %124, %4, %cst_36 {dimension_numbers = #tpu.dot_dimension_numbers<[1], [0], [0], [1], [0, 0, 1, 1], [], []>} : vector<16x32xbf16>, vector<32x64xbf16>, vector<16x64xf32> -> vector<16x64xf32>
    %126 = vector.broadcast %13 : vector<1x64xf32> to vector<16x64xf32>
    %127 = arith.addf %125, %126 : vector<16x64xf32>
    %128 = vector.extract_strided_slice %127 {offsets = [0, 0], sizes = [16, 32], strides = [1, 1]} : vector<16x64xf32> to vector<16x32xf32>
    %129 = vector.extract_strided_slice %127 {offsets = [0, 32], sizes = [16, 32], strides = [1, 1]} : vector<16x64xf32> to vector<16x32xf32>
    %130 = vector.extract_strided_slice %22 {offsets = [0, 0], sizes = [16, 32], strides = [1, 1]} : vector<32x32xf32> to vector<16x32xf32>
    %131 = vector.extract_strided_slice %128 {offsets = [0, 0], sizes = [8, 32], strides = [1, 1]} : vector<16x32xf32> to vector<8x32xf32>
    %132 = vector.extract_strided_slice %129 {offsets = [0, 0], sizes = [8, 32], strides = [1, 1]} : vector<16x32xf32> to vector<8x32xf32>
    %133 = vector.extract_strided_slice %130 {offsets = [0, 0], sizes = [16, 8], strides = [1, 1]} : vector<16x32xf32> to vector<16x8xf32>
    %134 = vector.extract_strided_slice %131 {offsets = [0, 0], sizes = [8, 8], strides = [1, 1]} : vector<8x32xf32> to vector<8x8xf32>
    "tpu.trace_start"() <{level = 10 : i32, message = "nd,sd->ns"}> : () -> ()
    %cst_37 = arith.constant dense<0.000000e+00> : vector<16x8xf32>
    %135 = tpu.matmul %133, %134, %cst_37 {dimension_numbers = #tpu.dot_dimension_numbers<[1], [1], [0], [0], [0, 0, 1, 0], [], []>} : vector<16x8xf32>, vector<8x8xf32>, vector<16x8xf32> -> vector<16x8xf32>
    "tpu.trace_stop"() : () -> ()
    %136 = vector.extract_strided_slice %130 {offsets = [0, 8], sizes = [16, 8], strides = [1, 1]} : vector<16x32xf32> to vector<16x8xf32>
    %137 = vector.extract_strided_slice %131 {offsets = [0, 8], sizes = [8, 8], strides = [1, 1]} : vector<8x32xf32> to vector<8x8xf32>
    "tpu.trace_start"() <{level = 10 : i32, message = "nd,sd->ns"}> : () -> ()
    %cst_38 = arith.constant dense<0.000000e+00> : vector<16x8xf32>
    %138 = tpu.matmul %136, %137, %cst_38 {dimension_numbers = #tpu.dot_dimension_numbers<[1], [1], [0], [0], [0, 0, 1, 0], [], []>} : vector<16x8xf32>, vector<8x8xf32>, vector<16x8xf32> -> vector<16x8xf32>
    "tpu.trace_stop"() : () -> ()
    %139 = vector.extract_strided_slice %130 {offsets = [0, 16], sizes = [16, 8], strides = [1, 1]} : vector<16x32xf32> to vector<16x8xf32>
    %140 = vector.extract_strided_slice %131 {offsets = [0, 16], sizes = [8, 8], strides = [1, 1]} : vector<8x32xf32> to vector<8x8xf32>
    "tpu.trace_start"() <{level = 10 : i32, message = "nd,sd->ns"}> : () -> ()
    %cst_39 = arith.constant dense<0.000000e+00> : vector<16x8xf32>
    %141 = tpu.matmul %139, %140, %cst_39 {dimension_numbers = #tpu.dot_dimension_numbers<[1], [1], [0], [0], [0, 0, 1, 0], [], []>} : vector<16x8xf32>, vector<8x8xf32>, vector<16x8xf32> -> vector<16x8xf32>
    "tpu.trace_stop"() : () -> ()
    %142 = vector.extract_strided_slice %130 {offsets = [0, 24], sizes = [16, 8], strides = [1, 1]} : vector<16x32xf32> to vector<16x8xf32>
    %143 = vector.extract_strided_slice %131 {offsets = [0, 24], sizes = [8, 8], strides = [1, 1]} : vector<8x32xf32> to vector<8x8xf32>
    "tpu.trace_start"() <{level = 10 : i32, message = "nd,sd->ns"}> : () -> ()
    %cst_40 = arith.constant dense<0.000000e+00> : vector<16x8xf32>
    %144 = tpu.matmul %142, %143, %cst_40 {dimension_numbers = #tpu.dot_dimension_numbers<[1], [1], [0], [0], [0, 0, 1, 0], [], []>} : vector<16x8xf32>, vector<8x8xf32>, vector<16x8xf32> -> vector<16x8xf32>
    "tpu.trace_stop"() : () -> ()
    %145 = tpu.concatenate %135, %138, %141, %144 in 0 : vector<16x8xf32>, vector<16x8xf32>, vector<16x8xf32>, vector<16x8xf32> -> vector<64x8xf32>
    %cst_41 = arith.constant dense<0xFF800000> : vector<64xf32>
    %146 = vector.multi_reduction <maximumf>, %145, %cst_41 [1] : vector<64x8xf32> to vector<64xf32>
    %147 = vector.shape_cast %146 : vector<64xf32> to vector<64x1xf32>
    %148 = vector.broadcast %147 : vector<64x1xf32> to vector<64x8xf32>
    %149 = arith.subf %145, %148 : vector<64x8xf32>
    %150 = math.exp %149 : vector<64x8xf32>
    %cst_42 = arith.constant dense<0.000000e+00> : vector<64xf32>
    %151 = vector.multi_reduction <add>, %150, %cst_42 [1] : vector<64x8xf32> to vector<64xf32>
    %152 = vector.shape_cast %151 : vector<64xf32> to vector<64x1xf32>
    %153 = tpu.reciprocal %152 {approx = true} : vector<64x1xf32> -> vector<64x1xf32>
    %cst_43 = arith.constant 0.353553385 : f32
    %154 = vector.broadcast %cst_43 : f32 to vector<64x1xf32>
    %155 = arith.mulf %153, %154 : vector<64x1xf32>
    %156 = vector.broadcast %155 : vector<64x1xf32> to vector<64x8xf32>
    %157 = arith.mulf %150, %156 : vector<64x8xf32>
    %158 = arith.truncf %157 : vector<64x8xf32> to vector<64x8xbf16>
    %159 = arith.truncf %132 : vector<8x32xf32> to vector<8x32xbf16>
    %cst_44 = arith.constant dense<0.000000e+00> : vector<64x32xf32>
    %160 = tpu.matmul %158, %159, %cst_44 {dimension_numbers = #tpu.dot_dimension_numbers<[1], [0], [0], [1], [0, 0, 1, 1], [], []>} : vector<64x8xbf16>, vector<8x32xbf16>, vector<64x32xf32> -> vector<64x32xf32>
    %161 = vector.extract_strided_slice %160 {offsets = [0, 0], sizes = [16, 32], strides = [1, 1]} : vector<64x32xf32> to vector<16x32xf32>
    %162 = vector.extract_strided_slice %5 {offsets = [0, 0], sizes = [32, 128], strides = [1, 1]} : vector<128x128xbf16> to vector<32x128xbf16>
    %163 = arith.truncf %161 : vector<16x32xf32> to vector<16x32xbf16>
    %cst_45 = arith.constant dense<0.000000e+00> : vector<16x128xf32>
    %164 = tpu.matmul %163, %162, %cst_45 {dimension_numbers = #tpu.dot_dimension_numbers<[1], [0], [0], [1], [0, 0, 1, 1], [], []>} : vector<16x32xbf16>, vector<32x128xbf16>, vector<16x128xf32> -> vector<16x128xf32>
    %165 = arith.addf %16, %164 : vector<16x128xf32>
    %166 = vector.extract_strided_slice %160 {offsets = [16, 0], sizes = [16, 32], strides = [1, 1]} : vector<64x32xf32> to vector<16x32xf32>
    %167 = vector.extract_strided_slice %5 {offsets = [32, 0], sizes = [32, 128], strides = [1, 1]} : vector<128x128xbf16> to vector<32x128xbf16>
    %168 = arith.truncf %166 : vector<16x32xf32> to vector<16x32xbf16>
    %cst_46 = arith.constant dense<0.000000e+00> : vector<16x128xf32>
    %169 = tpu.matmul %168, %167, %cst_46 {dimension_numbers = #tpu.dot_dimension_numbers<[1], [0], [0], [1], [0, 0, 1, 1], [], []>} : vector<16x32xbf16>, vector<32x128xbf16>, vector<16x128xf32> -> vector<16x128xf32>
    %170 = arith.addf %165, %169 : vector<16x128xf32>
    %171 = vector.extract_strided_slice %160 {offsets = [32, 0], sizes = [16, 32], strides = [1, 1]} : vector<64x32xf32> to vector<16x32xf32>
    %172 = vector.extract_strided_slice %5 {offsets = [64, 0], sizes = [32, 128], strides = [1, 1]} : vector<128x128xbf16> to vector<32x128xbf16>
    %173 = arith.truncf %171 : vector<16x32xf32> to vector<16x32xbf16>
    %cst_47 = arith.constant dense<0.000000e+00> : vector<16x128xf32>
    %174 = tpu.matmul %173, %172, %cst_47 {dimension_numbers = #tpu.dot_dimension_numbers<[1], [0], [0], [1], [0, 0, 1, 1], [], []>} : vector<16x32xbf16>, vector<32x128xbf16>, vector<16x128xf32> -> vector<16x128xf32>
    %175 = arith.addf %170, %174 : vector<16x128xf32>
    %176 = vector.extract_strided_slice %160 {offsets = [48, 0], sizes = [16, 32], strides = [1, 1]} : vector<64x32xf32> to vector<16x32xf32>
    %177 = vector.extract_strided_slice %5 {offsets = [96, 0], sizes = [32, 128], strides = [1, 1]} : vector<128x128xbf16> to vector<32x128xbf16>
    %178 = arith.truncf %176 : vector<16x32xf32> to vector<16x32xbf16>
    %cst_48 = arith.constant dense<0.000000e+00> : vector<16x128xf32>
    %179 = tpu.matmul %178, %177, %cst_48 {dimension_numbers = #tpu.dot_dimension_numbers<[1], [0], [0], [1], [0, 0, 1, 1], [], []>} : vector<16x32xbf16>, vector<32x128xbf16>, vector<16x128xf32> -> vector<16x128xf32>
    %180 = arith.addf %175, %179 : vector<16x128xf32>
    %c0_49 = arith.constant 0 : index
    %c0_50 = arith.constant 0 : index
    %181 = vector.load %arg7[%c0_49, %c0_50] : memref<32x128xf32, #tpu.memory_space<vmem>>, vector<16x128xf32>
    tpu.vector_store %arg7[%c0_49, %c0_50], %180 {strides = array<i32>} : memref<32x128xf32, #tpu.memory_space<vmem>>, vector<16x128xf32>,
    %182 = vector.extract_strided_slice %22 {offsets = [16, 0], sizes = [16, 32], strides = [1, 1]} : vector<32x32xf32> to vector<16x32xf32>
    %183 = vector.extract_strided_slice %128 {offsets = [8, 0], sizes = [8, 32], strides = [1, 1]} : vector<16x32xf32> to vector<8x32xf32>
    %184 = vector.extract_strided_slice %129 {offsets = [8, 0], sizes = [8, 32], strides = [1, 1]} : vector<16x32xf32> to vector<8x32xf32>
    %185 = vector.extract_strided_slice %182 {offsets = [0, 0], sizes = [16, 8], strides = [1, 1]} : vector<16x32xf32> to vector<16x8xf32>
    %186 = vector.extract_strided_slice %183 {offsets = [0, 0], sizes = [8, 8], strides = [1, 1]} : vector<8x32xf32> to vector<8x8xf32>
    "tpu.trace_start"() <{level = 10 : i32, message = "nd,sd->ns"}> : () -> ()
    %cst_51 = arith.constant dense<0.000000e+00> : vector<16x8xf32>
    %187 = tpu.matmul %185, %186, %cst_51 {dimension_numbers = #tpu.dot_dimension_numbers<[1], [1], [0], [0], [0, 0, 1, 0], [], []>} : vector<16x8xf32>, vector<8x8xf32>, vector<16x8xf32> -> vector<16x8xf32>
    "tpu.trace_stop"() : () -> ()
    %188 = vector.extract_strided_slice %182 {offsets = [0, 8], sizes = [16, 8], strides = [1, 1]} : vector<16x32xf32> to vector<16x8xf32>
    %189 = vector.extract_strided_slice %183 {offsets = [0, 8], sizes = [8, 8], strides = [1, 1]} : vector<8x32xf32> to vector<8x8xf32>
    "tpu.trace_start"() <{level = 10 : i32, message = "nd,sd->ns"}> : () -> ()
    %cst_52 = arith.constant dense<0.000000e+00> : vector<16x8xf32>
    %190 = tpu.matmul %188, %189, %cst_52 {dimension_numbers = #tpu.dot_dimension_numbers<[1], [1], [0], [0], [0, 0, 1, 0], [], []>} : vector<16x8xf32>, vector<8x8xf32>, vector<16x8xf32> -> vector<16x8xf32>
    "tpu.trace_stop"() : () -> ()
    %191 = vector.extract_strided_slice %182 {offsets = [0, 16], sizes = [16, 8], strides = [1, 1]} : vector<16x32xf32> to vector<16x8xf32>
    %192 = vector.extract_strided_slice %183 {offsets = [0, 16], sizes = [8, 8], strides = [1, 1]} : vector<8x32xf32> to vector<8x8xf32>
    "tpu.trace_start"() <{level = 10 : i32, message = "nd,sd->ns"}> : () -> ()
    %cst_53 = arith.constant dense<0.000000e+00> : vector<16x8xf32>
    %193 = tpu.matmul %191, %192, %cst_53 {dimension_numbers = #tpu.dot_dimension_numbers<[1], [1], [0], [0], [0, 0, 1, 0], [], []>} : vector<16x8xf32>, vector<8x8xf32>, vector<16x8xf32> -> vector<16x8xf32>
    "tpu.trace_stop"() : () -> ()
    %194 = vector.extract_strided_slice %182 {offsets = [0, 24], sizes = [16, 8], strides = [1, 1]} : vector<16x32xf32> to vector<16x8xf32>
    %195 = vector.extract_strided_slice %183 {offsets = [0, 24], sizes = [8, 8], strides = [1, 1]} : vector<8x32xf32> to vector<8x8xf32>
    "tpu.trace_start"() <{level = 10 : i32, message = "nd,sd->ns"}> : () -> ()
    %cst_54 = arith.constant dense<0.000000e+00> : vector<16x8xf32>
    %196 = tpu.matmul %194, %195, %cst_54 {dimension_numbers = #tpu.dot_dimension_numbers<[1], [1], [0], [0], [0, 0, 1, 0], [], []>} : vector<16x8xf32>, vector<8x8xf32>, vector<16x8xf32> -> vector<16x8xf32>
    "tpu.trace_stop"() : () -> ()
    %197 = tpu.concatenate %187, %190, %193, %196 in 0 : vector<16x8xf32>, vector<16x8xf32>, vector<16x8xf32>, vector<16x8xf32> -> vector<64x8xf32>
    %cst_55 = arith.constant dense<0xFF800000> : vector<64xf32>
    %198 = vector.multi_reduction <maximumf>, %197, %cst_55 [1] : vector<64x8xf32> to vector<64xf32>
    %199 = vector.shape_cast %198 : vector<64xf32> to vector<64x1xf32>
    %200 = vector.broadcast %199 : vector<64x1xf32> to vector<64x8xf32>
    %201 = arith.subf %197, %200 : vector<64x8xf32>
    %202 = math.exp %201 : vector<64x8xf32>
    %cst_56 = arith.constant dense<0.000000e+00> : vector<64xf32>
    %203 = vector.multi_reduction <add>, %202, %cst_56 [1] : vector<64x8xf32> to vector<64xf32>
    %204 = vector.shape_cast %203 : vector<64xf32> to vector<64x1xf32>
    %205 = tpu.reciprocal %204 {approx = true} : vector<64x1xf32> -> vector<64x1xf32>
    %cst_57 = arith.constant 0.353553385 : f32
    %206 = vector.broadcast %cst_57 : f32 to vector<64x1xf32>
    %207 = arith.mulf %205, %206 : vector<64x1xf32>
    %208 = vector.broadcast %207 : vector<64x1xf32> to vector<64x8xf32>
    %209 = arith.mulf %202, %208 : vector<64x8xf32>
    %210 = arith.truncf %209 : vector<64x8xf32> to vector<64x8xbf16>
    %211 = arith.truncf %184 : vector<8x32xf32> to vector<8x32xbf16>
    %cst_58 = arith.constant dense<0.000000e+00> : vector<64x32xf32>
    %212 = tpu.matmul %210, %211, %cst_58 {dimension_numbers = #tpu.dot_dimension_numbers<[1], [0], [0], [1], [0, 0, 1, 1], [], []>} : vector<64x8xbf16>, vector<8x32xbf16>, vector<64x32xf32> -> vector<64x32xf32>
    %213 = vector.extract_strided_slice %212 {offsets = [0, 0], sizes = [16, 32], strides = [1, 1]} : vector<64x32xf32> to vector<16x32xf32>
    %214 = vector.extract_strided_slice %5 {offsets = [0, 0], sizes = [32, 128], strides = [1, 1]} : vector<128x128xbf16> to vector<32x128xbf16>
    %215 = arith.truncf %213 : vector<16x32xf32> to vector<16x32xbf16>
    %cst_59 = arith.constant dense<0.000000e+00> : vector<16x128xf32>
    %216 = tpu.matmul %215, %214, %cst_59 {dimension_numbers = #tpu.dot_dimension_numbers<[1], [0], [0], [1], [0, 0, 1, 1], [], []>} : vector<16x32xbf16>, vector<32x128xbf16>, vector<16x128xf32> -> vector<16x128xf32>
    %217 = arith.addf %16, %216 : vector<16x128xf32>
    %218 = vector.extract_strided_slice %212 {offsets = [16, 0], sizes = [16, 32], strides = [1, 1]} : vector<64x32xf32> to vector<16x32xf32>
    %219 = vector.extract_strided_slice %5 {offsets = [32, 0], sizes = [32, 128], strides = [1, 1]} : vector<128x128xbf16> to vector<32x128xbf16>
    %220 = arith.truncf %218 : vector<16x32xf32> to vector<16x32xbf16>
    %cst_60 = arith.constant dense<0.000000e+00> : vector<16x128xf32>
    %221 = tpu.matmul %220, %219, %cst_60 {dimension_numbers = #tpu.dot_dimension_numbers<[1], [0], [0], [1], [0, 0, 1, 1], [], []>} : vector<16x32xbf16>, vector<32x128xbf16>, vector<16x128xf32> -> vector<16x128xf32>
    %222 = arith.addf %217, %221 : vector<16x128xf32>
    %223 = vector.extract_strided_slice %212 {offsets = [32, 0], sizes = [16, 32], strides = [1, 1]} : vector<64x32xf32> to vector<16x32xf32>
    %224 = vector.extract_strided_slice %5 {offsets = [64, 0], sizes = [32, 128], strides = [1, 1]} : vector<128x128xbf16> to vector<32x128xbf16>
    %225 = arith.truncf %223 : vector<16x32xf32> to vector<16x32xbf16>
    %cst_61 = arith.constant dense<0.000000e+00> : vector<16x128xf32>
    %226 = tpu.matmul %225, %224, %cst_61 {dimension_numbers = #tpu.dot_dimension_numbers<[1], [0], [0], [1], [0, 0, 1, 1], [], []>} : vector<16x32xbf16>, vector<32x128xbf16>, vector<16x128xf32> -> vector<16x128xf32>
    %227 = arith.addf %222, %226 : vector<16x128xf32>
    %228 = vector.extract_strided_slice %212 {offsets = [48, 0], sizes = [16, 32], strides = [1, 1]} : vector<64x32xf32> to vector<16x32xf32>
    %229 = vector.extract_strided_slice %5 {offsets = [96, 0], sizes = [32, 128], strides = [1, 1]} : vector<128x128xbf16> to vector<32x128xbf16>
    %230 = arith.truncf %228 : vector<16x32xf32> to vector<16x32xbf16>
    %cst_62 = arith.constant dense<0.000000e+00> : vector<16x128xf32>
    %231 = tpu.matmul %230, %229, %cst_62 {dimension_numbers = #tpu.dot_dimension_numbers<[1], [0], [0], [1], [0, 0, 1, 1], [], []>} : vector<16x32xbf16>, vector<32x128xbf16>, vector<16x128xf32> -> vector<16x128xf32>
    %232 = arith.addf %227, %231 : vector<16x128xf32>
    %c16 = arith.constant 16 : index
    %c0_63 = arith.constant 0 : index
    %233 = vector.load %arg7[%c16, %c0_63] : memref<32x128xf32, #tpu.memory_space<vmem>>, vector<16x128xf32>
    tpu.vector_store %arg7[%c16, %c0_63], %232 {strides = array<i32>} : memref<32x128xf32, #tpu.memory_space<vmem>>, vector<16x128xf32>,
    return
  }
}

</mosaic_0001>

<llo_original>
// kernel: tpu_custom_call.1
$region0: #{tpu_custom_call.1}
  #allocation0 [shape = 'u32[]', space=smem, size = 0x4, offset = 0x4, fixed_abs, tag = 'smem constant byte address 0x4 - core index']
  #allocation1 [shape = 'u32[144,128]{1,0:T(1,128)}', space=vmem, size = 0x12000, scoped, tag = 'internal scratch']
  %s0 = inlined_call_operand.vmem [shape: bf16[32,32], index: 0, kind: input, shape index: {}]
  %s1 = inlined_call_operand.vmem [shape: bf16[32,32], index: 1, kind: input, shape index: {}]
  %s2 = inlined_call_operand.hbm [shape: bf16[32,96], index: 2, kind: input, shape index: {}]
  %s3 = inlined_call_operand.vmem [shape: bf16[128,32], index: 3, kind: input, shape index: {}]
  %s4 = inlined_call_operand.hbm [shape: bf16[32,64], index: 4, kind: input, shape index: {}]
  %s5 = inlined_call_operand.vmem [shape: bf16[128,128], index: 5, kind: input, shape index: {}]
  %s6 = inlined_call_operand.hbm [shape: f32[8,128], index: 6, kind: input, shape index: {}]
  %s7 = inlined_call_operand.hbm [shape: f32[32,128], index: 7, kind: output, shape index: {}]
  %s8 = sld [smem:[#allocation0]]
  $region50: #{tpu_custom_call.1} parent=0
    _
  %s10 = ssub.s32 1, %s8
  %s11 = scalar_select 0, %s10, %s8
  $region1: #{tpu_custom_call.1} parent=0
    #allocation2 [shape = 'u8[8192]{0}', space=vmem, size = 0x2000, scoped, tag = 'input window, operand 2, single buffered']
    #allocation3 [shape = 's32[1]{0}', space=sflag, size = 0x4, scoped, tag = 'scoped memory for tpu_custom_call.1']
    #allocation4 [shape = 's32[1]{0}', space=sflag, size = 0x4, scoped, tag = 'scoped memory for tpu_custom_call.1']
    #allocation5 [shape = 'u8[8192]{0}', space=vmem, size = 0x2000, scoped, tag = 'input window, operand 4, single buffered']
    #allocation6 [shape = 's32[1]{0}', space=sflag, size = 0x4, scoped, tag = 'scoped memory for tpu_custom_call.1']
    #allocation7 [shape = 'u8[4096]{0}', space=vmem, size = 0x1000, scoped, tag = 'input window, operand 6, single buffered']
    #allocation8 [shape = 'u8[16384]{0}', space=vmem, size = 0x4000, scoped, tag = 'output window, operand 0, single buffered']
    %12 = vsyncpa [#allocation3], 0
    %13 = vsyncpa [#allocation6], 0
    %14 = vsyncpa [#allocation4], 0
    // Predicated region
    $region2: #{tpu_custom_call.1} parent=1 // pred_check
      _
    $region3: #{tpu_custom_call.1} parent=1 // pred_check_branch
      %16 = sbr.rel (0) target = $region5
    $region4: #{tpu_custom_call.1} parent=1 // pred_region
      _
    $region5: #{tpu_custom_call.1} parent=1 // pred_fallthru
      _
    // Predicated region
    $region6: #{tpu_custom_call.1} parent=1 // pred_check
      _
    $region7: #{tpu_custom_call.1} parent=1 // pred_check_branch
      %18 = sbr.rel (0) target = $region9
    $region8: #{tpu_custom_call.1} parent=1 // pred_region
      _
    $region9: #{tpu_custom_call.1} parent=1 // pred_fallthru
      _
    // Predicated region
    $region10: #{tpu_custom_call.1} parent=1 // pred_check
      _
    $region11: #{tpu_custom_call.1} parent=1 // pred_check_branch
      %20 = sbr.rel (0) target = $region13
    $region12: #{tpu_custom_call.1} parent=1 // pred_region
      %s22 = ssub.s32 256, 256
      %23 = vsyncadd [#allocation3], %s22
      %s24 = sshll.u32 [#allocation2], 4
      %s25 = int_to_ptr.vmem [resolvable:$true] %s24
      %30 = dma.hbm_to_vmem [thread:$0]  %s2, 256, %s25, [#allocation3], 64, 64, 4
    $region13: #{tpu_custom_call.1} parent=1 // pred_fallthru
      _
    // Predicated region
    $region14: #{tpu_custom_call.1} parent=1 // pred_check
      _
    $region15: #{tpu_custom_call.1} parent=1 // pred_check_branch
      %32 = sbr.rel (0) target = $region17
    $region16: #{tpu_custom_call.1} parent=1 // pred_region
      _
    $region17: #{tpu_custom_call.1} parent=1 // pred_fallthru
      _
    // Predicated region
    $region18: #{tpu_custom_call.1} parent=1 // pred_check
      _
    $region19: #{tpu_custom_call.1} parent=1 // pred_check_branch
      %34 = sbr.rel (0) target = $region21
    $region20: #{tpu_custom_call.1} parent=1 // pred_region
      %s36 = ssub.s32 256, 256
      %37 = vsyncadd [#allocation6], %s36
      %s38 = sshll.u32 [#allocation5], 4
      %s39 = int_to_ptr.vmem [resolvable:$true] %s38
      %44 = dma.hbm_to_vmem [thread:$0]  %s4, 256, %s39, [#allocation6], 64, 64, 4
    $region21: #{tpu_custom_call.1} parent=1 // pred_fallthru
      _
    // Predicated region
    $region22: #{tpu_custom_call.1} parent=1 // pred_check
      _
    $region23: #{tpu_custom_call.1} parent=1 // pred_check_branch
      %46 = sbr.rel (0) target = $region25
    $region24: #{tpu_custom_call.1} parent=1 // pred_region
      _
    $region25: #{tpu_custom_call.1} parent=1 // pred_fallthru
      _
    // Predicated region
    $region26: #{tpu_custom_call.1} parent=1 // pred_check
      _
    $region27: #{tpu_custom_call.1} parent=1 // pred_check_branch
      %48 = sbr.rel (0) target = $region29
    $region28: #{tpu_custom_call.1} parent=1 // pred_region
      %s50 = ssub.s32 128, 128
      %51 = vsyncadd [#allocation6], %s50
      %s53 = sshll.u32 [#allocation7], 4
      %s54 = int_to_ptr.vmem [resolvable:$true] %s53
      %56 = dma.hbm_to_vmem [thread:$0]  %s6, 128, %s54, [#allocation6]
    $region29: #{tpu_custom_call.1} parent=1 // pred_fallthru
      _
    // Predicated region
    $region30: #{tpu_custom_call.1} parent=1 // pred_check
      _
    $region31: #{tpu_custom_call.1} parent=1 // pred_check_branch
      %58 = sbr.rel (0) target = $region33
    $region32: #{tpu_custom_call.1} parent=1 // pred_region
      %59 = dma.done [#allocation3], 256
    $region33: #{tpu_custom_call.1} parent=1 // pred_fallthru
      _
    // Predicated region
    $region34: #{tpu_custom_call.1} parent=1 // pred_check
      _
    $region35: #{tpu_custom_call.1} parent=1 // pred_check_branch
      %61 = sbr.rel (0) target = $region37
    $region36: #{tpu_custom_call.1} parent=1 // pred_region
      %62 = dma.done [#allocation6], 256
    $region37: #{tpu_custom_call.1} parent=1 // pred_fallthru
      _
    // Predicated region
    $region38: #{tpu_custom_call.1} parent=1 // pred_check
      _
    $region39: #{tpu_custom_call.1} parent=1 // pred_check_branch
      %64 = sbr.rel (0) target = $region41
    $region40: #{tpu_custom_call.1} parent=1 // pred_region
      %65 = dma.done [#allocation6], 128
    $region41: #{tpu_custom_call.1} parent=1 // pred_fallthru
      _
    %v67 = vld [vmem:[%s0] sm:$0xf]
    %v68 = vld [vmem:[%s0 + $0x4] sm:$0xf]
    %v69 = vld [vmem:[%s0 + $0x8] sm:$0xf]
    %v70 = vld [vmem:[%s0 + $0xc] sm:$0xf]
    %v71 = vld [vmem:[%s1] sm:$0xf]
    %v72 = vld [vmem:[%s1 + $0x4] sm:$0xf]
    %v73 = vld [vmem:[%s1 + $0x8] sm:$0xf]
    %v74 = vld [vmem:[%s1 + $0xc] sm:$0xf]
    %v75 = vld [vmem:[#allocation2] sm:$0xf]
    %v76 = vld [vmem:[#allocation2 + $0x4] sm:$0xf]
    %v77 = vld [vmem:[#allocation2 + $0x8] sm:$0xf]
    %v78 = vld [vmem:[#allocation2 + $0xc] sm:$0xf]
    %v79 = vld [vmem:[%s3] sm:$0xf]
    %v80 = vld [vmem:[%s3 + $0x4] sm:$0xf]
    %v81 = vld [vmem:[%s3 + $0x8] sm:$0xf]
    %v82 = vld [vmem:[%s3 + $0xc] sm:$0xf]
    %v83 = vld [vmem:[%s3 + $0x10] sm:$0xf]
    %v84 = vld [vmem:[%s3 + $0x14] sm:$0xf]
    %v85 = vld [vmem:[%s3 + $0x18] sm:$0xf]
    %v86 = vld [vmem:[%s3 + $0x1c] sm:$0xf]
    %v87 = vld [vmem:[%s3 + $0x20] sm:$0xf]
    %v88 = vld [vmem:[%s3 + $0x24] sm:$0xf]
    %v89 = vld [vmem:[%s3 + $0x28] sm:$0xf]
    %v90 = vld [vmem:[%s3 + $0x2c] sm:$0xf]
    %v91 = vld [vmem:[%s3 + $0x30] sm:$0xf]
    %v92 = vld [vmem:[%s3 + $0x34] sm:$0xf]
    %v93 = vld [vmem:[%s3 + $0x38] sm:$0xf]
    %v94 = vld [vmem:[%s3 + $0x3c] sm:$0xf]
    %v95 = vld [vmem:[#allocation5] sm:$0xf]
    %v96 = vld [vmem:[#allocation5 + $0x4] sm:$0xf]
    %v97 = vld [vmem:[#allocation5 + $0x8] sm:$0xf]
    %v98 = vld [vmem:[#allocation5 + $0xc] sm:$0xf]
    %v99 = vld [vmem:[%s5] sm:$0xf]
    %v100 = vld [vmem:[%s5 + $0x4] sm:$0xf]
    %v101 = vld [vmem:[%s5 + $0x8] sm:$0xf]
    %v102 = vld [vmem:[%s5 + $0xc] sm:$0xf]
    %v103 = vld [vmem:[%s5 + $0x10] sm:$0xf]
    %v104 = vld [vmem:[%s5 + $0x14] sm:$0xf]
    %v105 = vld [vmem:[%s5 + $0x18] sm:$0xf]
    %v106 = vld [vmem:[%s5 + $0x1c] sm:$0xf]
    %v107 = vld [vmem:[%s5 + $0x20] sm:$0xf]
    %v108 = vld [vmem:[%s5 + $0x24] sm:$0xf]
    %v109 = vld [vmem:[%s5 + $0x28] sm:$0xf]
    %v110 = vld [vmem:[%s5 + $0x2c] sm:$0xf]
    %v111 = vld [vmem:[%s5 + $0x30] sm:$0xf]
    %v112 = vld [vmem:[%s5 + $0x34] sm:$0xf]
    %v113 = vld [vmem:[%s5 + $0x38] sm:$0xf]
    %v114 = vld [vmem:[%s5 + $0x3c] sm:$0xf]
    %v115 = vld [vmem:[#allocation7] sm:$0xff]
    %v116 = vlaneseq
    %v117 = vshrl.u32 %v116, 7
    %v118 = vsub.s32 1, %v117
    %v119 = vrot.slane %v115, %v118
    %v120 = vlaneseq
    %v121 = vshrl.u32 %v120, 7
    %v122 = vsub.s32 5, %v121
    %v123 = vrot.slane %v115, %v122
    %v124 = vlaneseq
    %v125 = vshrl.u32 %v124, 7
    %v126 = vsub.s32 0, %v125
    %v127 = vrot.slane %v115, %v126
    %v132 = vunpack.c.l.b16 %v67
    %v133 = vunpack.c.l.b16 %v68
    %v134 = vunpack.c.l.b16 %v69
    %v135 = vunpack.c.l.b16 %v70
    %v136 = vpack.c.b16 %v133, %v132
    %v137 = vpack.c.b16 %v135, %v134
    %v142 = vunpack.c.l.b16 %v75
    %v143 = vunpack.c.l.b16 %v76
    %v144 = vunpack.c.l.b16 %v77
    %v145 = vunpack.c.l.b16 %v78
    %v146 = vpack.c.b16 %v143, %v142
    %v147 = vpack.c.b16 %v145, %v144
    %vm150 = vcmask 261120
    %v152 = vsel %vm150, %v136, 0
    %v155 = vsel %vm150, %v137, 0
    %157 = vmatprep.subr.bf16.mxu0 0
    %158 = vmatpush1.bf16.msra.mxu0 %v146
    %159 = vmatprep.subr.bf16.mxu0 0
    %160 = vmatpush1.bf16.msra.mxu0 %v147
    %161 = vmatprep.subr.bf16.mxu0 0
    %162 = vmatpush1.bf16.msra.mxu0 0
    %163 = vmatprep.subr.bf16.mxu0 0
    %164 = vmatpush1.bf16.msra.mxu0 0
    %165 = vmatprep.subr.bf16.mxu0 0
    %166 = vmatpush1.bf16.msra.mxu0 0
    %167 = vmatprep.subr.bf16.mxu0 0
    %168 = vmatpush1.bf16.msra.mxu0 0
    %169 = vmatprep.subr.bf16.mxu0 0
    %170 = vmatpush1.bf16.msra.mxu0 0
    %171 = vmatprep.subr.bf16.mxu0 0
    %172 = vmatpush1.bf16.msra.mxu0 0
    %173 = vmatprep.subr.bf16.mxu0 0
    %174 = vmatpush1.bf16.msra.mxu0 0
    %175 = vmatprep.subr.bf16.mxu0 0
    %176 = vmatpush1.bf16.msra.mxu0 0
    %177 = vmatprep.subr.bf16.mxu0 0
    %178 = vmatpush1.bf16.msra.mxu0 0
    %179 = vmatprep.subr.bf16.mxu0 0
    %180 = vmatpush1.bf16.msra.mxu0 0
    %181 = vmatprep.subr.bf16.mxu0 0
    %182 = vmatpush1.bf16.msra.mxu0 0
    %183 = vmatprep.subr.bf16.mxu0 0
    %184 = vmatpush1.bf16.msra.mxu0 0
    %185 = vmatprep.subr.bf16.mxu0 0
    %186 = vmatpush1.bf16.msra.mxu0 0
    %187 = vmatprep.subr.bf16.mxu0 0
    %188 = vmatpush1.bf16.msra.mxu0 0
    %189 = vmatprep.mubr.bf16.mxu0 0
    %190 = vmatmul.mubr.bf16.gmra.mrb[0].mxu0 %v152
    %v191 = vpop.f32.mrb[0].mxu0
    %v192 = vadd.f32 %v127, %v191
    %v193 = vpop.f32.mrb[0].mxu0
    %v194 = vpop.f32.mrb[0].mxu0
    %v195 = vadd.f32 %v127, %v194
    %v196 = vpop.f32.mrb[0].mxu0
    %197 = vmatprep.mubr.bf16.mxu0 0
    %198 = vmatmul.mubr.bf16.gmra.mrb[0].mxu0 %v155
    %v199 = vpop.f32.mrb[0].mxu0
    %v200 = vadd.f32 %v127, %v199
    %v201 = vpop.f32.mrb[0].mxu0
    %v202 = vpop.f32.mrb[0].mxu0
    %v203 = vadd.f32 %v127, %v202
    %v204 = vpop.f32.mrb[0].mxu0
    %205 = vdwg.mxu0
    %v206 = vpack.c.bf16 %v195, %v192
    %v211 = vunpack.c.l.b16 %v71
    %v212 = vunpack.c.l.b16 %v72
    %v213 = vunpack.c.l.b16 %v73
    %v214 = vunpack.c.l.b16 %v74
    %v215 = vpack.c.b16 %v212, %v211
    %v216 = vpack.c.b16 %v214, %v213
    %v218 = vsel %vm150, %v215, 0
    %v221 = vsel %vm150, %v216, 0
    %v224 = vsel %vm150, %v206, 0
    %226 = vmatprep.subr.bf16.mxu0 0
    %227 = vmatpush1.bf16.xpose.msra.mxu0 %v224
    %228 = vmatprep.subr.bf16.mxu0 0
    %229 = vmatpush1.bf16.xpose.msra.mxu0 0
    %230 = vmatprep.subr.bf16.mxu0 0
    %231 = vmatpush1.bf16.xpose.msra.mxu0 0
    %232 = vmatprep.subr.bf16.mxu0 0
    %233 = vmatpush1.bf16.xpose.msra.mxu0 0
    %234 = vmatprep.subr.bf16.mxu0 0
    %235 = vmatpush1.bf16.xpose.msra.mxu0 0
    %236 = vmatprep.subr.bf16.mxu0 0
    %237 = vmatpush1.bf16.xpose.msra.mxu0 0
    %238 = vmatprep.subr.bf16.mxu0 0
    %239 = vmatpush1.bf16.xpose.msra.mxu0 0
    %240 = vmatprep.subr.bf16.mxu0 0
    %241 = vmatpush1.bf16.xpose.msra.mxu0 0
    %242 = vmatprep.subr.bf16.mxu0 0
    %243 = vmatpush1.bf16.xpose.msra.mxu0 0
    %244 = vmatprep.subr.bf16.mxu0 0
    %245 = vmatpush1.bf16.xpose.msra.mxu0 0
    %246 = vmatprep.subr.bf16.mxu0 0
    %247 = vmatpush1.bf16.xpose.msra.mxu0 0
    %248 = vmatprep.subr.bf16.mxu0 0
    %249 = vmatpush1.bf16.xpose.msra.mxu0 0
    %250 = vmatprep.subr.bf16.mxu0 0
    %251 = vmatpush1.bf16.xpose.msra.mxu0 0
    %252 = vmatprep.subr.bf16.mxu0 0
    %253 = vmatpush1.bf16.xpose.msra.mxu0 0
    %254 = vmatprep.subr.bf16.mxu0 0
    %255 = vmatpush1.bf16.xpose.msra.mxu0 0
    %256 = vmatprep.subr.bf16.mxu0 0
    %257 = vmatpush1.bf16.xpose.msra.mxu0 0
    %258 = vmatprep.mubr.bf16.mxu0 0
    %259 = vmatmul.mubr.bf16.gmra.mrb[0].mxu0 %v218
    %v260 = vpop.f32.mrb[0].mxu0
    %v261 = vadd.f32 0.0, %v260
    %v262 = vpop.f32.mrb[0].mxu0
    %v263 = vpop.f32.mrb[0].mxu0
    %v264 = vadd.f32 0.0, %v263
    %v265 = vpop.f32.mrb[0].mxu0
    %266 = vmatprep.mubr.bf16.mxu0 0
    %267 = vmatmul.mubr.bf16.gmra.mrb[0].mxu0 %v221
    %v268 = vpop.f32.mrb[0].mxu0
    %v269 = vadd.f32 0.0, %v268
    %v270 = vpop.f32.mrb[0].mxu0
    %v271 = vpop.f32.mrb[0].mxu0
    %v272 = vadd.f32 0.0, %v271
    %v273 = vpop.f32.mrb[0].mxu0
    %274 = vdwg.mxu0
    %vm275 = vcmask 130048
    %v276 = vsel %vm275, %v261, -inf
    %277 = vmax.xlane.f32.xlu0 %v276
    %v278 = vpop.xlane.xlu0 %277
    %v279 = vsel %vm275, %v264, -inf
    %280 = vmax.xlane.f32.xlu0 %v279
    %v281 = vpop.xlane.xlu0 %280
    %v282 = vsel %vm275, %v269, -inf
    %283 = vmax.xlane.f32.xlu0 %v282
    %v284 = vpop.xlane.xlu0 %283
    %v285 = vsel %vm275, %v272, -inf
    %286 = vmax.xlane.f32.xlu0 %v285
    %v287 = vpop.xlane.xlu0 %286
    %v288 = vsub.f32 %v261, %v278
    %v289 = vsub.f32 %v264, %v281
    %v290 = vsub.f32 %v269, %v284
    %v291 = vsub.f32 %v272, %v287
    %v292 = vmul.f32 %v288, 1.442695
    %v293 = vpow.pop %v292
    %v294 = vmul.f32 %v289, 1.442695
    %v295 = vpow.pop %v294
    %v296 = vmul.f32 %v290, 1.442695
    %v297 = vpow.pop %v296
    %v298 = vmul.f32 %v291, 1.442695
    %v299 = vpow.pop %v298
    %v300 = vsel %vm275, %v293, 0.0
    %301 = vadd.xlane.f32.xlu0 %v300
    %v302 = vpop.xlane.xlu0 %301
    %v303 = vsel %vm275, %v295, 0.0
    %304 = vadd.xlane.f32.xlu0 %v303
    %v305 = vpop.xlane.xlu0 %304
    %v306 = vsel %vm275, %v297, 0.0
    %307 = vadd.xlane.f32.xlu0 %v306
    %v308 = vpop.xlane.xlu0 %307
    %v309 = vsel %vm275, %v299, 0.0
    %310 = vadd.xlane.f32.xlu0 %v309
    %v311 = vpop.xlane.xlu0 %310
    %v312 = vrcp.pop %v302
    %v313 = vrcp.pop %v305
    %v314 = vrcp.pop %v308
    %v315 = vrcp.pop %v311
    %v316 = vmul.f32 %v312, 0.35355338
    %v317 = vmul.f32 %v313, 0.35355338
    %v318 = vmul.f32 %v314, 0.35355338
    %v319 = vmul.f32 %v315, 0.35355338
    %v320 = vmul.f32 %v293, %v316
    %v321 = vmul.f32 %v295, %v317
    %v322 = vmul.f32 %v297, %v318
    %v323 = vmul.f32 %v299, %v319
    %v324 = vpack.c.bf16 %v321, %v320
    %v325 = vpack.c.bf16 %v323, %v322
    %327 = vrot.lane.b32.xlu0 %v206, 96
    %v328 = vpop.permute.xlu0 %327
    %v331 = vsel %vm275, %v324, 0
    %v334 = vsel %vm275, %v325, 0
    %336 = vmatprep.subr.bf16.mxu0 0
    %337 = vmatpush1.bf16.msra.mxu0 %v328
    %338 = vmatprep.subr.bf16.mxu0 0
    %339 = vmatpush1.bf16.msra.mxu0 0
    %340 = vmatprep.subr.bf16.mxu0 0
    %341 = vmatpush1.bf16.msra.mxu0 0
    %342 = vmatprep.subr.bf16.mxu0 0
    %343 = vmatpush1.bf16.msra.mxu0 0
    %344 = vmatprep.subr.bf16.mxu0 0
    %345 = vmatpush1.bf16.msra.mxu0 0
    %346 = vmatprep.subr.bf16.mxu0 0
    %347 = vmatpush1.bf16.msra.mxu0 0
    %348 = vmatprep.subr.bf16.mxu0 0
    %349 = vmatpush1.bf16.msra.mxu0 0
    %350 = vmatprep.subr.bf16.mxu0 0
    %351 = vmatpush1.bf16.msra.mxu0 0
    %352 = vmatprep.subr.bf16.mxu0 0
    %353 = vmatpush1.bf16.msra.mxu0 0
    %354 = vmatprep.subr.bf16.mxu0 0
    %355 = vmatpush1.bf16.msra.mxu0 0
    %356 = vmatprep.subr.bf16.mxu0 0
    %357 = vmatpush1.bf16.msra.mxu0 0
    %358 = vmatprep.subr.bf16.mxu0 0
    %359 = vmatpush1.bf16.msra.mxu0 0
    %360 = vmatprep.subr.bf16.mxu0 0
    %361 = vmatpush1.bf16.msra.mxu0 0
    %362 = vmatprep.subr.bf16.mxu0 0
    %363 = vmatpush1.bf16.msra.mxu0 0
    %364 = vmatprep.subr.bf16.mxu0 0
    %365 = vmatpush1.bf16.msra.mxu0 0
    %366 = vmatprep.subr.bf16.mxu0 0
    %367 = vmatpush1.bf16.msra.mxu0 0
    %368 = vmatprep.mubr.bf16.mxu0 0
    %369 = vmatmul.mubr.bf16.gmra.mrb[0].mxu0 %v331
    %v370 = vpop.f32.mrb[0].mxu0
    %v371 = vadd.f32 0.0, %v370
    %v372 = vpop.f32.mrb[0].mxu0
    %v373 = vpop.f32.mrb[0].mxu0
    %v374 = vadd.f32 0.0, %v373
    %v375 = vpop.f32.mrb[0].mxu0
    %376 = vmatprep.mubr.bf16.mxu0 0
    %377 = vmatmul.mubr.bf16.gmra.mrb[0].mxu0 %v334
    %v378 = vpop.f32.mrb[0].mxu0
    %v379 = vadd.f32 0.0, %v378
    %v380 = vpop.f32.mrb[0].mxu0
    %v381 = vpop.f32.mrb[0].mxu0
    %v382 = vadd.f32 0.0, %v381
    %v383 = vpop.f32.mrb[0].mxu0
    %384 = vdwg.mxu0
    %v385 = vpack.c.bf16 %v371, %v371
    %v390 = vunpack.c.l.b16 %v79
    %v391 = vunpack.c.l.b16 %v80
    %v392 = vunpack.c.l.b16 %v81
    %v393 = vunpack.c.l.b16 %v82
    %v394 = vpack.c.b16 %v391, %v390
    %v395 = vpack.c.b16 %v393, %v392
    %v399 = vsel %vm150, %v385, 0
    %401 = vmatprep.subr.bf16.mxu0 0
    %402 = vmatpush1.bf16.msra.mxu0 %v394
    %403 = vmatprep.subr.bf16.mxu0 0
    %404 = vmatpush1.bf16.msra.mxu0 %v395
    %405 = vmatprep.subr.bf16.mxu0 0
    %406 = vmatpush1.bf16.msra.mxu0 0
    %407 = vmatprep.subr.bf16.mxu0 0
    %408 = vmatpush1.bf16.msra.mxu0 0
    %409 = vmatprep.subr.bf16.mxu0 0
    %410 = vmatpush1.bf16.msra.mxu0 0
    %411 = vmatprep.subr.bf16.mxu0 0
    %412 = vmatpush1.bf16.msra.mxu0 0
    %413 = vmatprep.subr.bf16.mxu0 0
    %414 = vmatpush1.bf16.msra.mxu0 0
    %415 = vmatprep.subr.bf16.mxu0 0
    %416 = vmatpush1.bf16.msra.mxu0 0
    %417 = vmatprep.subr.bf16.mxu0 0
    %418 = vmatpush1.bf16.msra.mxu0 0
    %419 = vmatprep.subr.bf16.mxu0 0
    %420 = vmatpush1.bf16.msra.mxu0 0
    %421 = vmatprep.subr.bf16.mxu0 0
    %422 = vmatpush1.bf16.msra.mxu0 0
    %423 = vmatprep.subr.bf16.mxu0 0
    %424 = vmatpush1.bf16.msra.mxu0 0
    %425 = vmatprep.subr.bf16.mxu0 0
    %426 = vmatpush1.bf16.msra.mxu0 0
    %427 = vmatprep.subr.bf16.mxu0 0
    %428 = vmatpush1.bf16.msra.mxu0 0
    %429 = vmatprep.subr.bf16.mxu0 0
    %430 = vmatpush1.bf16.msra.mxu0 0
    %431 = vmatprep.subr.bf16.mxu0 0
    %432 = vmatpush1.bf16.msra.mxu0 0
    %433 = vmatprep.mubr.bf16.mxu0 0
    %434 = vmatmul.mubr.bf16.gmra.mrb[0].mxu0 %v399
    %v435 = vpop.f32.mrb[0].mxu0
    %v436 = vadd.f32 0.0, %v435
    %v437 = vpop.f32.mrb[0].mxu0
    %v438 = vpop.f32.mrb[0].mxu0
    %v439 = vpop.f32.mrb[0].mxu0
    %440 = vdwg.mxu0
    %v441 = vadd.f32 %v119, %v436
    %v442 = vpack.c.bf16 %v374, %v374
    %v447 = vunpack.c.l.b16 %v83
    %v448 = vunpack.c.l.b16 %v84
    %v449 = vunpack.c.l.b16 %v85
    %v450 = vunpack.c.l.b16 %v86
    %v451 = vpack.c.b16 %v448, %v447
    %v452 = vpack.c.b16 %v450, %v449
    %v456 = vsel %vm150, %v442, 0
    %458 = vmatprep.subr.bf16.mxu0 0
    %459 = vmatpush1.bf16.msra.mxu0 %v451
    %460 = vmatprep.subr.bf16.mxu0 0
    %461 = vmatpush1.bf16.msra.mxu0 %v452
    %462 = vmatprep.subr.bf16.mxu0 0
    %463 = vmatpush1.bf16.msra.mxu0 0
    %464 = vmatprep.subr.bf16.mxu0 0
    %465 = vmatpush1.bf16.msra.mxu0 0
    %466 = vmatprep.subr.bf16.mxu0 0
    %467 = vmatpush1.bf16.msra.mxu0 0
    %468 = vmatprep.subr.bf16.mxu0 0
    %469 = vmatpush1.bf16.msra.mxu0 0
    %470 = vmatprep.subr.bf16.mxu0 0
    %471 = vmatpush1.bf16.msra.mxu0 0
    %472 = vmatprep.subr.bf16.mxu0 0
    %473 = vmatpush1.bf16.msra.mxu0 0
    %474 = vmatprep.subr.bf16.mxu0 0
    %475 = vmatpush1.bf16.msra.mxu0 0
    %476 = vmatprep.subr.bf16.mxu0 0
    %477 = vmatpush1.bf16.msra.mxu0 0
    %478 = vmatprep.subr.bf16.mxu0 0
    %479 = vmatpush1.bf16.msra.mxu0 0
    %480 = vmatprep.subr.bf16.mxu0 0
    %481 = vmatpush1.bf16.msra.mxu0 0
    %482 = vmatprep.subr.bf16.mxu0 0
    %483 = vmatpush1.bf16.msra.mxu0 0
    %484 = vmatprep.subr.bf16.mxu0 0
    %485 = vmatpush1.bf16.msra.mxu0 0
    %486 = vmatprep.subr.bf16.mxu0 0
    %487 = vmatpush1.bf16.msra.mxu0 0
    %488 = vmatprep.subr.bf16.mxu0 0
    %489 = vmatpush1.bf16.msra.mxu0 0
    %490 = vmatprep.mubr.bf16.mxu0 0
    %491 = vmatmul.mubr.bf16.gmra.mrb[0].mxu0 %v456
    %v492 = vpop.f32.mrb[0].mxu0
    %v493 = vadd.f32 0.0, %v492
    %v494 = vpop.f32.mrb[0].mxu0
    %v495 = vpop.f32.mrb[0].mxu0
    %v496 = vpop.f32.mrb[0].mxu0
    %497 = vdwg.mxu0
    %v498 = vadd.f32 %v441, %v493
    %v499 = vpack.c.bf16 %v379, %v379
    %v504 = vunpack.c.l.b16 %v87
    %v505 = vunpack.c.l.b16 %v88
    %v506 = vunpack.c.l.b16 %v89
    %v507 = vunpack.c.l.b16 %v90
    %v508 = vpack.c.b16 %v505, %v504
    %v509 = vpack.c.b16 %v507, %v506
    %v513 = vsel %vm150, %v499, 0
    %515 = vmatprep.subr.bf16.mxu0 0
    %516 = vmatpush1.bf16.msra.mxu0 %v508
    %517 = vmatprep.subr.bf16.mxu0 0
    %518 = vmatpush1.bf16.msra.mxu0 %v509
    %519 = vmatprep.subr.bf16.mxu0 0
    %520 = vmatpush1.bf16.msra.mxu0 0
    %521 = vmatprep.subr.bf16.mxu0 0
    %522 = vmatpush1.bf16.msra.mxu0 0
    %523 = vmatprep.subr.bf16.mxu0 0
    %524 = vmatpush1.bf16.msra.mxu0 0
    %525 = vmatprep.subr.bf16.mxu0 0
    %526 = vmatpush1.bf16.msra.mxu0 0
    %527 = vmatprep.subr.bf16.mxu0 0
    %528 = vmatpush1.bf16.msra.mxu0 0
    %529 = vmatprep.subr.bf16.mxu0 0
    %530 = vmatpush1.bf16.msra.mxu0 0
    %531 = vmatprep.subr.bf16.mxu0 0
    %532 = vmatpush1.bf16.msra.mxu0 0
    %533 = vmatprep.subr.bf16.mxu0 0
    %534 = vmatpush1.bf16.msra.mxu0 0
    %535 = vmatprep.subr.bf16.mxu0 0
    %536 = vmatpush1.bf16.msra.mxu0 0
    %537 = vmatprep.subr.bf16.mxu0 0
    %538 = vmatpush1.bf16.msra.mxu0 0
    %539 = vmatprep.subr.bf16.mxu0 0
    %540 = vmatpush1.bf16.msra.mxu0 0
    %541 = vmatprep.subr.bf16.mxu0 0
    %542 = vmatpush1.bf16.msra.mxu0 0
    %543 = vmatprep.subr.bf16.mxu0 0
    %544 = vmatpush1.bf16.msra.mxu0 0
    %545 = vmatprep.subr.bf16.mxu0 0
    %546 = vmatpush1.bf16.msra.mxu0 0
    %547 = vmatprep.mubr.bf16.mxu0 0
    %548 = vmatmul.mubr.bf16.gmra.mrb[0].mxu0 %v513
    %v549 = vpop.f32.mrb[0].mxu0
    %v550 = vadd.f32 0.0, %v549
    %v551 = vpop.f32.mrb[0].mxu0
    %v552 = vpop.f32.mrb[0].mxu0
    %v553 = vpop.f32.mrb[0].mxu0
    %554 = vdwg.mxu0
    %v555 = vadd.f32 %v498, %v550
    %v556 = vpack.c.bf16 %v382, %v382
    %v561 = vunpack.c.l.b16 %v91
    %v562 = vunpack.c.l.b16 %v92
    %v563 = vunpack.c.l.b16 %v93
    %v564 = vunpack.c.l.b16 %v94
    %v565 = vpack.c.b16 %v562, %v561
    %v566 = vpack.c.b16 %v564, %v563
    %v570 = vsel %vm150, %v556, 0
    %572 = vmatprep.subr.bf16.mxu0 0
    %573 = vmatpush1.bf16.msra.mxu0 %v565
    %574 = vmatprep.subr.bf16.mxu0 0
    %575 = vmatpush1.bf16.msra.mxu0 %v566
    %576 = vmatprep.subr.bf16.mxu0 0
    %577 = vmatpush1.bf16.msra.mxu0 0
    %578 = vmatprep.subr.bf16.mxu0 0
    %579 = vmatpush1.bf16.msra.mxu0 0
    %580 = vmatprep.subr.bf16.mxu0 0
    %581 = vmatpush1.bf16.msra.mxu0 0
    %582 = vmatprep.subr.bf16.mxu0 0
    %583 = vmatpush1.bf16.msra.mxu0 0
    %584 = vmatprep.subr.bf16.mxu0 0
    %585 = vmatpush1.bf16.msra.mxu0 0
    %586 = vmatprep.subr.bf16.mxu0 0
    %587 = vmatpush1.bf16.msra.mxu0 0
    %588 = vmatprep.subr.bf16.mxu0 0
    %589 = vmatpush1.bf16.msra.mxu0 0
    %590 = vmatprep.subr.bf16.mxu0 0
    %591 = vmatpush1.bf16.msra.mxu0 0
    %592 = vmatprep.subr.bf16.mxu0 0
    %593 = vmatpush1.bf16.msra.mxu0 0
    %594 = vmatprep.subr.bf16.mxu0 0
    %595 = vmatpush1.bf16.msra.mxu0 0
    %596 = vmatprep.subr.bf16.mxu0 0
    %597 = vmatpush1.bf16.msra.mxu0 0
    %598 = vmatprep.subr.bf16.mxu0 0
    %599 = vmatpush1.bf16.msra.mxu0 0
    %600 = vmatprep.subr.bf16.mxu0 0
    %601 = vmatpush1.bf16.msra.mxu0 0
    %602 = vmatprep.subr.bf16.mxu0 0
    %603 = vmatpush1.bf16.msra.mxu0 0
    %604 = vmatprep.mubr.bf16.mxu0 0
    %605 = vmatmul.mubr.bf16.gmra.mrb[0].mxu0 %v570
    %v606 = vpop.f32.mrb[0].mxu0
    %v607 = vadd.f32 0.0, %v606
    %v608 = vpop.f32.mrb[0].mxu0
    %v609 = vpop.f32.mrb[0].mxu0
    %v610 = vpop.f32.mrb[0].mxu0
    %611 = vdwg.mxu0
    %v612 = vadd.f32 %v555, %v607
    %v613 = vpack.c.bf16 %v203, %v200
    %v615 = vsel %vm150, %v613, 0
    %617 = vmatprep.subr.bf16.mxu0 0
    %618 = vmatpush1.bf16.xpose.msra.mxu0 %v615
    %619 = vmatprep.subr.bf16.mxu0 0
    %620 = vmatpush1.bf16.xpose.msra.mxu0 0
    %621 = vmatprep.subr.bf16.mxu0 0
    %622 = vmatpush1.bf16.xpose.msra.mxu0 0
    %623 = vmatprep.subr.bf16.mxu0 0
    %624 = vmatpush1.bf16.xpose.msra.mxu0 0
    %625 = vmatprep.subr.bf16.mxu0 0
    %626 = vmatpush1.bf16.xpose.msra.mxu0 0
    %627 = vmatprep.subr.bf16.mxu0 0
    %628 = vmatpush1.bf16.xpose.msra.mxu0 0
    %629 = vmatprep.subr.bf16.mxu0 0
    %630 = vmatpush1.bf16.xpose.msra.mxu0 0
    %631 = vmatprep.subr.bf16.mxu0 0
    %632 = vmatpush1.bf16.xpose.msra.mxu0 0
    %633 = vmatprep.subr.bf16.mxu0 0
    %634 = vmatpush1.bf16.xpose.msra.mxu0 0
    %635 = vmatprep.subr.bf16.mxu0 0
    %636 = vmatpush1.bf16.xpose.msra.mxu0 0
    %637 = vmatprep.subr.bf16.mxu0 0
    %638 = vmatpush1.bf16.xpose.msra.mxu0 0
    %639 = vmatprep.subr.bf16.mxu0 0
    %640 = vmatpush1.bf16.xpose.msra.mxu0 0
    %641 = vmatprep.subr.bf16.mxu0 0
    %642 = vmatpush1.bf16.xpose.msra.mxu0 0
    %643 = vmatprep.subr.bf16.mxu0 0
    %644 = vmatpush1.bf16.xpose.msra.mxu0 0
    %645 = vmatprep.subr.bf16.mxu0 0
    %646 = vmatpush1.bf16.xpose.msra.mxu0 0
    %647 = vmatprep.subr.bf16.mxu0 0
    %648 = vmatpush1.bf16.xpose.msra.mxu0 0
    %649 = vmatprep.mubr.bf16.mxu0 0
    %650 = vmatmul.mubr.bf16.gmra.mrb[0].mxu0 %v218
    %v651 = vpop.f32.mrb[0].mxu0
    %v652 = vadd.f32 0.0, %v651
    %v653 = vpop.f32.mrb[0].mxu0
    %v654 = vpop.f32.mrb[0].mxu0
    %v655 = vadd.f32 0.0, %v654
    %v656 = vpop.f32.mrb[0].mxu0
    %657 = vmatprep.mubr.bf16.mxu0 0
    %658 = vmatmul.mubr.bf16.gmra.mrb[0].mxu0 %v221
    %v659 = vpop.f32.mrb[0].mxu0
    %v660 = vadd.f32 0.0, %v659
    %v661 = vpop.f32.mrb[0].mxu0
    %v662 = vpop.f32.mrb[0].mxu0
    %v663 = vadd.f32 0.0, %v662
    %v664 = vpop.f32.mrb[0].mxu0
    %665 = vdwg.mxu0
    %v666 = vsel %vm275, %v652, -inf
    %667 = vmax.xlane.f32.xlu0 %v666
    %v668 = vpop.xlane.xlu0 %667
    %v669 = vsel %vm275, %v655, -inf
    %670 = vmax.xlane.f32.xlu0 %v669
    %v671 = vpop.xlane.xlu0 %670
    %v672 = vsel %vm275, %v660, -inf
    %673 = vmax.xlane.f32.xlu0 %v672
    %v674 = vpop.xlane.xlu0 %673
    %v675 = vsel %vm275, %v663, -inf
    %676 = vmax.xlane.f32.xlu0 %v675
    %v677 = vpop.xlane.xlu0 %676
    %v678 = vsub.f32 %v652, %v668
    %v679 = vsub.f32 %v655, %v671
    %v680 = vsub.f32 %v660, %v674
    %v681 = vsub.f32 %v663, %v677
    %v682 = vmul.f32 %v678, 1.442695
    %v683 = vpow.pop %v682
    %v684 = vmul.f32 %v679, 1.442695
    %v685 = vpow.pop %v684
    %v686 = vmul.f32 %v680, 1.442695
    %v687 = vpow.pop %v686
    %v688 = vmul.f32 %v681, 1.442695
    %v689 = vpow.pop %v688
    %v690 = vsel %vm275, %v683, 0.0
    %691 = vadd.xlane.f32.xlu0 %v690
    %v692 = vpop.xlane.xlu0 %691
    %v693 = vsel %vm275, %v685, 0.0
    %694 = vadd.xlane.f32.xlu0 %v693
    %v695 = vpop.xlane.xlu0 %694
    %v696 = vsel %vm275, %v687, 0.0
    %697 = vadd.xlane.f32.xlu0 %v696
    %v698 = vpop.xlane.xlu0 %697
    %v699 = vsel %vm275, %v689, 0.0
    %700 = vadd.xlane.f32.xlu0 %v699
    %v701 = vpop.xlane.xlu0 %700
    %v702 = vrcp.pop %v692
    %v703 = vrcp.pop %v695
    %v704 = vrcp.pop %v698
    %v705 = vrcp.pop %v701
    %v706 = vmul.f32 %v702, 0.35355338
    %v707 = vmul.f32 %v703, 0.35355338
    %v708 = vmul.f32 %v704, 0.35355338
    %v709 = vmul.f32 %v705, 0.35355338
    %v710 = vmul.f32 %v683, %v706
    %v711 = vmul.f32 %v685, %v707
    %v712 = vmul.f32 %v687, %v708
    %v713 = vmul.f32 %v689, %v709
    %v714 = vpack.c.bf16 %v711, %v710
    %v715 = vpack.c.bf16 %v713, %v712
    %717 = vrot.lane.b32.xlu0 %v613, 96
    %v718 = vpop.permute.xlu0 %717
    %v721 = vsel %vm275, %v714, 0
    %v724 = vsel %vm275, %v715, 0
    %726 = vmatprep.subr.bf16.mxu0 0
    %727 = vmatpush1.bf16.msra.mxu0 %v718
    %728 = vmatprep.subr.bf16.mxu0 0
    %729 = vmatpush1.bf16.msra.mxu0 0
    %730 = vmatprep.subr.bf16.mxu0 0
    %731 = vmatpush1.bf16.msra.mxu0 0
    %732 = vmatprep.subr.bf16.mxu0 0
    %733 = vmatpush1.bf16.msra.mxu0 0
    %734 = vmatprep.subr.bf16.mxu0 0
    %735 = vmatpush1.bf16.msra.mxu0 0
    %736 = vmatprep.subr.bf16.mxu0 0
    %737 = vmatpush1.bf16.msra.mxu0 0
    %738 = vmatprep.subr.bf16.mxu0 0
    %739 = vmatpush1.bf16.msra.mxu0 0
    %740 = vmatprep.subr.bf16.mxu0 0
    %741 = vmatpush1.bf16.msra.mxu0 0
    %742 = vmatprep.subr.bf16.mxu0 0
    %743 = vmatpush1.bf16.msra.mxu0 0
    %744 = vmatprep.subr.bf16.mxu0 0
    %745 = vmatpush1.bf16.msra.mxu0 0
    %746 = vmatprep.subr.bf16.mxu0 0
    %747 = vmatpush1.bf16.msra.mxu0 0
    %748 = vmatprep.subr.bf16.mxu0 0
    %749 = vmatpush1.bf16.msra.mxu0 0
    %750 = vmatprep.subr.bf16.mxu0 0
    %751 = vmatpush1.bf16.msra.mxu0 0
    %752 = vmatprep.subr.bf16.mxu0 0
    %753 = vmatpush1.bf16.msra.mxu0 0
    %754 = vmatprep.subr.bf16.mxu0 0
    %755 = vmatpush1.bf16.msra.mxu0 0
    %756 = vmatprep.subr.bf16.mxu0 0
    %757 = vmatpush1.bf16.msra.mxu0 0
    %758 = vmatprep.mubr.bf16.mxu0 0
    %759 = vmatmul.mubr.bf16.gmra.mrb[0].mxu0 %v721
    %v760 = vpop.f32.mrb[0].mxu0
    %v761 = vadd.f32 0.0, %v760
    %v762 = vpop.f32.mrb[0].mxu0
    %v763 = vpop.f32.mrb[0].mxu0
    %v764 = vadd.f32 0.0, %v763
    %v765 = vpop.f32.mrb[0].mxu0
    %766 = vmatprep.mubr.bf16.mxu0 0
    %767 = vmatmul.mubr.bf16.gmra.mrb[0].mxu0 %v724
    %v768 = vpop.f32.mrb[0].mxu0
    %v769 = vadd.f32 0.0, %v768
    %v770 = vpop.f32.mrb[0].mxu0
    %v771 = vpop.f32.mrb[0].mxu0
    %v772 = vadd.f32 0.0, %v771
    %v773 = vpop.f32.mrb[0].mxu0
    %774 = vdwg.mxu0
    %v775 = vpack.c.bf16 %v761, %v761
    %v777 = vsel %vm150, %v775, 0
    %779 = vmatprep.subr.bf16.mxu0 0
    %780 = vmatpush1.bf16.msra.mxu0 %v394
    %781 = vmatprep.subr.bf16.mxu0 0
    %782 = vmatpush1.bf16.msra.mxu0 %v395
    %783 = vmatprep.subr.bf16.mxu0 0
    %784 = vmatpush1.bf16.msra.mxu0 0
    %785 = vmatprep.subr.bf16.mxu0 0
    %786 = vmatpush1.bf16.msra.mxu0 0
    %787 = vmatprep.subr.bf16.mxu0 0
    %788 = vmatpush1.bf16.msra.mxu0 0
    %789 = vmatprep.subr.bf16.mxu0 0
    %790 = vmatpush1.bf16.msra.mxu0 0
    %791 = vmatprep.subr.bf16.mxu0 0
    %792 = vmatpush1.bf16.msra.mxu0 0
    %793 = vmatprep.subr.bf16.mxu0 0
    %794 = vmatpush1.bf16.msra.mxu0 0
    %795 = vmatprep.subr.bf16.mxu0 0
    %796 = vmatpush1.bf16.msra.mxu0 0
    %797 = vmatprep.subr.bf16.mxu0 0
    %798 = vmatpush1.bf16.msra.mxu0 0
    %799 = vmatprep.subr.bf16.mxu0 0
    %800 = vmatpush1.bf16.msra.mxu0 0
    %801 = vmatprep.subr.bf16.mxu0 0
    %802 = vmatpush1.bf16.msra.mxu0 0
    %803 = vmatprep.subr.bf16.mxu0 0
    %804 = vmatpush1.bf16.msra.mxu0 0
    %805 = vmatprep.subr.bf16.mxu0 0
    %806 = vmatpush1.bf16.msra.mxu0 0
    %807 = vmatprep.subr.bf16.mxu0 0
    %808 = vmatpush1.bf16.msra.mxu0 0
    %809 = vmatprep.subr.bf16.mxu0 0
    %810 = vmatpush1.bf16.msra.mxu0 0
    %811 = vmatprep.mubr.bf16.mxu0 0
    %812 = vmatmul.mubr.bf16.gmra.mrb[0].mxu0 %v777
    %v813 = vpop.f32.mrb[0].mxu0
    %v814 = vadd.f32 0.0, %v813
    %v815 = vpop.f32.mrb[0].mxu0
    %v816 = vpop.f32.mrb[0].mxu0
    %v817 = vpop.f32.mrb[0].mxu0
    %818 = vdwg.mxu0
    %v819 = vadd.f32 %v119, %v814
    %v820 = vpack.c.bf16 %v764, %v764
    %v822 = vsel %vm150, %v820, 0
    %824 = vmatprep.subr.bf16.mxu0 0
    %825 = vmatpush1.bf16.msra.mxu0 %v451
    %826 = vmatprep.subr.bf16.mxu0 0
    %827 = vmatpush1.bf16.msra.mxu0 %v452
    %828 = vmatprep.subr.bf16.mxu0 0
    %829 = vmatpush1.bf16.msra.mxu0 0
    %830 = vmatprep.subr.bf16.mxu0 0
    %831 = vmatpush1.bf16.msra.mxu0 0
    %832 = vmatprep.subr.bf16.mxu0 0
    %833 = vmatpush1.bf16.msra.mxu0 0
    %834 = vmatprep.subr.bf16.mxu0 0
    %835 = vmatpush1.bf16.msra.mxu0 0
    %836 = vmatprep.subr.bf16.mxu0 0
    %837 = vmatpush1.bf16.msra.mxu0 0
    %838 = vmatprep.subr.bf16.mxu0 0
    %839 = vmatpush1.bf16.msra.mxu0 0
    %840 = vmatprep.subr.bf16.mxu0 0
    %841 = vmatpush1.bf16.msra.mxu0 0
    %842 = vmatprep.subr.bf16.mxu0 0
    %843 = vmatpush1.bf16.msra.mxu0 0
    %844 = vmatprep.subr.bf16.mxu0 0
    %845 = vmatpush1.bf16.msra.mxu0 0
    %846 = vmatprep.subr.bf16.mxu0 0
    %847 = vmatpush1.bf16.msra.mxu0 0
    %848 = vmatprep.subr.bf16.mxu0 0
    %849 = vmatpush1.bf16.msra.mxu0 0
    %850 = vmatprep.subr.bf16.mxu0 0
    %851 = vmatpush1.bf16.msra.mxu0 0
    %852 = vmatprep.subr.bf16.mxu0 0
    %853 = vmatpush1.bf16.msra.mxu0 0
    %854 = vmatprep.subr.bf16.mxu0 0
    %855 = vmatpush1.bf16.msra.mxu0 0
    %856 = vmatprep.mubr.bf16.mxu0 0
    %857 = vmatmul.mubr.bf16.gmra.mrb[0].mxu0 %v822
    %v858 = vpop.f32.mrb[0].mxu0
    %v859 = vadd.f32 0.0, %v858
    %v860 = vpop.f32.mrb[0].mxu0
    %v861 = vpop.f32.mrb[0].mxu0
    %v862 = vpop.f32.mrb[0].mxu0
    %863 = vdwg.mxu0
    %v864 = vadd.f32 %v819, %v859
    %v865 = vpack.c.bf16 %v769, %v769
    %v867 = vsel %vm150, %v865, 0
    %869 = vmatprep.subr.bf16.mxu0 0
    %870 = vmatpush1.bf16.msra.mxu0 %v508
    %871 = vmatprep.subr.bf16.mxu0 0
    %872 = vmatpush1.bf16.msra.mxu0 %v509
    %873 = vmatprep.subr.bf16.mxu0 0
    %874 = vmatpush1.bf16.msra.mxu0 0
    %875 = vmatprep.subr.bf16.mxu0 0
    %876 = vmatpush1.bf16.msra.mxu0 0
    %877 = vmatprep.subr.bf16.mxu0 0
    %878 = vmatpush1.bf16.msra.mxu0 0
    %879 = vmatprep.subr.bf16.mxu0 0
    %880 = vmatpush1.bf16.msra.mxu0 0
    %881 = vmatprep.subr.bf16.mxu0 0
    %882 = vmatpush1.bf16.msra.mxu0 0
    %883 = vmatprep.subr.bf16.mxu0 0
    %884 = vmatpush1.bf16.msra.mxu0 0
    %885 = vmatprep.subr.bf16.mxu0 0
    %886 = vmatpush1.bf16.msra.mxu0 0
    %887 = vmatprep.subr.bf16.mxu0 0
    %888 = vmatpush1.bf16.msra.mxu0 0
    %889 = vmatprep.subr.bf16.mxu0 0
    %890 = vmatpush1.bf16.msra.mxu0 0
    %891 = vmatprep.subr.bf16.mxu0 0
    %892 = vmatpush1.bf16.msra.mxu0 0
    %893 = vmatprep.subr.bf16.mxu0 0
    %894 = vmatpush1.bf16.msra.mxu0 0
    %895 = vmatprep.subr.bf16.mxu0 0
    %896 = vmatpush1.bf16.msra.mxu0 0
    %897 = vmatprep.subr.bf16.mxu0 0
    %898 = vmatpush1.bf16.msra.mxu0 0
    %899 = vmatprep.subr.bf16.mxu0 0
    %900 = vmatpush1.bf16.msra.mxu0 0
    %901 = vmatprep.mubr.bf16.mxu0 0
    %902 = vmatmul.mubr.bf16.gmra.mrb[0].mxu0 %v867
    %v903 = vpop.f32.mrb[0].mxu0
    %v904 = vadd.f32 0.0, %v903
    %v905 = vpop.f32.mrb[0].mxu0
    %v906 = vpop.f32.mrb[0].mxu0
    %v907 = vpop.f32.mrb[0].mxu0
    %908 = vdwg.mxu0
    %v909 = vadd.f32 %v864, %v904
    %v910 = vpack.c.bf16 %v772, %v772
    %v912 = vsel %vm150, %v910, 0
    %914 = vmatprep.subr.bf16.mxu0 0
    %915 = vmatpush1.bf16.msra.mxu0 %v565
    %916 = vmatprep.subr.bf16.mxu0 0
    %917 = vmatpush1.bf16.msra.mxu0 %v566
    %918 = vmatprep.subr.bf16.mxu0 0
    %919 = vmatpush1.bf16.msra.mxu0 0
    %920 = vmatprep.subr.bf16.mxu0 0
    %921 = vmatpush1.bf16.msra.mxu0 0
    %922 = vmatprep.subr.bf16.mxu0 0
    %923 = vmatpush1.bf16.msra.mxu0 0
    %924 = vmatprep.subr.bf16.mxu0 0
    %925 = vmatpush1.bf16.msra.mxu0 0
    %926 = vmatprep.subr.bf16.mxu0 0
    %927 = vmatpush1.bf16.msra.mxu0 0
    %928 = vmatprep.subr.bf16.mxu0 0
    %929 = vmatpush1.bf16.msra.mxu0 0
    %930 = vmatprep.subr.bf16.mxu0 0
    %931 = vmatpush1.bf16.msra.mxu0 0
    %932 = vmatprep.subr.bf16.mxu0 0
    %933 = vmatpush1.bf16.msra.mxu0 0
    %934 = vmatprep.subr.bf16.mxu0 0
    %935 = vmatpush1.bf16.msra.mxu0 0
    %936 = vmatprep.subr.bf16.mxu0 0
    %937 = vmatpush1.bf16.msra.mxu0 0
    %938 = vmatprep.subr.bf16.mxu0 0
    %939 = vmatpush1.bf16.msra.mxu0 0
    %940 = vmatprep.subr.bf16.mxu0 0
    %941 = vmatpush1.bf16.msra.mxu0 0
    %942 = vmatprep.subr.bf16.mxu0 0
    %943 = vmatpush1.bf16.msra.mxu0 0
    %944 = vmatprep.subr.bf16.mxu0 0
    %945 = vmatpush1.bf16.msra.mxu0 0
    %946 = vmatprep.mubr.bf16.mxu0 0
    %947 = vmatmul.mubr.bf16.gmra.mrb[0].mxu0 %v912
    %v948 = vpop.f32.mrb[0].mxu0
    %v949 = vadd.f32 0.0, %v948
    %v950 = vpop.f32.mrb[0].mxu0
    %v951 = vpop.f32.mrb[0].mxu0
    %v952 = vpop.f32.mrb[0].mxu0
    %953 = vdwg.mxu0
    %v954 = vadd.f32 %v909, %v949
    %v955 = vsel %vm150, %v612, 0.0
    %956 = vadd.xlane.f32.xlu0 %v955
    %v957 = vpop.xlane.xlu0 %956
    %v958 = vsel %vm150, %v954, 0.0
    %959 = vadd.xlane.f32.xlu0 %v958
    %v960 = vpop.xlane.xlu0 %959
    %v961 = vrcp.pop 32.0
    %v962 = vmul.f32 %v957, %v961
    %v963 = vmul.f32 %v960, %v961
    %v964 = vsub.f32 %v612, %v962
    %v965 = vsub.f32 %v954, %v963
    %v966 = vmul.f32 %v964, %v964
    %v967 = vmul.f32 %v965, %v965
    %v968 = vsel %vm150, %v966, 0.0
    %969 = vadd.xlane.f32.xlu0 %v968
    %v970 = vpop.xlane.xlu0 %969
    %v971 = vsel %vm150, %v967, 0.0
    %972 = vadd.xlane.f32.xlu0 %v971
    %v973 = vpop.xlane.xlu0 %972
    %v974 = vmul.f32 %v970, %v961
    %v975 = vmul.f32 %v973, %v961
    %v976 = vadd.f32 %v974, 1e-05
    %v977 = vadd.f32 %v975, 1e-05
    %v978 = vrsqrt.pop %v976
    %v979 = vrsqrt.pop %v977
    %v980 = vmul.f32 %v964, %v978
    %v981 = vmul.f32 %v965, %v979
    %v982 = vlaneseq
    %v983 = vshrl.u32 %v982, 7
    %v984 = vsub.s32 2, %v983
    %v985 = vrot.slane %v115, %v984
    %v986 = vmul.f32 %v980, %v985
    %v987 = vmul.f32 %v981, %v985
    %v988 = vlaneseq
    %v989 = vshrl.u32 %v988, 7
    %v990 = vsub.s32 3, %v989
    %v991 = vrot.slane %v115, %v990
    %v992 = vadd.f32 %v986, %v991
    %v993 = vadd.f32 %v987, %v991
    %v994 = vpack.c.bf16 %v993, %v992
    %v995 = vlaneseq
    %v996 = vshrl.u32 %v995, 7
    %v997 = vsub.s32 4, %v996
    %v998 = vrot.slane %v115, %v997
    %v1003 = vunpack.c.l.b16 %v95
    %v1004 = vunpack.c.l.b16 %v96
    %v1005 = vunpack.c.l.b16 %v97
    %v1006 = vunpack.c.l.b16 %v98
    %v1007 = vpack.c.b16 %v1004, %v1003
    %v1008 = vpack.c.b16 %v1006, %v1005
    %v1012 = vsel %vm150, %v994, 0
    %1014 = vmatprep.subr.bf16.mxu0 0
    %1015 = vmatpush1.bf16.msra.mxu0 %v1007
    %1016 = vmatprep.subr.bf16.mxu0 0
    %1017 = vmatpush1.bf16.msra.mxu0 %v1008
    %1018 = vmatprep.subr.bf16.mxu0 0
    %1019 = vmatpush1.bf16.msra.mxu0 0
    %1020 = vmatprep.subr.bf16.mxu0 0
    %1021 = vmatpush1.bf16.msra.mxu0 0
    %1022 = vmatprep.subr.bf16.mxu0 0
    %1023 = vmatpush1.bf16.msra.mxu0 0
    %1024 = vmatprep.subr.bf16.mxu0 0
    %1025 = vmatpush1.bf16.msra.mxu0 0
    %1026 = vmatprep.subr.bf16.mxu0 0
    %1027 = vmatpush1.bf16.msra.mxu0 0
    %1028 = vmatprep.subr.bf16.mxu0 0
    %1029 = vmatpush1.bf16.msra.mxu0 0
    %1030 = vmatprep.subr.bf16.mxu0 0
    %1031 = vmatpush1.bf16.msra.mxu0 0
    %1032 = vmatprep.subr.bf16.mxu0 0
    %1033 = vmatpush1.bf16.msra.mxu0 0
    %1034 = vmatprep.subr.bf16.mxu0 0
    %1035 = vmatpush1.bf16.msra.mxu0 0
    %1036 = vmatprep.subr.bf16.mxu0 0
    %1037 = vmatpush1.bf16.msra.mxu0 0
    %1038 = vmatprep.subr.bf16.mxu0 0
    %1039 = vmatpush1.bf16.msra.mxu0 0
    %1040 = vmatprep.subr.bf16.mxu0 0
    %1041 = vmatpush1.bf16.msra.mxu0 0
    %1042 = vmatprep.subr.bf16.mxu0 0
    %1043 = vmatpush1.bf16.msra.mxu0 0
    %1044 = vmatprep.subr.bf16.mxu0 0
    %1045 = vmatpush1.bf16.msra.mxu0 0
    %1046 = vmatprep.mubr.bf16.mxu0 0
    %1047 = vmatmul.mubr.bf16.gmra.mrb[0].mxu0 %v1012
    %v1048 = vpop.f32.mrb[0].mxu0
    %v1049 = vadd.f32 %v998, %v1048
    %v1050 = vpop.f32.mrb[0].mxu0
    %v1051 = vpop.f32.mrb[0].mxu0
    %v1052 = vadd.f32 %v998, %v1051
    %v1053 = vpop.f32.mrb[0].mxu0
    %1054 = vdwg.mxu0
    %1057 = vrot.lane.b32.xlu0 %v192, 64
    %v1058 = vpop.permute.xlu0 %1057
    %1059 = vrot.lane.b32.xlu0 %v195, 64
    %v1060 = vpop.permute.xlu0 %1059
    %vm1061 = vcmask 64512
    %v1062 = vsel %vm1061, %v1058, 0
    %v1064 = vsel %vm1061, %v1060, 0
    %v1067 = vsel %vm1061, %v1049, 0
    %1069 = vmatprep.subr.mxu0 0.0
    %1070 = vmatpush1.xpose.msra.mxu0 %v1067
    %1071 = vmatprep.subr.mxu0 0.0
    %1072 = vmatpush1.xpose.msra.mxu0 0.0
    %1073 = vmatprep.subr.mxu0 0.0
    %1074 = vmatpush1.xpose.msra.mxu0 0.0
    %1075 = vmatprep.subr.mxu0 0.0
    %1076 = vmatpush1.xpose.msra.mxu0 0.0
    %1077 = vmatprep.subr.mxu0 0.0
    %1078 = vmatpush1.xpose.msra.mxu0 0.0
    %1079 = vmatprep.subr.mxu0 0.0
    %1080 = vmatpush1.xpose.msra.mxu0 0.0
    %1081 = vmatprep.subr.mxu0 0.0
    %1082 = vmatpush1.xpose.msra.mxu0 0.0
    %1083 = vmatprep.subr.mxu0 0.0
    %1084 = vmatpush1.xpose.msra.mxu0 0.0
    %1085 = vmatprep.subr.mxu0 0.0
    %1086 = vmatpush1.xpose.msra.mxu0 0.0
    %1087 = vmatprep.subr.mxu0 0.0
    %1088 = vmatpush1.xpose.msra.mxu0 0.0
    %1089 = vmatprep.subr.mxu0 0.0
    %1090 = vmatpush1.xpose.msra.mxu0 0.0
    %1091 = vmatprep.subr.mxu0 0.0
    %1092 = vmatpush1.xpose.msra.mxu0 0.0
    %1093 = vmatprep.subr.mxu0 0.0
    %1094 = vmatpush1.xpose.msra.mxu0 0.0
    %1095 = vmatprep.subr.mxu0 0.0
    %1096 = vmatpush1.xpose.msra.mxu0 0.0
    %1097 = vmatprep.subr.mxu0 0.0
    %1098 = vmatpush1.xpose.msra.mxu0 0.0
    %1099 = vmatprep.subr.mxu0 0.0
    %1100 = vmatpush1.xpose.msra.mxu0 0.0
    %1101 = vmatprep.subr.mxu0 0.0
    %1102 = vmatpush1.xpose.msra.mxu0 0.0
    %1103 = vmatprep.subr.mxu0 0.0
    %1104 = vmatpush1.xpose.msra.mxu0 0.0
    %1105 = vmatprep.subr.mxu0 0.0
    %1106 = vmatpush1.xpose.msra.mxu0 0.0
    %1107 = vmatprep.subr.mxu0 0.0
    %1108 = vmatpush1.xpose.msra.mxu0 0.0
    %1109 = vmatprep.subr.mxu0 0.0
    %1110 = vmatpush1.xpose.msra.mxu0 0.0
    %1111 = vmatprep.subr.mxu0 0.0
    %1112 = vmatpush1.xpose.msra.mxu0 0.0
    %1113 = vmatprep.subr.mxu0 0.0
    %1114 = vmatpush1.xpose.msra.mxu0 0.0
    %1115 = vmatprep.subr.mxu0 0.0
    %1116 = vmatpush1.xpose.msra.mxu0 0.0
    %1117 = vmatprep.subr.mxu0 0.0
    %1118 = vmatpush1.xpose.msra.mxu0 0.0
    %1119 = vmatprep.subr.mxu0 0.0
    %1120 = vmatpush1.xpose.msra.mxu0 0.0
    %1121 = vmatprep.subr.mxu0 0.0
    %1122 = vmatpush1.xpose.msra.mxu0 0.0
    %1123 = vmatprep.subr.mxu0 0.0
    %1124 = vmatpush1.xpose.msra.mxu0 0.0
    %1125 = vmatprep.subr.mxu0 0.0
    %1126 = vmatpush1.xpose.msra.mxu0 0.0
    %1127 = vmatprep.subr.mxu0 0.0
    %1128 = vmatpush1.xpose.msra.mxu0 0.0
    %1129 = vmatprep.subr.mxu0 0.0
    %1130 = vmatpush1.xpose.msra.mxu0 0.0
    %1131 = vmatprep.subr.mxu0 0.0
    %1132 = vmatpush1.xpose.msra.mxu0 0.0
    %1133 = vmatprep.mubr.f32.mxu0 0.0
    %1134 = vmatmul.mubr.f32.gmra.mrb[0].mxu0 %v1062
    %v1135 = vpop.f32.mrb[0].mxu0
    %v1136 = vadd.f32 0.0, %v1135
    %v1137 = vpop.f32.mrb[0].mxu0
    %1138 = vmatprep.mubr.f32.mxu0 0.0
    %1139 = vmatmul.mubr.f32.gmra.mrb[0].mxu0 %v1064
    %v1140 = vpop.f32.mrb[0].mxu0
    %v1141 = vadd.f32 0.0, %v1140
    %v1142 = vpop.f32.mrb[0].mxu0
    %1143 = vdwg.mxu0
    %1144 = vrot.lane.b32.xlu0 %v192, 56
    %v1145 = vpop.permute.xlu0 %1144
    %1146 = vrot.lane.b32.xlu0 %v195, 56
    %v1147 = vpop.permute.xlu0 %1146
    %1148 = vrot.lane.b32.xlu0 %v1049, 120
    %v1149 = vpop.permute.xlu0 %1148
    %v1150 = vsel %vm1061, %v1145, 0
    %v1152 = vsel %vm1061, %v1147, 0
    %v1154 = vsel %vm1061, %v1149, 0
    %1156 = vmatprep.subr.mxu0 0.0
    %1157 = vmatpush1.xpose.msra.mxu0 %v1154
    %1158 = vmatprep.subr.mxu0 0.0
    %1159 = vmatpush1.xpose.msra.mxu0 0.0
    %1160 = vmatprep.subr.mxu0 0.0
    %1161 = vmatpush1.xpose.msra.mxu0 0.0
    %1162 = vmatprep.subr.mxu0 0.0
    %1163 = vmatpush1.xpose.msra.mxu0 0.0
    %1164 = vmatprep.subr.mxu0 0.0
    %1165 = vmatpush1.xpose.msra.mxu0 0.0
    %1166 = vmatprep.subr.mxu0 0.0
    %1167 = vmatpush1.xpose.msra.mxu0 0.0
    %1168 = vmatprep.subr.mxu0 0.0
    %1169 = vmatpush1.xpose.msra.mxu0 0.0
    %1170 = vmatprep.subr.mxu0 0.0
    %1171 = vmatpush1.xpose.msra.mxu0 0.0
    %1172 = vmatprep.subr.mxu0 0.0
    %1173 = vmatpush1.xpose.msra.mxu0 0.0
    %1174 = vmatprep.subr.mxu0 0.0
    %1175 = vmatpush1.xpose.msra.mxu0 0.0
    %1176 = vmatprep.subr.mxu0 0.0
    %1177 = vmatpush1.xpose.msra.mxu0 0.0
    %1178 = vmatprep.subr.mxu0 0.0
    %1179 = vmatpush1.xpose.msra.mxu0 0.0
    %1180 = vmatprep.subr.mxu0 0.0
    %1181 = vmatpush1.xpose.msra.mxu0 0.0
    %1182 = vmatprep.subr.mxu0 0.0
    %1183 = vmatpush1.xpose.msra.mxu0 0.0
    %1184 = vmatprep.subr.mxu0 0.0
    %1185 = vmatpush1.xpose.msra.mxu0 0.0
    %1186 = vmatprep.subr.mxu0 0.0
    %1187 = vmatpush1.xpose.msra.mxu0 0.0
    %1188 = vmatprep.subr.mxu0 0.0
    %1189 = vmatpush1.xpose.msra.mxu0 0.0
    %1190 = vmatprep.subr.mxu0 0.0
    %1191 = vmatpush1.xpose.msra.mxu0 0.0
    %1192 = vmatprep.subr.mxu0 0.0
    %1193 = vmatpush1.xpose.msra.mxu0 0.0
    %1194 = vmatprep.subr.mxu0 0.0
    %1195 = vmatpush1.xpose.msra.mxu0 0.0
    %1196 = vmatprep.subr.mxu0 0.0
    %1197 = vmatpush1.xpose.msra.mxu0 0.0
    %1198 = vmatprep.subr.mxu0 0.0
    %1199 = vmatpush1.xpose.msra.mxu0 0.0
    %1200 = vmatprep.subr.mxu0 0.0
    %1201 = vmatpush1.xpose.msra.mxu0 0.0
    %1202 = vmatprep.subr.mxu0 0.0
    %1203 = vmatpush1.xpose.msra.mxu0 0.0
    %1204 = vmatprep.subr.mxu0 0.0
    %1205 = vmatpush1.xpose.msra.mxu0 0.0
    %1206 = vmatprep.subr.mxu0 0.0
    %1207 = vmatpush1.xpose.msra.mxu0 0.0
    %1208 = vmatprep.subr.mxu0 0.0
    %1209 = vmatpush1.xpose.msra.mxu0 0.0
    %1210 = vmatprep.subr.mxu0 0.0
    %1211 = vmatpush1.xpose.msra.mxu0 0.0
    %1212 = vmatprep.subr.mxu0 0.0
    %1213 = vmatpush1.xpose.msra.mxu0 0.0
    %1214 = vmatprep.subr.mxu0 0.0
    %1215 = vmatpush1.xpose.msra.mxu0 0.0
    %1216 = vmatprep.subr.mxu0 0.0
    %1217 = vmatpush1.xpose.msra.mxu0 0.0
    %1218 = vmatprep.subr.mxu0 0.0
    %1219 = vmatpush1.xpose.msra.mxu0 0.0
    %1220 = vmatprep.mubr.f32.mxu0 0.0
    %1221 = vmatmul.mubr.f32.gmra.mrb[0].mxu0 %v1150
    %v1222 = vpop.f32.mrb[0].mxu0
    %v1223 = vadd.f32 0.0, %v1222
    %v1224 = vpop.f32.mrb[0].mxu0
    %1225 = vmatprep.mubr.f32.mxu0 0.0
    %1226 = vmatmul.mubr.f32.gmra.mrb[0].mxu0 %v1152
    %v1227 = vpop.f32.mrb[0].mxu0
    %v1228 = vadd.f32 0.0, %v1227
    %v1229 = vpop.f32.mrb[0].mxu0
    %1230 = vdwg.mxu0
    %1231 = vrot.lane.b32.xlu0 %v192, 48
    %v1232 = vpop.permute.xlu0 %1231
    %1233 = vrot.lane.b32.xlu0 %v195, 48
    %v1234 = vpop.permute.xlu0 %1233
    %1235 = vrot.lane.b32.xlu0 %v1049, 112
    %v1236 = vpop.permute.xlu0 %1235
    %v1237 = vsel %vm1061, %v1232, 0
    %v1239 = vsel %vm1061, %v1234, 0
    %v1241 = vsel %vm1061, %v1236, 0
    %1243 = vmatprep.subr.mxu0 0.0
    %1244 = vmatpush1.xpose.msra.mxu0 %v1241
    %1245 = vmatprep.subr.mxu0 0.0
    %1246 = vmatpush1.xpose.msra.mxu0 0.0
    %1247 = vmatprep.subr.mxu0 0.0
    %1248 = vmatpush1.xpose.msra.mxu0 0.0
    %1249 = vmatprep.subr.mxu0 0.0
    %1250 = vmatpush1.xpose.msra.mxu0 0.0
    %1251 = vmatprep.subr.mxu0 0.0
    %1252 = vmatpush1.xpose.msra.mxu0 0.0
    %1253 = vmatprep.subr.mxu0 0.0
    %1254 = vmatpush1.xpose.msra.mxu0 0.0
    %1255 = vmatprep.subr.mxu0 0.0
    %1256 = vmatpush1.xpose.msra.mxu0 0.0
    %1257 = vmatprep.subr.mxu0 0.0
    %1258 = vmatpush1.xpose.msra.mxu0 0.0
    %1259 = vmatprep.subr.mxu0 0.0
    %1260 = vmatpush1.xpose.msra.mxu0 0.0
    %1261 = vmatprep.subr.mxu0 0.0
    %1262 = vmatpush1.xpose.msra.mxu0 0.0
    %1263 = vmatprep.subr.mxu0 0.0
    %1264 = vmatpush1.xpose.msra.mxu0 0.0
    %1265 = vmatprep.subr.mxu0 0.0
    %1266 = vmatpush1.xpose.msra.mxu0 0.0
    %1267 = vmatprep.subr.mxu0 0.0
    %1268 = vmatpush1.xpose.msra.mxu0 0.0
    %1269 = vmatprep.subr.mxu0 0.0
    %1270 = vmatpush1.xpose.msra.mxu0 0.0
    %1271 = vmatprep.subr.mxu0 0.0
    %1272 = vmatpush1.xpose.msra.mxu0 0.0
    %1273 = vmatprep.subr.mxu0 0.0
    %1274 = vmatpush1.xpose.msra.mxu0 0.0
    %1275 = vmatprep.subr.mxu0 0.0
    %1276 = vmatpush1.xpose.msra.mxu0 0.0
    %1277 = vmatprep.subr.mxu0 0.0
    %1278 = vmatpush1.xpose.msra.mxu0 0.0
    %1279 = vmatprep.subr.mxu0 0.0
    %1280 = vmatpush1.xpose.msra.mxu0 0.0
    %1281 = vmatprep.subr.mxu0 0.0
    %1282 = vmatpush1.xpose.msra.mxu0 0.0
    %1283 = vmatprep.subr.mxu0 0.0
    %1284 = vmatpush1.xpose.msra.mxu0 0.0
    %1285 = vmatprep.subr.mxu0 0.0
    %1286 = vmatpush1.xpose.msra.mxu0 0.0
    %1287 = vmatprep.subr.mxu0 0.0
    %1288 = vmatpush1.xpose.msra.mxu0 0.0
    %1289 = vmatprep.subr.mxu0 0.0
    %1290 = vmatpush1.xpose.msra.mxu0 0.0
    %1291 = vmatprep.subr.mxu0 0.0
    %1292 = vmatpush1.xpose.msra.mxu0 0.0
    %1293 = vmatprep.subr.mxu0 0.0
    %1294 = vmatpush1.xpose.msra.mxu0 0.0
    %1295 = vmatprep.subr.mxu0 0.0
    %1296 = vmatpush1.xpose.msra.mxu0 0.0
    %1297 = vmatprep.subr.mxu0 0.0
    %1298 = vmatpush1.xpose.msra.mxu0 0.0
    %1299 = vmatprep.subr.mxu0 0.0
    %1300 = vmatpush1.xpose.msra.mxu0 0.0
    %1301 = vmatprep.subr.mxu0 0.0
    %1302 = vmatpush1.xpose.msra.mxu0 0.0
    %1303 = vmatprep.subr.mxu0 0.0
    %1304 = vmatpush1.xpose.msra.mxu0 0.0
    %1305 = vmatprep.subr.mxu0 0.0
    %1306 = vmatpush1.xpose.msra.mxu0 0.0
    %1307 = vmatprep.mubr.f32.mxu0 0.0
    %1308 = vmatmul.mubr.f32.gmra.mrb[0].mxu0 %v1237
    %v1309 = vpop.f32.mrb[0].mxu0
    %v1310 = vadd.f32 0.0, %v1309
    %v1311 = vpop.f32.mrb[0].mxu0
    %1312 = vmatprep.mubr.f32.mxu0 0.0
    %1313 = vmatmul.mubr.f32.gmra.mrb[0].mxu0 %v1239
    %v1314 = vpop.f32.mrb[0].mxu0
    %v1315 = vadd.f32 0.0, %v1314
    %v1316 = vpop.f32.mrb[0].mxu0
    %1317 = vdwg.mxu0
    %1318 = vrot.lane.b32.xlu0 %v192, 40
    %v1319 = vpop.permute.xlu0 %1318
    %1320 = vrot.lane.b32.xlu0 %v195, 40
    %v1321 = vpop.permute.xlu0 %1320
    %1322 = vrot.lane.b32.xlu0 %v1049, 104
    %v1323 = vpop.permute.xlu0 %1322
    %v1324 = vsel %vm1061, %v1319, 0
    %v1326 = vsel %vm1061, %v1321, 0
    %v1328 = vsel %vm1061, %v1323, 0
    %1330 = vmatprep.subr.mxu0 0.0
    %1331 = vmatpush1.xpose.msra.mxu0 %v1328
    %1332 = vmatprep.subr.mxu0 0.0
    %1333 = vmatpush1.xpose.msra.mxu0 0.0
    %1334 = vmatprep.subr.mxu0 0.0
    %1335 = vmatpush1.xpose.msra.mxu0 0.0
    %1336 = vmatprep.subr.mxu0 0.0
    %1337 = vmatpush1.xpose.msra.mxu0 0.0
    %1338 = vmatprep.subr.mxu0 0.0
    %1339 = vmatpush1.xpose.msra.mxu0 0.0
    %1340 = vmatprep.subr.mxu0 0.0
    %1341 = vmatpush1.xpose.msra.mxu0 0.0
    %1342 = vmatprep.subr.mxu0 0.0
    %1343 = vmatpush1.xpose.msra.mxu0 0.0
    %1344 = vmatprep.subr.mxu0 0.0
    %1345 = vmatpush1.xpose.msra.mxu0 0.0
    %1346 = vmatprep.subr.mxu0 0.0
    %1347 = vmatpush1.xpose.msra.mxu0 0.0
    %1348 = vmatprep.subr.mxu0 0.0
    %1349 = vmatpush1.xpose.msra.mxu0 0.0
    %1350 = vmatprep.subr.mxu0 0.0
    %1351 = vmatpush1.xpose.msra.mxu0 0.0
    %1352 = vmatprep.subr.mxu0 0.0
    %1353 = vmatpush1.xpose.msra.mxu0 0.0
    %1354 = vmatprep.subr.mxu0 0.0
    %1355 = vmatpush1.xpose.msra.mxu0 0.0
    %1356 = vmatprep.subr.mxu0 0.0
    %1357 = vmatpush1.xpose.msra.mxu0 0.0
    %1358 = vmatprep.subr.mxu0 0.0
    %1359 = vmatpush1.xpose.msra.mxu0 0.0
    %1360 = vmatprep.subr.mxu0 0.0
    %1361 = vmatpush1.xpose.msra.mxu0 0.0
    %1362 = vmatprep.subr.mxu0 0.0
    %1363 = vmatpush1.xpose.msra.mxu0 0.0
    %1364 = vmatprep.subr.mxu0 0.0
    %1365 = vmatpush1.xpose.msra.mxu0 0.0
    %1366 = vmatprep.subr.mxu0 0.0
    %1367 = vmatpush1.xpose.msra.mxu0 0.0
    %1368 = vmatprep.subr.mxu0 0.0
    %1369 = vmatpush1.xpose.msra.mxu0 0.0
    %1370 = vmatprep.subr.mxu0 0.0
    %1371 = vmatpush1.xpose.msra.mxu0 0.0
    %1372 = vmatprep.subr.mxu0 0.0
    %1373 = vmatpush1.xpose.msra.mxu0 0.0
    %1374 = vmatprep.subr.mxu0 0.0
    %1375 = vmatpush1.xpose.msra.mxu0 0.0
    %1376 = vmatprep.subr.mxu0 0.0
    %1377 = vmatpush1.xpose.msra.mxu0 0.0
    %1378 = vmatprep.subr.mxu0 0.0
    %1379 = vmatpush1.xpose.msra.mxu0 0.0
    %1380 = vmatprep.subr.mxu0 0.0
    %1381 = vmatpush1.xpose.msra.mxu0 0.0
    %1382 = vmatprep.subr.mxu0 0.0
    %1383 = vmatpush1.xpose.msra.mxu0 0.0
    %1384 = vmatprep.subr.mxu0 0.0
    %1385 = vmatpush1.xpose.msra.mxu0 0.0
    %1386 = vmatprep.subr.mxu0 0.0
    %1387 = vmatpush1.xpose.msra.mxu0 0.0
    %1388 = vmatprep.subr.mxu0 0.0
    %1389 = vmatpush1.xpose.msra.mxu0 0.0
    %1390 = vmatprep.subr.mxu0 0.0
    %1391 = vmatpush1.xpose.msra.mxu0 0.0
    %1392 = vmatprep.subr.mxu0 0.0
    %1393 = vmatpush1.xpose.msra.mxu0 0.0
    %1394 = vmatprep.mubr.f32.mxu0 0.0
    %1395 = vmatmul.mubr.f32.gmra.mrb[0].mxu0 %v1324
    %v1396 = vpop.f32.mrb[0].mxu0
    %v1397 = vadd.f32 0.0, %v1396
    %v1398 = vpop.f32.mrb[0].mxu0
    %1399 = vmatprep.mubr.f32.mxu0 0.0
    %1400 = vmatmul.mubr.f32.gmra.mrb[0].mxu0 %v1326
    %v1401 = vpop.f32.mrb[0].mxu0
    %v1402 = vadd.f32 0.0, %v1401
    %v1403 = vpop.f32.mrb[0].mxu0
    %1404 = vdwg.mxu0
    %v1405 = vsel %vm1061, %v1136, -inf
    %1406 = vmax.xlane.f32.xlu0 %v1405
    %v1407 = vpop.xlane.xlu0 %1406
    %v1408 = vsel %vm1061, %v1141, -inf
    %1409 = vmax.xlane.f32.xlu0 %v1408
    %v1410 = vpop.xlane.xlu0 %1409
    %v1411 = vsel %vm1061, %v1223, -inf
    %1412 = vmax.xlane.f32.xlu0 %v1411
    %v1413 = vpop.xlane.xlu0 %1412
    %v1414 = vsel %vm1061, %v1228, -inf
    %1415 = vmax.xlane.f32.xlu0 %v1414
    %v1416 = vpop.xlane.xlu0 %1415
    %v1417 = vsel %vm1061, %v1310, -inf
    %1418 = vmax.xlane.f32.xlu0 %v1417
    %v1419 = vpop.xlane.xlu0 %1418
    %v1420 = vsel %vm1061, %v1315, -inf
    %1421 = vmax.xlane.f32.xlu0 %v1420
    %v1422 = vpop.xlane.xlu0 %1421
    %v1423 = vsel %vm1061, %v1397, -inf
    %1424 = vmax.xlane.f32.xlu0 %v1423
    %v1425 = vpop.xlane.xlu0 %1424
    %v1426 = vsel %vm1061, %v1402, -inf
    %1427 = vmax.xlane.f32.xlu0 %v1426
    %v1428 = vpop.xlane.xlu0 %1427
    %v1429 = vsub.f32 %v1136, %v1407
    %v1430 = vsub.f32 %v1141, %v1410
    %v1431 = vsub.f32 %v1223, %v1413
    %v1432 = vsub.f32 %v1228, %v1416
    %v1433 = vsub.f32 %v1310, %v1419
    %v1434 = vsub.f32 %v1315, %v1422
    %v1435 = vsub.f32 %v1397, %v1425
    %v1436 = vsub.f32 %v1402, %v1428
    %v1437 = vmul.f32 %v1429, 1.442695
    %v1438 = vpow.pop %v1437
    %v1439 = vmul.f32 %v1430, 1.442695
    %v1440 = vpow.pop %v1439
    %v1441 = vmul.f32 %v1431, 1.442695
    %v1442 = vpow.pop %v1441
    %v1443 = vmul.f32 %v1432, 1.442695
    %v1444 = vpow.pop %v1443
    %v1445 = vmul.f32 %v1433, 1.442695
    %v1446 = vpow.pop %v1445
    %v1447 = vmul.f32 %v1434, 1.442695
    %v1448 = vpow.pop %v1447
    %v1449 = vmul.f32 %v1435, 1.442695
    %v1450 = vpow.pop %v1449
    %v1451 = vmul.f32 %v1436, 1.442695
    %v1452 = vpow.pop %v1451
    %v1453 = vsel %vm1061, %v1438, 0.0
    %1454 = vadd.xlane.f32.xlu0 %v1453
    %v1455 = vpop.xlane.xlu0 %1454
    %v1456 = vsel %vm1061, %v1440, 0.0
    %1457 = vadd.xlane.f32.xlu0 %v1456
    %v1458 = vpop.xlane.xlu0 %1457
    %v1459 = vsel %vm1061, %v1442, 0.0
    %1460 = vadd.xlane.f32.xlu0 %v1459
    %v1461 = vpop.xlane.xlu0 %1460
    %v1462 = vsel %vm1061, %v1444, 0.0
    %1463 = vadd.xlane.f32.xlu0 %v1462
    %v1464 = vpop.xlane.xlu0 %1463
    %v1465 = vsel %vm1061, %v1446, 0.0
    %1466 = vadd.xlane.f32.xlu0 %v1465
    %v1467 = vpop.xlane.xlu0 %1466
    %v1468 = vsel %vm1061, %v1448, 0.0
    %1469 = vadd.xlane.f32.xlu0 %v1468
    %v1470 = vpop.xlane.xlu0 %1469
    %v1471 = vsel %vm1061, %v1450, 0.0
    %1472 = vadd.xlane.f32.xlu0 %v1471
    %v1473 = vpop.xlane.xlu0 %1472
    %v1474 = vsel %vm1061, %v1452, 0.0
    %1475 = vadd.xlane.f32.xlu0 %v1474
    %v1476 = vpop.xlane.xlu0 %1475
    %v1477 = vrcp.pop %v1455
    %v1478 = vrcp.pop %v1458
    %v1479 = vrcp.pop %v1461
    %v1480 = vrcp.pop %v1464
    %v1481 = vrcp.pop %v1467
    %v1482 = vrcp.pop %v1470
    %v1483 = vrcp.pop %v1473
    %v1484 = vrcp.pop %v1476
    %v1485 = vmul.f32 %v1477, 0.35355338
    %v1486 = vmul.f32 %v1478, 0.35355338
    %v1487 = vmul.f32 %v1479, 0.35355338
    %v1488 = vmul.f32 %v1480, 0.35355338
    %v1489 = vmul.f32 %v1481, 0.35355338
    %v1490 = vmul.f32 %v1482, 0.35355338
    %v1491 = vmul.f32 %v1483, 0.35355338
    %v1492 = vmul.f32 %v1484, 0.35355338
    %v1493 = vmul.f32 %v1438, %v1485
    %v1494 = vmul.f32 %v1440, %v1486
    %v1495 = vmul.f32 %v1442, %v1487
    %v1496 = vmul.f32 %v1444, %v1488
    %v1497 = vmul.f32 %v1446, %v1489
    %v1498 = vmul.f32 %v1448, %v1490
    %v1499 = vmul.f32 %v1450, %v1491
    %v1500 = vmul.f32 %v1452, %v1492
    %v1501 = vpack.c.bf16 %v1494, %v1493
    %v1502 = vpack.c.bf16 %v1496, %v1495
    %v1503 = vpack.c.bf16 %v1498, %v1497
    %v1504 = vpack.c.bf16 %v1500, %v1499
    %v1505 = vpack.c.bf16 %v1049, %v1049
    %1507 = vrot.lane.b32.xlu0 %v1505, 96
    %v1508 = vpop.permute.xlu0 %1507
    %v1510 = vsel %vm1061, %v1501, 0
    %v1513 = vsel %vm1061, %v1502, 0
    %v1516 = vsel %vm1061, %v1503, 0
    %v1519 = vsel %vm1061, %v1504, 0
    %vm1521 = vcmask 1043456
    %v1523 = vsel %vm1521, %v1508, 0
    %1525 = vmatprep.subr.bf16.mxu0 0
    %1526 = vmatpush1.bf16.msra.mxu0 %v1523
    %1527 = vmatprep.subr.bf16.mxu0 0
    %1528 = vmatpush1.bf16.msra.mxu0 0
    %1529 = vmatprep.subr.bf16.mxu0 0
    %1530 = vmatpush1.bf16.msra.mxu0 0
    %1531 = vmatprep.subr.bf16.mxu0 0
    %1532 = vmatpush1.bf16.msra.mxu0 0
    %1533 = vmatprep.subr.bf16.mxu0 0
    %1534 = vmatpush1.bf16.msra.mxu0 0
    %1535 = vmatprep.subr.bf16.mxu0 0
    %1536 = vmatpush1.bf16.msra.mxu0 0
    %1537 = vmatprep.subr.bf16.mxu0 0
    %1538 = vmatpush1.bf16.msra.mxu0 0
    %1539 = vmatprep.subr.bf16.mxu0 0
    %1540 = vmatpush1.bf16.msra.mxu0 0
    %1541 = vmatprep.subr.bf16.mxu0 0
    %1542 = vmatpush1.bf16.msra.mxu0 0
    %1543 = vmatprep.subr.bf16.mxu0 0
    %1544 = vmatpush1.bf16.msra.mxu0 0
    %1545 = vmatprep.subr.bf16.mxu0 0
    %1546 = vmatpush1.bf16.msra.mxu0 0
    %1547 = vmatprep.subr.bf16.mxu0 0
    %1548 = vmatpush1.bf16.msra.mxu0 0
    %1549 = vmatprep.subr.bf16.mxu0 0
    %1550 = vmatpush1.bf16.msra.mxu0 0
    %1551 = vmatprep.subr.bf16.mxu0 0
    %1552 = vmatpush1.bf16.msra.mxu0 0
    %1553 = vmatprep.subr.bf16.mxu0 0
    %1554 = vmatpush1.bf16.msra.mxu0 0
    %1555 = vmatprep.subr.bf16.mxu0 0
    %1556 = vmatpush1.bf16.msra.mxu0 0
    %1557 = vmatprep.mubr.bf16.mxu0 0
    %1558 = vmatmul.mubr.bf16.gmra.mrb[0].mxu0 %v1510
    %v1559 = vpop.f32.mrb[0].mxu0
    %v1560 = vadd.f32 0.0, %v1559
    %v1561 = vpop.f32.mrb[0].mxu0
    %v1562 = vpop.f32.mrb[0].mxu0
    %v1563 = vadd.f32 0.0, %v1562
    %v1564 = vpop.f32.mrb[0].mxu0
    %1565 = vmatprep.mubr.bf16.mxu0 0
    %1566 = vmatmul.mubr.bf16.gmra.mrb[0].mxu0 %v1513
    %v1567 = vpop.f32.mrb[0].mxu0
    %v1568 = vadd.f32 0.0, %v1567
    %v1569 = vpop.f32.mrb[0].mxu0
    %v1570 = vpop.f32.mrb[0].mxu0
    %v1571 = vadd.f32 0.0, %v1570
    %v1572 = vpop.f32.mrb[0].mxu0
    %1573 = vmatprep.mubr.bf16.mxu0 0
    %1574 = vmatmul.mubr.bf16.gmra.mrb[0].mxu0 %v1516
    %v1575 = vpop.f32.mrb[0].mxu0
    %v1576 = vadd.f32 0.0, %v1575
    %v1577 = vpop.f32.mrb[0].mxu0
    %v1578 = vpop.f32.mrb[0].mxu0
    %v1579 = vadd.f32 0.0, %v1578
    %v1580 = vpop.f32.mrb[0].mxu0
    %1581 = vmatprep.mubr.bf16.mxu0 0
    %1582 = vmatmul.mubr.bf16.gmra.mrb[0].mxu0 %v1519
    %v1583 = vpop.f32.mrb[0].mxu0
    %v1584 = vadd.f32 0.0, %v1583
    %v1585 = vpop.f32.mrb[0].mxu0
    %v1586 = vpop.f32.mrb[0].mxu0
    %v1587 = vadd.f32 0.0, %v1586
    %v1588 = vpop.f32.mrb[0].mxu0
    %1589 = vdwg.mxu0
    %v1590 = vpack.c.bf16 %v1563, %v1560
    %v1595 = vunpack.c.l.b16 %v99
    %v1596 = vunpack.c.l.b16 %v100
    %v1597 = vunpack.c.l.b16 %v101
    %v1598 = vunpack.c.l.b16 %v102
    %v1599 = vpack.c.b16 %v1596, %v1595
    %v1600 = vpack.c.b16 %v1598, %v1597
    %v1604 = vsel %vm150, %v1590, 0
    %1606 = vmatprep.subr.bf16.mxu0 0
    %1607 = vmatpush1.bf16.msra.mxu0 %v1599
    %1608 = vmatprep.subr.bf16.mxu0 0
    %1609 = vmatpush1.bf16.msra.mxu0 %v1600
    %1610 = vmatprep.subr.bf16.mxu0 0
    %1611 = vmatpush1.bf16.msra.mxu0 0
    %1612 = vmatprep.subr.bf16.mxu0 0
    %1613 = vmatpush1.bf16.msra.mxu0 0
    %1614 = vmatprep.subr.bf16.mxu0 0
    %1615 = vmatpush1.bf16.msra.mxu0 0
    %1616 = vmatprep.subr.bf16.mxu0 0
    %1617 = vmatpush1.bf16.msra.mxu0 0
    %1618 = vmatprep.subr.bf16.mxu0 0
    %1619 = vmatpush1.bf16.msra.mxu0 0
    %1620 = vmatprep.subr.bf16.mxu0 0
    %1621 = vmatpush1.bf16.msra.mxu0 0
    %1622 = vmatprep.subr.bf16.mxu0 0
    %1623 = vmatpush1.bf16.msra.mxu0 0
    %1624 = vmatprep.subr.bf16.mxu0 0
    %1625 = vmatpush1.bf16.msra.mxu0 0
    %1626 = vmatprep.subr.bf16.mxu0 0
    %1627 = vmatpush1.bf16.msra.mxu0 0
    %1628 = vmatprep.subr.bf16.mxu0 0
    %1629 = vmatpush1.bf16.msra.mxu0 0
    %1630 = vmatprep.subr.bf16.mxu0 0
    %1631 = vmatpush1.bf16.msra.mxu0 0
    %1632 = vmatprep.subr.bf16.mxu0 0
    %1633 = vmatpush1.bf16.msra.mxu0 0
    %1634 = vmatprep.subr.bf16.mxu0 0
    %1635 = vmatpush1.bf16.msra.mxu0 0
    %1636 = vmatprep.subr.bf16.mxu0 0
    %1637 = vmatpush1.bf16.msra.mxu0 0
    %1638 = vmatprep.mubr.bf16.mxu0 0
    %1639 = vmatmul.mubr.bf16.gmra.mrb[0].mxu0 %v1604
    %v1640 = vpop.f32.mrb[0].mxu0
    %v1641 = vadd.f32 0.0, %v1640
    %v1642 = vpop.f32.mrb[0].mxu0
    %v1643 = vpop.f32.mrb[0].mxu0
    %v1644 = vadd.f32 0.0, %v1643
    %v1645 = vpop.f32.mrb[0].mxu0
    %1646 = vdwg.mxu0
    %v1647 = vadd.f32 %v123, %v1641
    %v1648 = vadd.f32 %v123, %v1644
    %v1649 = vpack.c.bf16 %v1571, %v1568
    %v1654 = vunpack.c.l.b16 %v103
    %v1655 = vunpack.c.l.b16 %v104
    %v1656 = vunpack.c.l.b16 %v105
    %v1657 = vunpack.c.l.b16 %v106
    %v1658 = vpack.c.b16 %v1655, %v1654
    %v1659 = vpack.c.b16 %v1657, %v1656
    %v1663 = vsel %vm150, %v1649, 0
    %1665 = vmatprep.subr.bf16.mxu0 0
    %1666 = vmatpush1.bf16.msra.mxu0 %v1658
    %1667 = vmatprep.subr.bf16.mxu0 0
    %1668 = vmatpush1.bf16.msra.mxu0 %v1659
    %1669 = vmatprep.subr.bf16.mxu0 0
    %1670 = vmatpush1.bf16.msra.mxu0 0
    %1671 = vmatprep.subr.bf16.mxu0 0
    %1672 = vmatpush1.bf16.msra.mxu0 0
    %1673 = vmatprep.subr.bf16.mxu0 0
    %1674 = vmatpush1.bf16.msra.mxu0 0
    %1675 = vmatprep.subr.bf16.mxu0 0
    %1676 = vmatpush1.bf16.msra.mxu0 0
    %1677 = vmatprep.subr.bf16.mxu0 0
    %1678 = vmatpush1.bf16.msra.mxu0 0
    %1679 = vmatprep.subr.bf16.mxu0 0
    %1680 = vmatpush1.bf16.msra.mxu0 0
    %1681 = vmatprep.subr.bf16.mxu0 0
    %1682 = vmatpush1.bf16.msra.mxu0 0
    %1683 = vmatprep.subr.bf16.mxu0 0
    %1684 = vmatpush1.bf16.msra.mxu0 0
    %1685 = vmatprep.subr.bf16.mxu0 0
    %1686 = vmatpush1.bf16.msra.mxu0 0
    %1687 = vmatprep.subr.bf16.mxu0 0
    %1688 = vmatpush1.bf16.msra.mxu0 0
    %1689 = vmatprep.subr.bf16.mxu0 0
    %1690 = vmatpush1.bf16.msra.mxu0 0
    %1691 = vmatprep.subr.bf16.mxu0 0
    %1692 = vmatpush1.bf16.msra.mxu0 0
    %1693 = vmatprep.subr.bf16.mxu0 0
    %1694 = vmatpush1.bf16.msra.mxu0 0
    %1695 = vmatprep.subr.bf16.mxu0 0
    %1696 = vmatpush1.bf16.msra.mxu0 0
    %1697 = vmatprep.mubr.bf16.mxu0 0
    %1698 = vmatmul.mubr.bf16.gmra.mrb[0].mxu0 %v1663
    %v1699 = vpop.f32.mrb[0].mxu0
    %v1700 = vadd.f32 0.0, %v1699
    %v1701 = vpop.f32.mrb[0].mxu0
    %v1702 = vpop.f32.mrb[0].mxu0
    %v1703 = vadd.f32 0.0, %v1702
    %v1704 = vpop.f32.mrb[0].mxu0
    %1705 = vdwg.mxu0
    %v1706 = vadd.f32 %v1647, %v1700
    %v1707 = vadd.f32 %v1648, %v1703
    %v1708 = vpack.c.bf16 %v1579, %v1576
    %v1713 = vunpack.c.l.b16 %v107
    %v1714 = vunpack.c.l.b16 %v108
    %v1715 = vunpack.c.l.b16 %v109
    %v1716 = vunpack.c.l.b16 %v110
    %v1717 = vpack.c.b16 %v1714, %v1713
    %v1718 = vpack.c.b16 %v1716, %v1715
    %v1722 = vsel %vm150, %v1708, 0
    %1724 = vmatprep.subr.bf16.mxu0 0
    %1725 = vmatpush1.bf16.msra.mxu0 %v1717
    %1726 = vmatprep.subr.bf16.mxu0 0
    %1727 = vmatpush1.bf16.msra.mxu0 %v1718
    %1728 = vmatprep.subr.bf16.mxu0 0
    %1729 = vmatpush1.bf16.msra.mxu0 0
    %1730 = vmatprep.subr.bf16.mxu0 0
    %1731 = vmatpush1.bf16.msra.mxu0 0
    %1732 = vmatprep.subr.bf16.mxu0 0
    %1733 = vmatpush1.bf16.msra.mxu0 0
    %1734 = vmatprep.subr.bf16.mxu0 0
    %1735 = vmatpush1.bf16.msra.mxu0 0
    %1736 = vmatprep.subr.bf16.mxu0 0
    %1737 = vmatpush1.bf16.msra.mxu0 0
    %1738 = vmatprep.subr.bf16.mxu0 0
    %1739 = vmatpush1.bf16.msra.mxu0 0
    %1740 = vmatprep.subr.bf16.mxu0 0
    %1741 = vmatpush1.bf16.msra.mxu0 0
    %1742 = vmatprep.subr.bf16.mxu0 0
    %1743 = vmatpush1.bf16.msra.mxu0 0
    %1744 = vmatprep.subr.bf16.mxu0 0
    %1745 = vmatpush1.bf16.msra.mxu0 0
    %1746 = vmatprep.subr.bf16.mxu0 0
    %1747 = vmatpush1.bf16.msra.mxu0 0
    %1748 = vmatprep.subr.bf16.mxu0 0
    %1749 = vmatpush1.bf16.msra.mxu0 0
    %1750 = vmatprep.subr.bf16.mxu0 0
    %1751 = vmatpush1.bf16.msra.mxu0 0
    %1752 = vmatprep.subr.bf16.mxu0 0
    %1753 = vmatpush1.bf16.msra.mxu0 0
    %1754 = vmatprep.subr.bf16.mxu0 0
    %1755 = vmatpush1.bf16.msra.mxu0 0
    %1756 = vmatprep.mubr.bf16.mxu0 0
    %1757 = vmatmul.mubr.bf16.gmra.mrb[0].mxu0 %v1722
    %v1758 = vpop.f32.mrb[0].mxu0
    %v1759 = vadd.f32 0.0, %v1758
    %v1760 = vpop.f32.mrb[0].mxu0
    %v1761 = vpop.f32.mrb[0].mxu0
    %v1762 = vadd.f32 0.0, %v1761
    %v1763 = vpop.f32.mrb[0].mxu0
    %1764 = vdwg.mxu0
    %v1765 = vadd.f32 %v1706, %v1759
    %v1766 = vadd.f32 %v1707, %v1762
    %v1767 = vpack.c.bf16 %v1587, %v1584
    %v1772 = vunpack.c.l.b16 %v111
    %v1773 = vunpack.c.l.b16 %v112
    %v1774 = vunpack.c.l.b16 %v113
    %v1775 = vunpack.c.l.b16 %v114
    %v1776 = vpack.c.b16 %v1773, %v1772
    %v1777 = vpack.c.b16 %v1775, %v1774
    %v1781 = vsel %vm150, %v1767, 0
    %1783 = vmatprep.subr.bf16.mxu0 0
    %1784 = vmatpush1.bf16.msra.mxu0 %v1776
    %1785 = vmatprep.subr.bf16.mxu0 0
    %1786 = vmatpush1.bf16.msra.mxu0 %v1777
    %1787 = vmatprep.subr.bf16.mxu0 0
    %1788 = vmatpush1.bf16.msra.mxu0 0
    %1789 = vmatprep.subr.bf16.mxu0 0
    %1790 = vmatpush1.bf16.msra.mxu0 0
    %1791 = vmatprep.subr.bf16.mxu0 0
    %1792 = vmatpush1.bf16.msra.mxu0 0
    %1793 = vmatprep.subr.bf16.mxu0 0
    %1794 = vmatpush1.bf16.msra.mxu0 0
    %1795 = vmatprep.subr.bf16.mxu0 0
    %1796 = vmatpush1.bf16.msra.mxu0 0
    %1797 = vmatprep.subr.bf16.mxu0 0
    %1798 = vmatpush1.bf16.msra.mxu0 0
    %1799 = vmatprep.subr.bf16.mxu0 0
    %1800 = vmatpush1.bf16.msra.mxu0 0
    %1801 = vmatprep.subr.bf16.mxu0 0
    %1802 = vmatpush1.bf16.msra.mxu0 0
    %1803 = vmatprep.subr.bf16.mxu0 0
    %1804 = vmatpush1.bf16.msra.mxu0 0
    %1805 = vmatprep.subr.bf16.mxu0 0
    %1806 = vmatpush1.bf16.msra.mxu0 0
    %1807 = vmatprep.subr.bf16.mxu0 0
    %1808 = vmatpush1.bf16.msra.mxu0 0
    %1809 = vmatprep.subr.bf16.mxu0 0
    %1810 = vmatpush1.bf16.msra.mxu0 0
    %1811 = vmatprep.subr.bf16.mxu0 0
    %1812 = vmatpush1.bf16.msra.mxu0 0
    %1813 = vmatprep.subr.bf16.mxu0 0
    %1814 = vmatpush1.bf16.msra.mxu0 0
    %1815 = vmatprep.mubr.bf16.mxu0 0
    %1816 = vmatmul.mubr.bf16.gmra.mrb[0].mxu0 %v1781
    %v1817 = vpop.f32.mrb[0].mxu0
    %v1818 = vadd.f32 0.0, %v1817
    %v1819 = vpop.f32.mrb[0].mxu0
    %v1820 = vpop.f32.mrb[0].mxu0
    %v1821 = vadd.f32 0.0, %v1820
    %v1822 = vpop.f32.mrb[0].mxu0
    %1823 = vdwg.mxu0
    %v1824 = vadd.f32 %v1765, %v1818
    %v1825 = vadd.f32 %v1766, %v1821
    %1826 = vst [vmem:[#allocation8] sm:$0xff] %v1824
    %1827 = vst [vmem:[#allocation8 + $0x8] sm:$0xff] %v1825
    %1830 = vrot.lane.b32.xlu0 %v200, 64
    %v1831 = vpop.permute.xlu0 %1830
    %1832 = vrot.lane.b32.xlu0 %v203, 64
    %v1833 = vpop.permute.xlu0 %1832
    %v1834 = vsel %vm1061, %v1831, 0
    %v1836 = vsel %vm1061, %v1833, 0
    %v1839 = vsel %vm1061, %v1052, 0
    %1841 = vmatprep.subr.mxu0 0.0
    %1842 = vmatpush1.xpose.msra.mxu0 %v1839
    %1843 = vmatprep.subr.mxu0 0.0
    %1844 = vmatpush1.xpose.msra.mxu0 0.0
    %1845 = vmatprep.subr.mxu0 0.0
    %1846 = vmatpush1.xpose.msra.mxu0 0.0
    %1847 = vmatprep.subr.mxu0 0.0
    %1848 = vmatpush1.xpose.msra.mxu0 0.0
    %1849 = vmatprep.subr.mxu0 0.0
    %1850 = vmatpush1.xpose.msra.mxu0 0.0
    %1851 = vmatprep.subr.mxu0 0.0
    %1852 = vmatpush1.xpose.msra.mxu0 0.0
    %1853 = vmatprep.subr.mxu0 0.0
    %1854 = vmatpush1.xpose.msra.mxu0 0.0
    %1855 = vmatprep.subr.mxu0 0.0
    %1856 = vmatpush1.xpose.msra.mxu0 0.0
    %1857 = vmatprep.subr.mxu0 0.0
    %1858 = vmatpush1.xpose.msra.mxu0 0.0
    %1859 = vmatprep.subr.mxu0 0.0
    %1860 = vmatpush1.xpose.msra.mxu0 0.0
    %1861 = vmatprep.subr.mxu0 0.0
    %1862 = vmatpush1.xpose.msra.mxu0 0.0
    %1863 = vmatprep.subr.mxu0 0.0
    %1864 = vmatpush1.xpose.msra.mxu0 0.0
    %1865 = vmatprep.subr.mxu0 0.0
    %1866 = vmatpush1.xpose.msra.mxu0 0.0
    %1867 = vmatprep.subr.mxu0 0.0
    %1868 = vmatpush1.xpose.msra.mxu0 0.0
    %1869 = vmatprep.subr.mxu0 0.0
    %1870 = vmatpush1.xpose.msra.mxu0 0.0
    %1871 = vmatprep.subr.mxu0 0.0
    %1872 = vmatpush1.xpose.msra.mxu0 0.0
    %1873 = vmatprep.subr.mxu0 0.0
    %1874 = vmatpush1.xpose.msra.mxu0 0.0
    %1875 = vmatprep.subr.mxu0 0.0
    %1876 = vmatpush1.xpose.msra.mxu0 0.0
    %1877 = vmatprep.subr.mxu0 0.0
    %1878 = vmatpush1.xpose.msra.mxu0 0.0
    %1879 = vmatprep.subr.mxu0 0.0
    %1880 = vmatpush1.xpose.msra.mxu0 0.0
    %1881 = vmatprep.subr.mxu0 0.0
    %1882 = vmatpush1.xpose.msra.mxu0 0.0
    %1883 = vmatprep.subr.mxu0 0.0
    %1884 = vmatpush1.xpose.msra.mxu0 0.0
    %1885 = vmatprep.subr.mxu0 0.0
    %1886 = vmatpush1.xpose.msra.mxu0 0.0
    %1887 = vmatprep.subr.mxu0 0.0
    %1888 = vmatpush1.xpose.msra.mxu0 0.0
    %1889 = vmatprep.subr.mxu0 0.0
    %1890 = vmatpush1.xpose.msra.mxu0 0.0
    %1891 = vmatprep.subr.mxu0 0.0
    %1892 = vmatpush1.xpose.msra.mxu0 0.0
    %1893 = vmatprep.subr.mxu0 0.0
    %1894 = vmatpush1.xpose.msra.mxu0 0.0
    %1895 = vmatprep.subr.mxu0 0.0
    %1896 = vmatpush1.xpose.msra.mxu0 0.0
    %1897 = vmatprep.subr.mxu0 0.0
    %1898 = vmatpush1.xpose.msra.mxu0 0.0
    %1899 = vmatprep.subr.mxu0 0.0
    %1900 = vmatpush1.xpose.msra.mxu0 0.0
    %1901 = vmatprep.subr.mxu0 0.0
    %1902 = vmatpush1.xpose.msra.mxu0 0.0
    %1903 = vmatprep.subr.mxu0 0.0
    %1904 = vmatpush1.xpose.msra.mxu0 0.0
    %1905 = vmatprep.mubr.f32.mxu0 0.0
    %1906 = vmatmul.mubr.f32.gmra.mrb[0].mxu0 %v1834
    %v1907 = vpop.f32.mrb[0].mxu0
    %v1908 = vadd.f32 0.0, %v1907
    %v1909 = vpop.f32.mrb[0].mxu0
    %1910 = vmatprep.mubr.f32.mxu0 0.0
    %1911 = vmatmul.mubr.f32.gmra.mrb[0].mxu0 %v1836
    %v1912 = vpop.f32.mrb[0].mxu0
    %v1913 = vadd.f32 0.0, %v1912
    %v1914 = vpop.f32.mrb[0].mxu0
    %1915 = vdwg.mxu0
    %1916 = vrot.lane.b32.xlu0 %v200, 56
    %v1917 = vpop.permute.xlu0 %1916
    %1918 = vrot.lane.b32.xlu0 %v203, 56
    %v1919 = vpop.permute.xlu0 %1918
    %1920 = vrot.lane.b32.xlu0 %v1052, 120
    %v1921 = vpop.permute.xlu0 %1920
    %v1922 = vsel %vm1061, %v1917, 0
    %v1924 = vsel %vm1061, %v1919, 0
    %v1926 = vsel %vm1061, %v1921, 0
    %1928 = vmatprep.subr.mxu0 0.0
    %1929 = vmatpush1.xpose.msra.mxu0 %v1926
    %1930 = vmatprep.subr.mxu0 0.0
    %1931 = vmatpush1.xpose.msra.mxu0 0.0
    %1932 = vmatprep.subr.mxu0 0.0
    %1933 = vmatpush1.xpose.msra.mxu0 0.0
    %1934 = vmatprep.subr.mxu0 0.0
    %1935 = vmatpush1.xpose.msra.mxu0 0.0
    %1936 = vmatprep.subr.mxu0 0.0
    %1937 = vmatpush1.xpose.msra.mxu0 0.0
    %1938 = vmatprep.subr.mxu0 0.0
    %1939 = vmatpush1.xpose.msra.mxu0 0.0
    %1940 = vmatprep.subr.mxu0 0.0
    %1941 = vmatpush1.xpose.msra.mxu0 0.0
    %1942 = vmatprep.subr.mxu0 0.0
    %1943 = vmatpush1.xpose.msra.mxu0 0.0
    %1944 = vmatprep.subr.mxu0 0.0
    %1945 = vmatpush1.xpose.msra.mxu0 0.0
    %1946 = vmatprep.subr.mxu0 0.0
    %1947 = vmatpush1.xpose.msra.mxu0 0.0
    %1948 = vmatprep.subr.mxu0 0.0
    %1949 = vmatpush1.xpose.msra.mxu0 0.0
    %1950 = vmatprep.subr.mxu0 0.0
    %1951 = vmatpush1.xpose.msra.mxu0 0.0
    %1952 = vmatprep.subr.mxu0 0.0
    %1953 = vmatpush1.xpose.msra.mxu0 0.0
    %1954 = vmatprep.subr.mxu0 0.0
    %1955 = vmatpush1.xpose.msra.mxu0 0.0
    %1956 = vmatprep.subr.mxu0 0.0
    %1957 = vmatpush1.xpose.msra.mxu0 0.0
    %1958 = vmatprep.subr.mxu0 0.0
    %1959 = vmatpush1.xpose.msra.mxu0 0.0
    %1960 = vmatprep.subr.mxu0 0.0
    %1961 = vmatpush1.xpose.msra.mxu0 0.0
    %1962 = vmatprep.subr.mxu0 0.0
    %1963 = vmatpush1.xpose.msra.mxu0 0.0
    %1964 = vmatprep.subr.mxu0 0.0
    %1965 = vmatpush1.xpose.msra.mxu0 0.0
    %1966 = vmatprep.subr.mxu0 0.0
    %1967 = vmatpush1.xpose.msra.mxu0 0.0
    %1968 = vmatprep.subr.mxu0 0.0
    %1969 = vmatpush1.xpose.msra.mxu0 0.0
    %1970 = vmatprep.subr.mxu0 0.0
    %1971 = vmatpush1.xpose.msra.mxu0 0.0
    %1972 = vmatprep.subr.mxu0 0.0
    %1973 = vmatpush1.xpose.msra.mxu0 0.0
    %1974 = vmatprep.subr.mxu0 0.0
    %1975 = vmatpush1.xpose.msra.mxu0 0.0
    %1976 = vmatprep.subr.mxu0 0.0
    %1977 = vmatpush1.xpose.msra.mxu0 0.0
    %1978 = vmatprep.subr.mxu0 0.0
    %1979 = vmatpush1.xpose.msra.mxu0 0.0
    %1980 = vmatprep.subr.mxu0 0.0
    %1981 = vmatpush1.xpose.msra.mxu0 0.0
    %1982 = vmatprep.subr.mxu0 0.0
    %1983 = vmatpush1.xpose.msra.mxu0 0.0
    %1984 = vmatprep.subr.mxu0 0.0
    %1985 = vmatpush1.xpose.msra.mxu0 0.0
    %1986 = vmatprep.subr.mxu0 0.0
    %1987 = vmatpush1.xpose.msra.mxu0 0.0
    %1988 = vmatprep.subr.mxu0 0.0
    %1989 = vmatpush1.xpose.msra.mxu0 0.0
    %1990 = vmatprep.subr.mxu0 0.0
    %1991 = vmatpush1.xpose.msra.mxu0 0.0
    %1992 = vmatprep.mubr.f32.mxu0 0.0
    %1993 = vmatmul.mubr.f32.gmra.mrb[0].mxu0 %v1922
    %v1994 = vpop.f32.mrb[0].mxu0
    %v1995 = vadd.f32 0.0, %v1994
    %v1996 = vpop.f32.mrb[0].mxu0
    %1997 = vmatprep.mubr.f32.mxu0 0.0
    %1998 = vmatmul.mubr.f32.gmra.mrb[0].mxu0 %v1924
    %v1999 = vpop.f32.mrb[0].mxu0
    %v2000 = vadd.f32 0.0, %v1999
    %v2001 = vpop.f32.mrb[0].mxu0
    %2002 = vdwg.mxu0
    %2003 = vrot.lane.b32.xlu0 %v200, 48
    %v2004 = vpop.permute.xlu0 %2003
    %2005 = vrot.lane.b32.xlu0 %v203, 48
    %v2006 = vpop.permute.xlu0 %2005
    %2007 = vrot.lane.b32.xlu0 %v1052, 112
    %v2008 = vpop.permute.xlu0 %2007
    %v2009 = vsel %vm1061, %v2004, 0
    %v2011 = vsel %vm1061, %v2006, 0
    %v2013 = vsel %vm1061, %v2008, 0
    %2015 = vmatprep.subr.mxu0 0.0
    %2016 = vmatpush1.xpose.msra.mxu0 %v2013
    %2017 = vmatprep.subr.mxu0 0.0
    %2018 = vmatpush1.xpose.msra.mxu0 0.0
    %2019 = vmatprep.subr.mxu0 0.0
    %2020 = vmatpush1.xpose.msra.mxu0 0.0
    %2021 = vmatprep.subr.mxu0 0.0
    %2022 = vmatpush1.xpose.msra.mxu0 0.0
    %2023 = vmatprep.subr.mxu0 0.0
    %2024 = vmatpush1.xpose.msra.mxu0 0.0
    %2025 = vmatprep.subr.mxu0 0.0
    %2026 = vmatpush1.xpose.msra.mxu0 0.0
    %2027 = vmatprep.subr.mxu0 0.0
    %2028 = vmatpush1.xpose.msra.mxu0 0.0
    %2029 = vmatprep.subr.mxu0 0.0
    %2030 = vmatpush1.xpose.msra.mxu0 0.0
    %2031 = vmatprep.subr.mxu0 0.0
    %2032 = vmatpush1.xpose.msra.mxu0 0.0
    %2033 = vmatprep.subr.mxu0 0.0
    %2034 = vmatpush1.xpose.msra.mxu0 0.0
    %2035 = vmatprep.subr.mxu0 0.0
    %2036 = vmatpush1.xpose.msra.mxu0 0.0
    %2037 = vmatprep.subr.mxu0 0.0
    %2038 = vmatpush1.xpose.msra.mxu0 0.0
    %2039 = vmatprep.subr.mxu0 0.0
    %2040 = vmatpush1.xpose.msra.mxu0 0.0
    %2041 = vmatprep.subr.mxu0 0.0
    %2042 = vmatpush1.xpose.msra.mxu0 0.0
    %2043 = vmatprep.subr.mxu0 0.0
    %2044 = vmatpush1.xpose.msra.mxu0 0.0
    %2045 = vmatprep.subr.mxu0 0.0
    %2046 = vmatpush1.xpose.msra.mxu0 0.0
    %2047 = vmatprep.subr.mxu0 0.0
    %2048 = vmatpush1.xpose.msra.mxu0 0.0
    %2049 = vmatprep.subr.mxu0 0.0
    %2050 = vmatpush1.xpose.msra.mxu0 0.0
    %2051 = vmatprep.subr.mxu0 0.0
    %2052 = vmatpush1.xpose.msra.mxu0 0.0
    %2053 = vmatprep.subr.mxu0 0.0
    %2054 = vmatpush1.xpose.msra.mxu0 0.0
    %2055 = vmatprep.subr.mxu0 0.0
    %2056 = vmatpush1.xpose.msra.mxu0 0.0
    %2057 = vmatprep.subr.mxu0 0.0
    %2058 = vmatpush1.xpose.msra.mxu0 0.0
    %2059 = vmatprep.subr.mxu0 0.0
    %2060 = vmatpush1.xpose.msra.mxu0 0.0
    %2061 = vmatprep.subr.mxu0 0.0
    %2062 = vmatpush1.xpose.msra.mxu0 0.0
    %2063 = vmatprep.subr.mxu0 0.0
    %2064 = vmatpush1.xpose.msra.mxu0 0.0
    %2065 = vmatprep.subr.mxu0 0.0
    %2066 = vmatpush1.xpose.msra.mxu0 0.0
    %2067 = vmatprep.subr.mxu0 0.0
    %2068 = vmatpush1.xpose.msra.mxu0 0.0
    %2069 = vmatprep.subr.mxu0 0.0
    %2070 = vmatpush1.xpose.msra.mxu0 0.0
    %2071 = vmatprep.subr.mxu0 0.0
    %2072 = vmatpush1.xpose.msra.mxu0 0.0
    %2073 = vmatprep.subr.mxu0 0.0
    %2074 = vmatpush1.xpose.msra.mxu0 0.0
    %2075 = vmatprep.subr.mxu0 0.0
    %2076 = vmatpush1.xpose.msra.mxu0 0.0
    %2077 = vmatprep.subr.mxu0 0.0
    %2078 = vmatpush1.xpose.msra.mxu0 0.0
    %2079 = vmatprep.mubr.f32.mxu0 0.0
    %2080 = vmatmul.mubr.f32.gmra.mrb[0].mxu0 %v2009
    %v2081 = vpop.f32.mrb[0].mxu0
    %v2082 = vadd.f32 0.0, %v2081
    %v2083 = vpop.f32.mrb[0].mxu0
    %2084 = vmatprep.mubr.f32.mxu0 0.0
    %2085 = vmatmul.mubr.f32.gmra.mrb[0].mxu0 %v2011
    %v2086 = vpop.f32.mrb[0].mxu0
    %v2087 = vadd.f32 0.0, %v2086
    %v2088 = vpop.f32.mrb[0].mxu0
    %2089 = vdwg.mxu0
    %2090 = vrot.lane.b32.xlu0 %v200, 40
    %v2091 = vpop.permute.xlu0 %2090
    %2092 = vrot.lane.b32.xlu0 %v203, 40
    %v2093 = vpop.permute.xlu0 %2092
    %2094 = vrot.lane.b32.xlu0 %v1052, 104
    %v2095 = vpop.permute.xlu0 %2094
    %v2096 = vsel %vm1061, %v2091, 0
    %v2098 = vsel %vm1061, %v2093, 0
    %v2100 = vsel %vm1061, %v2095, 0
    %2102 = vmatprep.subr.mxu0 0.0
    %2103 = vmatpush1.xpose.msra.mxu0 %v2100
    %2104 = vmatprep.subr.mxu0 0.0
    %2105 = vmatpush1.xpose.msra.mxu0 0.0
    %2106 = vmatprep.subr.mxu0 0.0
    %2107 = vmatpush1.xpose.msra.mxu0 0.0
    %2108 = vmatprep.subr.mxu0 0.0
    %2109 = vmatpush1.xpose.msra.mxu0 0.0
    %2110 = vmatprep.subr.mxu0 0.0
    %2111 = vmatpush1.xpose.msra.mxu0 0.0
    %2112 = vmatprep.subr.mxu0 0.0
    %2113 = vmatpush1.xpose.msra.mxu0 0.0
    %2114 = vmatprep.subr.mxu0 0.0
    %2115 = vmatpush1.xpose.msra.mxu0 0.0
    %2116 = vmatprep.subr.mxu0 0.0
    %2117 = vmatpush1.xpose.msra.mxu0 0.0
    %2118 = vmatprep.subr.mxu0 0.0
    %2119 = vmatpush1.xpose.msra.mxu0 0.0
    %2120 = vmatprep.subr.mxu0 0.0
    %2121 = vmatpush1.xpose.msra.mxu0 0.0
    %2122 = vmatprep.subr.mxu0 0.0
    %2123 = vmatpush1.xpose.msra.mxu0 0.0
    %2124 = vmatprep.subr.mxu0 0.0
    %2125 = vmatpush1.xpose.msra.mxu0 0.0
    %2126 = vmatprep.subr.mxu0 0.0
    %2127 = vmatpush1.xpose.msra.mxu0 0.0
    %2128 = vmatprep.subr.mxu0 0.0
    %2129 = vmatpush1.xpose.msra.mxu0 0.0
    %2130 = vmatprep.subr.mxu0 0.0
    %2131 = vmatpush1.xpose.msra.mxu0 0.0
    %2132 = vmatprep.subr.mxu0 0.0
    %2133 = vmatpush1.xpose.msra.mxu0 0.0
    %2134 = vmatprep.subr.mxu0 0.0
    %2135 = vmatpush1.xpose.msra.mxu0 0.0
    %2136 = vmatprep.subr.mxu0 0.0
    %2137 = vmatpush1.xpose.msra.mxu0 0.0
    %2138 = vmatprep.subr.mxu0 0.0
    %2139 = vmatpush1.xpose.msra.mxu0 0.0
    %2140 = vmatprep.subr.mxu0 0.0
    %2141 = vmatpush1.xpose.msra.mxu0 0.0
    %2142 = vmatprep.subr.mxu0 0.0
    %2143 = vmatpush1.xpose.msra.mxu0 0.0
    %2144 = vmatprep.subr.mxu0 0.0
    %2145 = vmatpush1.xpose.msra.mxu0 0.0
    %2146 = vmatprep.subr.mxu0 0.0
    %2147 = vmatpush1.xpose.msra.mxu0 0.0
    %2148 = vmatprep.subr.mxu0 0.0
    %2149 = vmatpush1.xpose.msra.mxu0 0.0
    %2150 = vmatprep.subr.mxu0 0.0
    %2151 = vmatpush1.xpose.msra.mxu0 0.0
    %2152 = vmatprep.subr.mxu0 0.0
    %2153 = vmatpush1.xpose.msra.mxu0 0.0
    %2154 = vmatprep.subr.mxu0 0.0
    %2155 = vmatpush1.xpose.msra.mxu0 0.0
    %2156 = vmatprep.subr.mxu0 0.0
    %2157 = vmatpush1.xpose.msra.mxu0 0.0
    %2158 = vmatprep.subr.mxu0 0.0
    %2159 = vmatpush1.xpose.msra.mxu0 0.0
    %2160 = vmatprep.subr.mxu0 0.0
    %2161 = vmatpush1.xpose.msra.mxu0 0.0
    %2162 = vmatprep.subr.mxu0 0.0
    %2163 = vmatpush1.xpose.msra.mxu0 0.0
    %2164 = vmatprep.subr.mxu0 0.0
    %2165 = vmatpush1.xpose.msra.mxu0 0.0
    %2166 = vmatprep.mubr.f32.mxu0 0.0
    %2167 = vmatmul.mubr.f32.gmra.mrb[0].mxu0 %v2096
    %v2168 = vpop.f32.mrb[0].mxu0
    %v2169 = vadd.f32 0.0, %v2168
    %v2170 = vpop.f32.mrb[0].mxu0
    %2171 = vmatprep.mubr.f32.mxu0 0.0
    %2172 = vmatmul.mubr.f32.gmra.mrb[0].mxu0 %v2098
    %v2173 = vpop.f32.mrb[0].mxu0
    %v2174 = vadd.f32 0.0, %v2173
    %v2175 = vpop.f32.mrb[0].mxu0
    %2176 = vdwg.mxu0
    %v2177 = vsel %vm1061, %v1908, -inf
    %2178 = vmax.xlane.f32.xlu0 %v2177
    %v2179 = vpop.xlane.xlu0 %2178
    %v2180 = vsel %vm1061, %v1913, -inf
    %2181 = vmax.xlane.f32.xlu0 %v2180
    %v2182 = vpop.xlane.xlu0 %2181
    %v2183 = vsel %vm1061, %v1995, -inf
    %2184 = vmax.xlane.f32.xlu0 %v2183
    %v2185 = vpop.xlane.xlu0 %2184
    %v2186 = vsel %vm1061, %v2000, -inf
    %2187 = vmax.xlane.f32.xlu0 %v2186
    %v2188 = vpop.xlane.xlu0 %2187
    %v2189 = vsel %vm1061, %v2082, -inf
    %2190 = vmax.xlane.f32.xlu0 %v2189
    %v2191 = vpop.xlane.xlu0 %2190
    %v2192 = vsel %vm1061, %v2087, -inf
    %2193 = vmax.xlane.f32.xlu0 %v2192
    %v2194 = vpop.xlane.xlu0 %2193
    %v2195 = vsel %vm1061, %v2169, -inf
    %2196 = vmax.xlane.f32.xlu0 %v2195
    %v2197 = vpop.xlane.xlu0 %2196
    %v2198 = vsel %vm1061, %v2174, -inf
    %2199 = vmax.xlane.f32.xlu0 %v2198
    %v2200 = vpop.xlane.xlu0 %2199
    %v2201 = vsub.f32 %v1908, %v2179
    %v2202 = vsub.f32 %v1913, %v2182
    %v2203 = vsub.f32 %v1995, %v2185
    %v2204 = vsub.f32 %v2000, %v2188
    %v2205 = vsub.f32 %v2082, %v2191
    %v2206 = vsub.f32 %v2087, %v2194
    %v2207 = vsub.f32 %v2169, %v2197
    %v2208 = vsub.f32 %v2174, %v2200
    %v2209 = vmul.f32 %v2201, 1.442695
    %v2210 = vpow.pop %v2209
    %v2211 = vmul.f32 %v2202, 1.442695
    %v2212 = vpow.pop %v2211
    %v2213 = vmul.f32 %v2203, 1.442695
    %v2214 = vpow.pop %v2213
    %v2215 = vmul.f32 %v2204, 1.442695
    %v2216 = vpow.pop %v2215
    %v2217 = vmul.f32 %v2205, 1.442695
    %v2218 = vpow.pop %v2217
    %v2219 = vmul.f32 %v2206, 1.442695
    %v2220 = vpow.pop %v2219
    %v2221 = vmul.f32 %v2207, 1.442695
    %v2222 = vpow.pop %v2221
    %v2223 = vmul.f32 %v2208, 1.442695
    %v2224 = vpow.pop %v2223
    %v2225 = vsel %vm1061, %v2210, 0.0
    %2226 = vadd.xlane.f32.xlu0 %v2225
    %v2227 = vpop.xlane.xlu0 %2226
    %v2228 = vsel %vm1061, %v2212, 0.0
    %2229 = vadd.xlane.f32.xlu0 %v2228
    %v2230 = vpop.xlane.xlu0 %2229
    %v2231 = vsel %vm1061, %v2214, 0.0
    %2232 = vadd.xlane.f32.xlu0 %v2231
    %v2233 = vpop.xlane.xlu0 %2232
    %v2234 = vsel %vm1061, %v2216, 0.0
    %2235 = vadd.xlane.f32.xlu0 %v2234
    %v2236 = vpop.xlane.xlu0 %2235
    %v2237 = vsel %vm1061, %v2218, 0.0
    %2238 = vadd.xlane.f32.xlu0 %v2237
    %v2239 = vpop.xlane.xlu0 %2238
    %v2240 = vsel %vm1061, %v2220, 0.0
    %2241 = vadd.xlane.f32.xlu0 %v2240
    %v2242 = vpop.xlane.xlu0 %2241
    %v2243 = vsel %vm1061, %v2222, 0.0
    %2244 = vadd.xlane.f32.xlu0 %v2243
    %v2245 = vpop.xlane.xlu0 %2244
    %v2246 = vsel %vm1061, %v2224, 0.0
    %2247 = vadd.xlane.f32.xlu0 %v2246
    %v2248 = vpop.xlane.xlu0 %2247
    %v2249 = vrcp.pop %v2227
    %v2250 = vrcp.pop %v2230
    %v2251 = vrcp.pop %v2233
    %v2252 = vrcp.pop %v2236
    %v2253 = vrcp.pop %v2239
    %v2254 = vrcp.pop %v2242
    %v2255 = vrcp.pop %v2245
    %v2256 = vrcp.pop %v2248
    %v2257 = vmul.f32 %v2249, 0.35355338
    %v2258 = vmul.f32 %v2250, 0.35355338
    %v2259 = vmul.f32 %v2251, 0.35355338
    %v2260 = vmul.f32 %v2252, 0.35355338
    %v2261 = vmul.f32 %v2253, 0.35355338
    %v2262 = vmul.f32 %v2254, 0.35355338
    %v2263 = vmul.f32 %v2255, 0.35355338
    %v2264 = vmul.f32 %v2256, 0.35355338
    %v2265 = vmul.f32 %v2210, %v2257
    %v2266 = vmul.f32 %v2212, %v2258
    %v2267 = vmul.f32 %v2214, %v2259
    %v2268 = vmul.f32 %v2216, %v2260
    %v2269 = vmul.f32 %v2218, %v2261
    %v2270 = vmul.f32 %v2220, %v2262
    %v2271 = vmul.f32 %v2222, %v2263
    %v2272 = vmul.f32 %v2224, %v2264
    %v2273 = vpack.c.bf16 %v2266, %v2265
    %v2274 = vpack.c.bf16 %v2268, %v2267
    %v2275 = vpack.c.bf16 %v2270, %v2269
    %v2276 = vpack.c.bf16 %v2272, %v2271
    %v2277 = vpack.c.bf16 %v1052, %v1052
    %2279 = vrot.lane.b32.xlu0 %v2277, 96
    %v2280 = vpop.permute.xlu0 %2279
    %v2282 = vsel %vm1061, %v2273, 0
    %v2285 = vsel %vm1061, %v2274, 0
    %v2288 = vsel %vm1061, %v2275, 0
    %v2291 = vsel %vm1061, %v2276, 0
    %v2294 = vsel %vm1521, %v2280, 0
    %2296 = vmatprep.subr.bf16.mxu0 0
    %2297 = vmatpush1.bf16.msra.mxu0 %v2294
    %2298 = vmatprep.subr.bf16.mxu0 0
    %2299 = vmatpush1.bf16.msra.mxu0 0
    %2300 = vmatprep.subr.bf16.mxu0 0
    %2301 = vmatpush1.bf16.msra.mxu0 0
    %2302 = vmatprep.subr.bf16.mxu0 0
    %2303 = vmatpush1.bf16.msra.mxu0 0
    %2304 = vmatprep.subr.bf16.mxu0 0
    %2305 = vmatpush1.bf16.msra.mxu0 0
    %2306 = vmatprep.subr.bf16.mxu0 0
    %2307 = vmatpush1.bf16.msra.mxu0 0
    %2308 = vmatprep.subr.bf16.mxu0 0
    %2309 = vmatpush1.bf16.msra.mxu0 0
    %2310 = vmatprep.subr.bf16.mxu0 0
    %2311 = vmatpush1.bf16.msra.mxu0 0
    %2312 = vmatprep.subr.bf16.mxu0 0
    %2313 = vmatpush1.bf16.msra.mxu0 0
    %2314 = vmatprep.subr.bf16.mxu0 0
    %2315 = vmatpush1.bf16.msra.mxu0 0
    %2316 = vmatprep.subr.bf16.mxu0 0
    %2317 = vmatpush1.bf16.msra.mxu0 0
    %2318 = vmatprep.subr.bf16.mxu0 0
    %2319 = vmatpush1.bf16.msra.mxu0 0
    %2320 = vmatprep.subr.bf16.mxu0 0
    %2321 = vmatpush1.bf16.msra.mxu0 0
    %2322 = vmatprep.subr.bf16.mxu0 0
    %2323 = vmatpush1.bf16.msra.mxu0 0
    %2324 = vmatprep.subr.bf16.mxu0 0
    %2325 = vmatpush1.bf16.msra.mxu0 0
    %2326 = vmatprep.subr.bf16.mxu0 0
    %2327 = vmatpush1.bf16.msra.mxu0 0
    %2328 = vmatprep.mubr.bf16.mxu0 0
    %2329 = vmatmul.mubr.bf16.gmra.mrb[0].mxu0 %v2282
    %v2330 = vpop.f32.mrb[0].mxu0
    %v2331 = vadd.f32 0.0, %v2330
    %v2332 = vpop.f32.mrb[0].mxu0
    %v2333 = vpop.f32.mrb[0].mxu0
    %v2334 = vadd.f32 0.0, %v2333
    %v2335 = vpop.f32.mrb[0].mxu0
    %2336 = vmatprep.mubr.bf16.mxu0 0
    %2337 = vmatmul.mubr.bf16.gmra.mrb[0].mxu0 %v2285
    %v2338 = vpop.f32.mrb[0].mxu0
    %v2339 = vadd.f32 0.0, %v2338
    %v2340 = vpop.f32.mrb[0].mxu0
    %v2341 = vpop.f32.mrb[0].mxu0
    %v2342 = vadd.f32 0.0, %v2341
    %v2343 = vpop.f32.mrb[0].mxu0
    %2344 = vmatprep.mubr.bf16.mxu0 0
    %2345 = vmatmul.mubr.bf16.gmra.mrb[0].mxu0 %v2288
    %v2346 = vpop.f32.mrb[0].mxu0
    %v2347 = vadd.f32 0.0, %v2346
    %v2348 = vpop.f32.mrb[0].mxu0
    %v2349 = vpop.f32.mrb[0].mxu0
    %v2350 = vadd.f32 0.0, %v2349
    %v2351 = vpop.f32.mrb[0].mxu0
    %2352 = vmatprep.mubr.bf16.mxu0 0
    %2353 = vmatmul.mubr.bf16.gmra.mrb[0].mxu0 %v2291
    %v2354 = vpop.f32.mrb[0].mxu0
    %v2355 = vadd.f32 0.0, %v2354
    %v2356 = vpop.f32.mrb[0].mxu0
    %v2357 = vpop.f32.mrb[0].mxu0
    %v2358 = vadd.f32 0.0, %v2357
    %v2359 = vpop.f32.mrb[0].mxu0
    %2360 = vdwg.mxu0
    %v2361 = vpack.c.bf16 %v2334, %v2331
    %v2363 = vsel %vm150, %v2361, 0
    %2365 = vmatprep.subr.bf16.mxu0 0
    %2366 = vmatpush1.bf16.msra.mxu0 %v1599
    %2367 = vmatprep.subr.bf16.mxu0 0
    %2368 = vmatpush1.bf16.msra.mxu0 %v1600
    %2369 = vmatprep.subr.bf16.mxu0 0
    %2370 = vmatpush1.bf16.msra.mxu0 0
    %2371 = vmatprep.subr.bf16.mxu0 0
    %2372 = vmatpush1.bf16.msra.mxu0 0
    %2373 = vmatprep.subr.bf16.mxu0 0
    %2374 = vmatpush1.bf16.msra.mxu0 0
    %2375 = vmatprep.subr.bf16.mxu0 0
    %2376 = vmatpush1.bf16.msra.mxu0 0
    %2377 = vmatprep.subr.bf16.mxu0 0
    %2378 = vmatpush1.bf16.msra.mxu0 0
    %2379 = vmatprep.subr.bf16.mxu0 0
    %2380 = vmatpush1.bf16.msra.mxu0 0
    %2381 = vmatprep.subr.bf16.mxu0 0
    %2382 = vmatpush1.bf16.msra.mxu0 0
    %2383 = vmatprep.subr.bf16.mxu0 0
    %2384 = vmatpush1.bf16.msra.mxu0 0
    %2385 = vmatprep.subr.bf16.mxu0 0
    %2386 = vmatpush1.bf16.msra.mxu0 0
    %2387 = vmatprep.subr.bf16.mxu0 0
    %2388 = vmatpush1.bf16.msra.mxu0 0
    %2389 = vmatprep.subr.bf16.mxu0 0
    %2390 = vmatpush1.bf16.msra.mxu0 0
    %2391 = vmatprep.subr.bf16.mxu0 0
    %2392 = vmatpush1.bf16.msra.mxu0 0
    %2393 = vmatprep.subr.bf16.mxu0 0
    %2394 = vmatpush1.bf16.msra.mxu0 0
    %2395 = vmatprep.subr.bf16.mxu0 0
    %2396 = vmatpush1.bf16.msra.mxu0 0
    %2397 = vmatprep.mubr.bf16.mxu0 0
    %2398 = vmatmul.mubr.bf16.gmra.mrb[0].mxu0 %v2363
    %v2399 = vpop.f32.mrb[0].mxu0
    %v2400 = vadd.f32 0.0, %v2399
    %v2401 = vpop.f32.mrb[0].mxu0
    %v2402 = vpop.f32.mrb[0].mxu0
    %v2403 = vadd.f32 0.0, %v2402
    %v2404 = vpop.f32.mrb[0].mxu0
    %2405 = vdwg.mxu0
    %v2406 = vadd.f32 %v123, %v2400
    %v2407 = vadd.f32 %v123, %v2403
    %v2408 = vpack.c.bf16 %v2342, %v2339
    %v2410 = vsel %vm150, %v2408, 0
    %2412 = vmatprep.subr.bf16.mxu0 0
    %2413 = vmatpush1.bf16.msra.mxu0 %v1658
    %2414 = vmatprep.subr.bf16.mxu0 0
    %2415 = vmatpush1.bf16.msra.mxu0 %v1659
    %2416 = vmatprep.subr.bf16.mxu0 0
    %2417 = vmatpush1.bf16.msra.mxu0 0
    %2418 = vmatprep.subr.bf16.mxu0 0
    %2419 = vmatpush1.bf16.msra.mxu0 0
    %2420 = vmatprep.subr.bf16.mxu0 0
    %2421 = vmatpush1.bf16.msra.mxu0 0
    %2422 = vmatprep.subr.bf16.mxu0 0
    %2423 = vmatpush1.bf16.msra.mxu0 0
    %2424 = vmatprep.subr.bf16.mxu0 0
    %2425 = vmatpush1.bf16.msra.mxu0 0
    %2426 = vmatprep.subr.bf16.mxu0 0
    %2427 = vmatpush1.bf16.msra.mxu0 0
    %2428 = vmatprep.subr.bf16.mxu0 0
    %2429 = vmatpush1.bf16.msra.mxu0 0
    %2430 = vmatprep.subr.bf16.mxu0 0
    %2431 = vmatpush1.bf16.msra.mxu0 0
    %2432 = vmatprep.subr.bf16.mxu0 0
    %2433 = vmatpush1.bf16.msra.mxu0 0
    %2434 = vmatprep.subr.bf16.mxu0 0
    %2435 = vmatpush1.bf16.msra.mxu0 0
    %2436 = vmatprep.subr.bf16.mxu0 0
    %2437 = vmatpush1.bf16.msra.mxu0 0
    %2438 = vmatprep.subr.bf16.mxu0 0
    %2439 = vmatpush1.bf16.msra.mxu0 0
    %2440 = vmatprep.subr.bf16.mxu0 0
    %2441 = vmatpush1.bf16.msra.mxu0 0
    %2442 = vmatprep.subr.bf16.mxu0 0
    %2443 = vmatpush1.bf16.msra.mxu0 0
    %2444 = vmatprep.mubr.bf16.mxu0 0
    %2445 = vmatmul.mubr.bf16.gmra.mrb[0].mxu0 %v2410
    %v2446 = vpop.f32.mrb[0].mxu0
    %v2447 = vadd.f32 0.0, %v2446
    %v2448 = vpop.f32.mrb[0].mxu0
    %v2449 = vpop.f32.mrb[0].mxu0
    %v2450 = vadd.f32 0.0, %v2449
    %v2451 = vpop.f32.mrb[0].mxu0
    %2452 = vdwg.mxu0
    %v2453 = vadd.f32 %v2406, %v2447
    %v2454 = vadd.f32 %v2407, %v2450
    %v2455 = vpack.c.bf16 %v2350, %v2347
    %v2457 = vsel %vm150, %v2455, 0
    %2459 = vmatprep.subr.bf16.mxu0 0
    %2460 = vmatpush1.bf16.msra.mxu0 %v1717
    %2461 = vmatprep.subr.bf16.mxu0 0
    %2462 = vmatpush1.bf16.msra.mxu0 %v1718
    %2463 = vmatprep.subr.bf16.mxu0 0
    %2464 = vmatpush1.bf16.msra.mxu0 0
    %2465 = vmatprep.subr.bf16.mxu0 0
    %2466 = vmatpush1.bf16.msra.mxu0 0
    %2467 = vmatprep.subr.bf16.mxu0 0
    %2468 = vmatpush1.bf16.msra.mxu0 0
    %2469 = vmatprep.subr.bf16.mxu0 0
    %2470 = vmatpush1.bf16.msra.mxu0 0
    %2471 = vmatprep.subr.bf16.mxu0 0
    %2472 = vmatpush1.bf16.msra.mxu0 0
    %2473 = vmatprep.subr.bf16.mxu0 0
    %2474 = vmatpush1.bf16.msra.mxu0 0
    %2475 = vmatprep.subr.bf16.mxu0 0
    %2476 = vmatpush1.bf16.msra.mxu0 0
    %2477 = vmatprep.subr.bf16.mxu0 0
    %2478 = vmatpush1.bf16.msra.mxu0 0
    %2479 = vmatprep.subr.bf16.mxu0 0
    %2480 = vmatpush1.bf16.msra.mxu0 0
    %2481 = vmatprep.subr.bf16.mxu0 0
    %2482 = vmatpush1.bf16.msra.mxu0 0
    %2483 = vmatprep.subr.bf16.mxu0 0
    %2484 = vmatpush1.bf16.msra.mxu0 0
    %2485 = vmatprep.subr.bf16.mxu0 0
    %2486 = vmatpush1.bf16.msra.mxu0 0
    %2487 = vmatprep.subr.bf16.mxu0 0
    %2488 = vmatpush1.bf16.msra.mxu0 0
    %2489 = vmatprep.subr.bf16.mxu0 0
    %2490 = vmatpush1.bf16.msra.mxu0 0
    %2491 = vmatprep.mubr.bf16.mxu0 0
    %2492 = vmatmul.mubr.bf16.gmra.mrb[0].mxu0 %v2457
    %v2493 = vpop.f32.mrb[0].mxu0
    %v2494 = vadd.f32 0.0, %v2493
    %v2495 = vpop.f32.mrb[0].mxu0
    %v2496 = vpop.f32.mrb[0].mxu0
    %v2497 = vadd.f32 0.0, %v2496
    %v2498 = vpop.f32.mrb[0].mxu0
    %2499 = vdwg.mxu0
    %v2500 = vadd.f32 %v2453, %v2494
    %v2501 = vadd.f32 %v2454, %v2497
    %v2502 = vpack.c.bf16 %v2358, %v2355
    %v2504 = vsel %vm150, %v2502, 0
    %2506 = vmatprep.subr.bf16.mxu0 0
    %2507 = vmatpush1.bf16.msra.mxu0 %v1776
    %2508 = vmatprep.subr.bf16.mxu0 0
    %2509 = vmatpush1.bf16.msra.mxu0 %v1777
    %2510 = vmatprep.subr.bf16.mxu0 0
    %2511 = vmatpush1.bf16.msra.mxu0 0
    %2512 = vmatprep.subr.bf16.mxu0 0
    %2513 = vmatpush1.bf16.msra.mxu0 0
    %2514 = vmatprep.subr.bf16.mxu0 0
    %2515 = vmatpush1.bf16.msra.mxu0 0
    %2516 = vmatprep.subr.bf16.mxu0 0
    %2517 = vmatpush1.bf16.msra.mxu0 0
    %2518 = vmatprep.subr.bf16.mxu0 0
    %2519 = vmatpush1.bf16.msra.mxu0 0
    %2520 = vmatprep.subr.bf16.mxu0 0
    %2521 = vmatpush1.bf16.msra.mxu0 0
    %2522 = vmatprep.subr.bf16.mxu0 0
    %2523 = vmatpush1.bf16.msra.mxu0 0
    %2524 = vmatprep.subr.bf16.mxu0 0
    %2525 = vmatpush1.bf16.msra.mxu0 0
    %2526 = vmatprep.subr.bf16.mxu0 0
    %2527 = vmatpush1.bf16.msra.mxu0 0
    %2528 = vmatprep.subr.bf16.mxu0 0
    %2529 = vmatpush1.bf16.msra.mxu0 0
    %2530 = vmatprep.subr.bf16.mxu0 0
    %2531 = vmatpush1.bf16.msra.mxu0 0
    %2532 = vmatprep.subr.bf16.mxu0 0
    %2533 = vmatpush1.bf16.msra.mxu0 0
    %2534 = vmatprep.subr.bf16.mxu0 0
    %2535 = vmatpush1.bf16.msra.mxu0 0
    %2536 = vmatprep.subr.bf16.mxu0 0
    %2537 = vmatpush1.bf16.msra.mxu0 0
    %2538 = vmatprep.mubr.bf16.mxu0 0
    %2539 = vmatmul.mubr.bf16.gmra.mrb[0].mxu0 %v2504
    %v2540 = vpop.f32.mrb[0].mxu0
    %v2541 = vadd.f32 0.0, %v2540
    %v2542 = vpop.f32.mrb[0].mxu0
    %v2543 = vpop.f32.mrb[0].mxu0
    %v2544 = vadd.f32 0.0, %v2543
    %v2545 = vpop.f32.mrb[0].mxu0
    %2546 = vdwg.mxu0
    %v2547 = vadd.f32 %v2500, %v2541
    %v2548 = vadd.f32 %v2501, %v2544
    %2549 = vst [vmem:[#allocation8 + $0x10] sm:$0xff] %v2547
    %2550 = vst [vmem:[#allocation8 + $0x18] sm:$0xff] %v2548
    // Predicated region
    $region42: #{tpu_custom_call.1} parent=1 // pred_check
      _
    $region43: #{tpu_custom_call.1} parent=1 // pred_check_branch
      %2552 = sbr.rel (0) target = $region45
    $region44: #{tpu_custom_call.1} parent=1 // pred_region
      %s2554 = ssub.s32 512, 512
      %2555 = vsyncadd [#allocation4], %s2554
      %s2556 = sshll.u32 [#allocation8], 4
      %s2557 = int_to_ptr.vmem [resolvable:$true] %s2556
      %2562 = dma.vmem_to_hbm [thread:$0]  %s2557, 512, %s7, [#allocation4], 128, 128, 8
    $region45: #{tpu_custom_call.1} parent=1 // pred_fallthru
      _
    // Predicated region
    $region46: #{tpu_custom_call.1} parent=1 // pred_check
      _
    $region47: #{tpu_custom_call.1} parent=1 // pred_check_branch
      %2564 = sbr.rel (0) target = $region49
    $region48: #{tpu_custom_call.1} parent=1 // pred_region
      %2565 = dma.done [#allocation4], 512
    $region49: #{tpu_custom_call.1} parent=1 // pred_fallthru
      _
    %2566 = vsyncpa [#allocation3], 1
    %2567 = vsyncpa [#allocation6], 1
    %2568 = vsyncpa [#allocation4], 1

</llo_original>
